<compile_context>
chip_gen: v5e
topology: v5e:2x2
jax: 0.10.0
libtpu: 0.0.40
codegen_flags: <defaults>
</compile_context>

<pallas_src>
import functools

import jax
import jax.numpy as jnp
from jax.experimental import pallas as pl
from jax.experimental.pallas import tpu as pltpu

LANE = 128


# ----------------------------- Pallas kernels ------------------------------

def _conv3x3_bn_kernel(x_ref, w_ref, scale_ref, shift_ref, y_ref, st_ref,
                       pad_ref, *, H, W, fuse_bn_relu):
    """One image: [optional fused BN+ReLU on the input] -> 3x3/stride-1/pad-1
    conv -> per-channel (sum, sum-of-squares) partials for the following BN.

    x_ref      : (1, M, Cp)   compact-row activation, M = H*(W+2), junk cols = 0
    w_ref      : (9, Cp, Cp)  bf16 conv taps, tap t = 3*kh + kw
    scale/shift: (1, Cp)      BN affine folded from batch stats (unused if not fused)
    y_ref      : (1, M, Cp)   conv output, compact-row layout, junk cols zeroed
    st_ref     : (1, 8, Cp)   row0 = sum, row1 = sum(x^2) over valid pixels (rest 0)
    pad_ref    : (P, Cp) bf16 VMEM scratch: zero-halo padded image (flat row-major)
    """
    Wp = W + 2
    M = H * Wp
    P, Cp = pad_ref.shape
    HEAD = Wp + 1                        # flat offset of pixel (0, 0) in pad_ref

    # Validity mask for the 2 junk columns appended to every image row.
    col = jax.lax.broadcasted_iota(jnp.int32, (M, 1), 0) % Wp
    valid = (col < W).astype(jnp.float32)

    a = x_ref[0].astype(jnp.float32)
    if fuse_bn_relu:                     # BN1 + ReLU fused into conv2's input path
        a = jnp.maximum(a * scale_ref[...] + shift_ref[...], 0.0)
    a = a * valid                        # keep the halo exactly zero

    # Build the zero-halo padded image in VMEM (in-kernel padding, no HBM pad pass).
    pad_ref[...] = jnp.zeros_like(pad_ref)
    pad_ref[HEAD:HEAD + M, :] = a.astype(pad_ref.dtype)

    # 3x3 conv = 9 shifted fat matmuls: (M, Cp) @ (Cp, Cp), bf16 in, f32 acc.
    acc = jnp.zeros((M, Cp), jnp.float32)
    for t in range(9):
        kh, kw = divmod(t, 3)
        off = kh * Wp + kw               # static, contiguous first-axis slice
        acc = acc + jnp.dot(pad_ref[off:off + M, :], w_ref[t],
                            preferred_element_type=jnp.float32)
    acc = acc * valid                    # zero the junk columns of the output

    # Per-image BN partial statistics, padded to a friendly (8, 128) tile.
    # NOTE: E[x^2]-E[x]^2 in f32 is fine here (conv outputs are near zero-mean,
    # small count); TODO(synk): Welford/centered sums for very large batches.
    s = jnp.sum(acc, axis=0, keepdims=True)
    sq = jnp.sum(acc * acc, axis=0, keepdims=True)
    st_ref[0] = jnp.concatenate(
        [s, sq, jnp.zeros((6, Cp), jnp.float32)], axis=0)

    y_ref[0] = acc.astype(y_ref.dtype)


def _bn_add_relu_kernel(y_ref, idn_ref, scale_ref, shift_ref, o_ref):
    o = y_ref[0].astype(jnp.float32) * scale_ref[...] + shift_ref[...]
    o = o + idn_ref[0].astype(jnp.float32)
    o_ref[0] = jnp.maximum(o, 0.0)


# ----------------------------- pallas_call glue -----------------------------

def conv3x3_bn_stats(x, w9, scale, shift, *, H, W, fuse_bn_relu, out_dtype):
    N, M, Cp = x.shape
    Wp = W + 2
    assert M == H * Wp
    P = (H + 3) * Wp                     # 1 top + 2(+) bottom halo rows
    kernel = functools.partial(_conv3x3_bn_kernel, H=H, W=W,
                               fuse_bn_relu=fuse_bn_relu)
    return pl.pallas_call(
        kernel,
        out_shape=(jax.ShapeDtypeStruct((N, M, Cp), out_dtype),
                   jax.ShapeDtypeStruct((N, 8, Cp), jnp.float32)),
        grid=(N,),
        in_specs=[pl.BlockSpec((1, M, Cp), lambda n: (n, 0, 0)),
                  pl.BlockSpec((9, Cp, Cp), lambda n: (0, 0, 0)),
                  pl.BlockSpec((1, Cp), lambda n: (0, 0)),
                  pl.BlockSpec((1, Cp), lambda n: (0, 0))],
        out_specs=(pl.BlockSpec((1, M, Cp), lambda n: (n, 0, 0)),
                   pl.BlockSpec((1, 8, Cp), lambda n: (n, 0, 0))),
        scratch_shapes=[pltpu.VMEM((P, Cp), jnp.bfloat16)],
        compiler_params=pltpu.CompilerParams(
            dimension_semantics=("parallel",)),   # per-image partial stats
    )(x, w9, scale, shift)


def bn_add_relu(y, identity, scale, shift):
    N, M, Cp = y.shape
    return pl.pallas_call(
        _bn_add_relu_kernel,
        out_shape=jax.ShapeDtypeStruct((N, M, Cp), jnp.float32),
        grid=(N,),
        in_specs=[pl.BlockSpec((1, M, Cp), lambda n: (n, 0, 0)),
                  pl.BlockSpec((1, M, Cp), lambda n: (n, 0, 0)),
                  pl.BlockSpec((1, Cp), lambda n: (0, 0)),
                  pl.BlockSpec((1, Cp), lambda n: (0, 0))],
        out_specs=pl.BlockSpec((1, M, Cp), lambda n: (n, 0, 0)),
        compiler_params=pltpu.CompilerParams(
            dimension_semantics=("parallel",)),
    )(y, identity, scale, shift)


# ------------------------------ wrapper helpers ------------------------------

def _prep_weight(w_hwio, Cp):
    kh, kw, ci, co = w_hwio.shape
    w = jnp.pad(w_hwio, ((0, 0), (0, 0), (0, Cp - ci), (0, Cp - co)))
    return w.reshape(kh * kw, Cp, Cp).astype(jnp.bfloat16)


def _pad_cvec(v, Cp):
    return jnp.pad(v.astype(jnp.float32), (0, Cp - v.shape[0])).reshape(1, Cp)


def _bn_affine_from_stats(st, count, gamma_p, beta_p, eps):
    """Fold training-mode BN (batch mean / biased var) into per-channel scale/shift."""
    s = jnp.sum(st[:, 0, :], axis=0)
    sq = jnp.sum(st[:, 1, :], axis=0)
    mean = s / count
    var = jnp.maximum(sq / count - mean * mean, 0.0)
    scale = gamma_p[0] * jax.lax.rsqrt(var + eps)
    shift = beta_p[0] - mean * scale
    return scale.reshape(1, -1), shift.reshape(1, -1)


def basic_block_forward(x_nchw, params, eps=1e-5):
    N, C, H, W = x_nchw.shape
    Cp = ((C + LANE - 1) // LANE) * LANE
    Wp = W + 2
    M = H * Wp

    # NCHW -> lane-dense compact-row layout (N, M, Cp).  Pure boundary plumbing.
    x = jnp.transpose(x_nchw, (0, 2, 3, 1)).astype(jnp.float32)
    x = jnp.pad(x, ((0, 0), (0, 0), (0, Wp - W), (0, Cp - C)))
    x_compact = x.reshape(N, M, Cp)

    w1 = _prep_weight(params["w1"], Cp)
    w2 = _prep_weight(params["w2"], Cp)
    g1, b1 = _pad_cvec(params["gamma1"], Cp), _pad_cvec(params["beta1"], Cp)
    g2, b2 = _pad_cvec(params["gamma2"], Cp), _pad_cvec(params["beta2"], Cp)
    ones = jnp.ones((1, Cp), jnp.float32)
    zeros = jnp.zeros((1, Cp), jnp.float32)
    count = N * H * W

    # conv1 (+ per-image BN1 partials).  Conv biases are dropped: an additive
    # per-channel bias cancels exactly under the training-mode BatchNorm that
    # follows (mean shift removed, variance unchanged).
    y1, st1 = conv3x3_bn_stats(x_compact, w1, ones, zeros, H=H, W=W,
                               fuse_bn_relu=False, out_dtype=jnp.bfloat16)
    sc1, sh1 = _bn_affine_from_stats(st1, count, g1, b1, eps)

    # BN1 + ReLU fused into conv2's input path (no extra HBM round trip).
    y2, st2 = conv3x3_bn_stats(y1, w2, sc1, sh1, H=H, W=W,
                               fuse_bn_relu=True, out_dtype=jnp.float32)
    sc2, sh2 = _bn_affine_from_stats(st2, count, g2, b2, eps)

    # BN2 + residual add + ReLU.  downsample is None -> identity = x.
    out = bn_add_relu(y2, x_compact, sc2, sh2)           # (N, M, Cp)

    out = out.reshape(N, H, Wp, Cp)[:, :, :W, :C]        # drop padding
    return jnp.transpose(out, (0, 3, 1, 2))              # NHWC -> NCHW


# ------------------------------ pure-JAX reference --------------------------

def _reference(x_nchw, params, eps=1e-5):
    x = jnp.transpose(x_nchw, (0, 2, 3, 1)).astype(jnp.float32)

    def conv(a, w, b):
        return jax.lax.conv_general_dilated(
            a, w, window_strides=(1, 1), padding=((1, 1), (1, 1)),
            dimension_numbers=("NHWC", "HWIO", "NHWC")) + b

    def bn(a, gamma, beta):
        mean = jnp.mean(a, axis=(0, 1, 2))
        var = jnp.mean((a - mean) ** 2, axis=(0, 1, 2))
        return (a - mean) * gamma * jax.lax.rsqrt(var + eps) + beta

    h = jax.nn.relu(bn(conv(x, params["w1"], params["b1"]),
                       params["gamma1"], params["beta1"]))
    h = bn(conv(h, params["w2"], params["b2"]),
           params["gamma2"], params["beta2"]) + x
    h = jax.nn.relu(h)
    return jnp.transpose(h, (0, 3, 1, 2))


# ----------------------------------- main ------------------------------------

if __name__ == "__main__":
    key = jax.random.PRNGKey(0)
    N, C, H, W = 2, 8, 16, 16          # in_channels = out_channels = 8, stride = 1
    k = jax.random.split(key, 5)

    x = jax.random.normal(k[0], (N, C, H, W), jnp.float32)

    fan_in = C * 3 * 3
    params = dict(
        w1=jax.random.normal(k[1], (3, 3, C, C), jnp.float32) / jnp.sqrt(fan_in),
        b1=0.1 * jax.random.normal(k[2], (C,), jnp.float32),
        gamma1=jnp.ones((C,), jnp.float32),
        beta1=jnp.zeros((C,), jnp.float32),
        w2=jax.random.normal(k[3], (3, 3, C, C), jnp.float32) / jnp.sqrt(fan_in),
        b2=0.1 * jax.random.normal(k[4], (C,), jnp.float32),
        gamma2=jnp.ones((C,), jnp.float32),
        beta2=jnp.zeros((C,), jnp.float32),
    )

    out = jax.block_until_ready(basic_block_forward(x, params))
    ref = jax.block_until_ready(_reference(x, params))

    assert out.shape == (N, C, H, W)
    assert out.dtype == jnp.float32
    # bf16 matmul inputs / bf16 y1 storage -> a slightly looser tolerance than
    # a pure-f32 path (reference is f32 end-to-end, incl. the conv biases that
    # the Pallas path folds away under BN).
    err = float(jnp.max(jnp.abs(out - ref)))
    assert err < 5e-2, f"mismatch vs reference: {err}"

    print("KERNEL_OK")
</pallas_src>

<mosaic_0001>
module attributes {stable_mosaic.version = 11 : i64} {
  func.func @_conv3x3_bn_kernel(%arg0: i32, %arg1: memref<1x288x128xf32, #tpu.memory_space<vmem>>, %arg2: memref<9x128x128xbf16, #tpu.memory_space<vmem>>, %arg3: memref<1x128xf32, #tpu.memory_space<vmem>>, %arg4: memref<1x128xf32, #tpu.memory_space<vmem>>, %arg5: memref<1x288x128xbf16, #tpu.memory_space<vmem>>, %arg6: memref<1x8x128xf32, #tpu.memory_space<vmem>>, %arg7: memref<342x128xbf16, #tpu.memory_space<vmem>>) attributes {dimension_semantics = [#tpu.dimension_semantics<parallel>], iteration_bounds = array<i64: 2>, scalar_prefetch = 0 : i64, scratch_operands = 1 : i64, tpu.core_type = #tpu.core_type<tc>, window_params = [{transform_indices = @transform_0, window_bounds = array<i64: 1, 288, 128>}, {pipeline_mode = #tpu.pipeline_mode<synchronous>, transform_indices = @transform_1, window_bounds = array<i64: 9, 128, 128>}, {pipeline_mode = #tpu.pipeline_mode<synchronous>, transform_indices = @transform_2, window_bounds = array<i64: 1, 128>}, {pipeline_mode = #tpu.pipeline_mode<synchronous>, transform_indices = @transform_3, window_bounds = array<i64: 1, 128>}, {transform_indices = @transform_4, window_bounds = array<i64: 1, 288, 128>}, {transform_indices = @transform_5, window_bounds = array<i64: 1, 8, 128>}]} {
    %0 = tpu.iota {dimensions = array<i32: 0>} : vector<288x1xi32>
    %c18_i32 = arith.constant 18 : i32
    %c0_i32 = arith.constant 0 : i32
    %1 = arith.cmpi eq, %c18_i32, %c0_i32 : i32
    %c1_i32 = arith.constant 1 : i32
    %2 = arith.select %1, %c1_i32, %c18_i32 : i32
    %3 = vector.broadcast %2 : i32 to vector<288x1xi32>
    %4 = arith.remsi %0, %3 : vector<288x1xi32>
    %c0_i32_0 = arith.constant 0 : i32
    %5 = vector.broadcast %c0_i32_0 : i32 to vector<288x1xi32>
    %6 = arith.cmpi ne, %4, %5 : vector<288x1xi32>
    %c0_i32_1 = arith.constant 0 : i32
    %7 = vector.broadcast %c0_i32_1 : i32 to vector<288x1xi32>
    %8 = arith.cmpi slt, %4, %7 : vector<288x1xi32>
    %c0_i32_2 = arith.constant 0 : i32
    %9 = arith.cmpi slt, %2, %c0_i32_2 : i32
    %10 = vector.broadcast %9 : i1 to vector<288x1xi1>
    %11 = vector.broadcast %10 : vector<288x1xi1> to vector<288x1xi1>
    %12 = arith.xori %8, %11 : vector<288x1xi1>
    %13 = arith.andi %12, %6 : vector<288x1xi1>
    %14 = vector.broadcast %2 : i32 to vector<288x1xi32>
    %15 = arith.addi %4, %14 : vector<288x1xi32>
    %16 = arith.select %13, %15, %4 : vector<288x1xi1>, vector<288x1xi32>
    %c16_i32 = arith.constant 16 : i32
    %17 = vector.broadcast %c16_i32 : i32 to vector<288x1xi32>
    %18 = arith.cmpi slt, %16, %17 : vector<288x1xi32>
    %19 = arith.extui %18 : vector<288x1xi1> to vector<288x1xi32>
    %20 = arith.sitofp %19 : vector<288x1xi32> to vector<288x1xf32>
    %c0 = arith.constant 0 : index
    %c0_3 = arith.constant 0 : index
    %c0_4 = arith.constant 0 : index
    %21 = vector.load %arg1[%c0, %c0_3, %c0_4] : memref<1x288x128xf32, #tpu.memory_space<vmem>>, vector<1x288x128xf32>
    %22 = vector.shape_cast %21 : vector<1x288x128xf32> to vector<288x128xf32>
    %23 = vector.broadcast %20 : vector<288x1xf32> to vector<288x128xf32>
    %24 = arith.mulf %22, %23 : vector<288x128xf32>
    %cst = arith.constant 0.000000e+00 : bf16
    %25 = vector.broadcast %cst : bf16 to vector<342x128xbf16>
    %c0_5 = arith.constant 0 : index
    %c0_6 = arith.constant 0 : index
    %26 = vector.load %arg7[%c0_5, %c0_6] : memref<342x128xbf16, #tpu.memory_space<vmem>>, vector<342x128xbf16>
    tpu.vector_store %arg7[%c0_5, %c0_6], %25 {strides = array<i32>} : memref<342x128xbf16, #tpu.memory_space<vmem>>, vector<342x128xbf16>,
    %27 = arith.truncf %24 : vector<288x128xf32> to vector<288x128xbf16>
    %c19 = arith.constant 19 : index
    %c0_7 = arith.constant 0 : index
    %28 = vector.load %arg7[%c19, %c0_7] : memref<342x128xbf16, #tpu.memory_space<vmem>>, vector<288x128xbf16>
    tpu.vector_store %arg7[%c19, %c0_7], %27 {strides = array<i32>} : memref<342x128xbf16, #tpu.memory_space<vmem>>, vector<288x128xbf16>,
    %cst_8 = arith.constant 0.000000e+00 : f32
    %29 = vector.broadcast %cst_8 : f32 to vector<288x128xf32>
    %c0_9 = arith.constant 0 : index
    %c0_10 = arith.constant 0 : index
    %30 = vector.load %arg7[%c0_9, %c0_10] : memref<342x128xbf16, #tpu.memory_space<vmem>>, vector<288x128xbf16>
    %c0_11 = arith.constant 0 : index
    %c0_12 = arith.constant 0 : index
    %c0_13 = arith.constant 0 : index
    %31 = vector.load %arg2[%c0_11, %c0_12, %c0_13] : memref<9x128x128xbf16, #tpu.memory_space<vmem>>, vector<1x128x128xbf16>
    %32 = vector.shape_cast %31 : vector<1x128x128xbf16> to vector<128x128xbf16>
    %cst_14 = arith.constant dense<0.000000e+00> : vector<288x128xf32>
    %33 = tpu.matmul %30, %32, %cst_14 {dimension_numbers = #tpu.dot_dimension_numbers<[1], [0], [0], [1], [0, 0, 1, 1], [], []>} : vector<288x128xbf16>, vector<128x128xbf16>, vector<288x128xf32> -> vector<288x128xf32>
    %34 = arith.addf %29, %33 : vector<288x128xf32>
    %c1 = arith.constant 1 : index
    %c0_15 = arith.constant 0 : index
    %35 = vector.load %arg7[%c1, %c0_15] : memref<342x128xbf16, #tpu.memory_space<vmem>>, vector<288x128xbf16>
    %c1_16 = arith.constant 1 : index
    %c0_17 = arith.constant 0 : index
    %c0_18 = arith.constant 0 : index
    %36 = vector.load %arg2[%c1_16, %c0_17, %c0_18] : memref<9x128x128xbf16, #tpu.memory_space<vmem>>, vector<1x128x128xbf16>
    %37 = vector.shape_cast %36 : vector<1x128x128xbf16> to vector<128x128xbf16>
    %cst_19 = arith.constant dense<0.000000e+00> : vector<288x128xf32>
    %38 = tpu.matmul %35, %37, %cst_19 {dimension_numbers = #tpu.dot_dimension_numbers<[1], [0], [0], [1], [0, 0, 1, 1], [], []>} : vector<288x128xbf16>, vector<128x128xbf16>, vector<288x128xf32> -> vector<288x128xf32>
    %39 = arith.addf %34, %38 : vector<288x128xf32>
    %c2 = arith.constant 2 : index
    %c0_20 = arith.constant 0 : index
    %40 = vector.load %arg7[%c2, %c0_20] : memref<342x128xbf16, #tpu.memory_space<vmem>>, vector<288x128xbf16>
    %c2_21 = arith.constant 2 : index
    %c0_22 = arith.constant 0 : index
    %c0_23 = arith.constant 0 : index
    %41 = vector.load %arg2[%c2_21, %c0_22, %c0_23] : memref<9x128x128xbf16, #tpu.memory_space<vmem>>, vector<1x128x128xbf16>
    %42 = vector.shape_cast %41 : vector<1x128x128xbf16> to vector<128x128xbf16>
    %cst_24 = arith.constant dense<0.000000e+00> : vector<288x128xf32>
    %43 = tpu.matmul %40, %42, %cst_24 {dimension_numbers = #tpu.dot_dimension_numbers<[1], [0], [0], [1], [0, 0, 1, 1], [], []>} : vector<288x128xbf16>, vector<128x128xbf16>, vector<288x128xf32> -> vector<288x128xf32>
    %44 = arith.addf %39, %43 : vector<288x128xf32>
    %c18 = arith.constant 18 : index
    %c0_25 = arith.constant 0 : index
    %45 = vector.load %arg7[%c18, %c0_25] : memref<342x128xbf16, #tpu.memory_space<vmem>>, vector<288x128xbf16>
    %c3 = arith.constant 3 : index
    %c0_26 = arith.constant 0 : index
    %c0_27 = arith.constant 0 : index
    %46 = vector.load %arg2[%c3, %c0_26, %c0_27] : memref<9x128x128xbf16, #tpu.memory_space<vmem>>, vector<1x128x128xbf16>
    %47 = vector.shape_cast %46 : vector<1x128x128xbf16> to vector<128x128xbf16>
    %cst_28 = arith.constant dense<0.000000e+00> : vector<288x128xf32>
    %48 = tpu.matmul %45, %47, %cst_28 {dimension_numbers = #tpu.dot_dimension_numbers<[1], [0], [0], [1], [0, 0, 1, 1], [], []>} : vector<288x128xbf16>, vector<128x128xbf16>, vector<288x128xf32> -> vector<288x128xf32>
    %49 = arith.addf %44, %48 : vector<288x128xf32>
    %c19_29 = arith.constant 19 : index
    %c0_30 = arith.constant 0 : index
    %50 = vector.load %arg7[%c19_29, %c0_30] : memref<342x128xbf16, #tpu.memory_space<vmem>>, vector<288x128xbf16>
    %c4 = arith.constant 4 : index
    %c0_31 = arith.constant 0 : index
    %c0_32 = arith.constant 0 : index
    %51 = vector.load %arg2[%c4, %c0_31, %c0_32] : memref<9x128x128xbf16, #tpu.memory_space<vmem>>, vector<1x128x128xbf16>
    %52 = vector.shape_cast %51 : vector<1x128x128xbf16> to vector<128x128xbf16>
    %cst_33 = arith.constant dense<0.000000e+00> : vector<288x128xf32>
    %53 = tpu.matmul %50, %52, %cst_33 {dimension_numbers = #tpu.dot_dimension_numbers<[1], [0], [0], [1], [0, 0, 1, 1], [], []>} : vector<288x128xbf16>, vector<128x128xbf16>, vector<288x128xf32> -> vector<288x128xf32>
    %54 = arith.addf %49, %53 : vector<288x128xf32>
    %c20 = arith.constant 20 : index
    %c0_34 = arith.constant 0 : index
    %55 = vector.load %arg7[%c20, %c0_34] : memref<342x128xbf16, #tpu.memory_space<vmem>>, vector<288x128xbf16>
    %c5 = arith.constant 5 : index
    %c0_35 = arith.constant 0 : index
    %c0_36 = arith.constant 0 : index
    %56 = vector.load %arg2[%c5, %c0_35, %c0_36] : memref<9x128x128xbf16, #tpu.memory_space<vmem>>, vector<1x128x128xbf16>
    %57 = vector.shape_cast %56 : vector<1x128x128xbf16> to vector<128x128xbf16>
    %cst_37 = arith.constant dense<0.000000e+00> : vector<288x128xf32>
    %58 = tpu.matmul %55, %57, %cst_37 {dimension_numbers = #tpu.dot_dimension_numbers<[1], [0], [0], [1], [0, 0, 1, 1], [], []>} : vector<288x128xbf16>, vector<128x128xbf16>, vector<288x128xf32> -> vector<288x128xf32>
    %59 = arith.addf %54, %58 : vector<288x128xf32>
    %c36 = arith.constant 36 : index
    %c0_38 = arith.constant 0 : index
    %60 = vector.load %arg7[%c36, %c0_38] : memref<342x128xbf16, #tpu.memory_space<vmem>>, vector<288x128xbf16>
    %c6 = arith.constant 6 : index
    %c0_39 = arith.constant 0 : index
    %c0_40 = arith.constant 0 : index
    %61 = vector.load %arg2[%c6, %c0_39, %c0_40] : memref<9x128x128xbf16, #tpu.memory_space<vmem>>, vector<1x128x128xbf16>
    %62 = vector.shape_cast %61 : vector<1x128x128xbf16> to vector<128x128xbf16>
    %cst_41 = arith.constant dense<0.000000e+00> : vector<288x128xf32>
    %63 = tpu.matmul %60, %62, %cst_41 {dimension_numbers = #tpu.dot_dimension_numbers<[1], [0], [0], [1], [0, 0, 1, 1], [], []>} : vector<288x128xbf16>, vector<128x128xbf16>, vector<288x128xf32> -> vector<288x128xf32>
    %64 = arith.addf %59, %63 : vector<288x128xf32>
    %c37 = arith.constant 37 : index
    %c0_42 = arith.constant 0 : index
    %65 = vector.load %arg7[%c37, %c0_42] : memref<342x128xbf16, #tpu.memory_space<vmem>>, vector<288x128xbf16>
    %c7 = arith.constant 7 : index
    %c0_43 = arith.constant 0 : index
    %c0_44 = arith.constant 0 : index
    %66 = vector.load %arg2[%c7, %c0_43, %c0_44] : memref<9x128x128xbf16, #tpu.memory_space<vmem>>, vector<1x128x128xbf16>
    %67 = vector.shape_cast %66 : vector<1x128x128xbf16> to vector<128x128xbf16>
    %cst_45 = arith.constant dense<0.000000e+00> : vector<288x128xf32>
    %68 = tpu.matmul %65, %67, %cst_45 {dimension_numbers = #tpu.dot_dimension_numbers<[1], [0], [0], [1], [0, 0, 1, 1], [], []>} : vector<288x128xbf16>, vector<128x128xbf16>, vector<288x128xf32> -> vector<288x128xf32>
    %69 = arith.addf %64, %68 : vector<288x128xf32>
    %c38 = arith.constant 38 : index
    %c0_46 = arith.constant 0 : index
    %70 = vector.load %arg7[%c38, %c0_46] : memref<342x128xbf16, #tpu.memory_space<vmem>>, vector<288x128xbf16>
    %c8 = arith.constant 8 : index
    %c0_47 = arith.constant 0 : index
    %c0_48 = arith.constant 0 : index
    %71 = vector.load %arg2[%c8, %c0_47, %c0_48] : memref<9x128x128xbf16, #tpu.memory_space<vmem>>, vector<1x128x128xbf16>
    %72 = vector.shape_cast %71 : vector<1x128x128xbf16> to vector<128x128xbf16>
    %cst_49 = arith.constant dense<0.000000e+00> : vector<288x128xf32>
    %73 = tpu.matmul %70, %72, %cst_49 {dimension_numbers = #tpu.dot_dimension_numbers<[1], [0], [0], [1], [0, 0, 1, 1], [], []>} : vector<288x128xbf16>, vector<128x128xbf16>, vector<288x128xf32> -> vector<288x128xf32>
    %74 = arith.addf %69, %73 : vector<288x128xf32>
    %75 = vector.broadcast %20 : vector<288x1xf32> to vector<288x128xf32>
    %76 = arith.mulf %74, %75 : vector<288x128xf32>
    %cst_50 = arith.constant dense<0.000000e+00> : vector<128xf32>
    %77 = vector.multi_reduction <add>, %76, %cst_50 [0] : vector<288x128xf32> to vector<128xf32>
    %78 = vector.shape_cast %77 : vector<128xf32> to vector<1x128xf32>
    %79 = arith.mulf %76, %76 : vector<288x128xf32>
    %cst_51 = arith.constant dense<0.000000e+00> : vector<128xf32>
    %80 = vector.multi_reduction <add>, %79, %cst_51 [0] : vector<288x128xf32> to vector<128xf32>
    %81 = vector.shape_cast %80 : vector<128xf32> to vector<1x128xf32>
    %cst_52 = arith.constant 0.000000e+00 : f32
    %82 = vector.broadcast %cst_52 : f32 to vector<6x128xf32>
    %83 = tpu.concatenate %78, %81, %82 in 0 : vector<1x128xf32>, vector<1x128xf32>, vector<6x128xf32> -> vector<8x128xf32>
    %c0_53 = arith.constant 0 : index
    %c0_54 = arith.constant 0 : index
    %c0_55 = arith.constant 0 : index
    %84 = vector.load %arg6[%c0_53, %c0_54, %c0_55] : memref<1x8x128xf32, #tpu.memory_space<vmem>>, vector<1x8x128xf32>
    %85 = vector.shape_cast %84 : vector<1x8x128xf32> to vector<8x128xf32>
    %86 = vector.shape_cast %83 : vector<8x128xf32> to vector<1x8x128xf32>
    tpu.vector_store %arg6[%c0_53, %c0_54, %c0_55], %86 {strides = array<i32>} : memref<1x8x128xf32, #tpu.memory_space<vmem>>, vector<1x8x128xf32>,
    %87 = arith.truncf %76 : vector<288x128xf32> to vector<288x128xbf16>
    %c0_56 = arith.constant 0 : index
    %c0_57 = arith.constant 0 : index
    %c0_58 = arith.constant 0 : index
    %88 = vector.load %arg5[%c0_56, %c0_57, %c0_58] : memref<1x288x128xbf16, #tpu.memory_space<vmem>>, vector<1x288x128xbf16>
    %89 = vector.shape_cast %88 : vector<1x288x128xbf16> to vector<288x128xbf16>
    %90 = vector.shape_cast %87 : vector<288x128xbf16> to vector<1x288x128xbf16>
    tpu.vector_store %arg5[%c0_56, %c0_57, %c0_58], %90 {strides = array<i32>} : memref<1x288x128xbf16, #tpu.memory_space<vmem>>, vector<1x288x128xbf16>,
    return
  }
  func.func @transform_0(%arg0: i32) -> (i32, i32, i32) {
    %c0_i32 = arith.constant 0 : i32
    %c0_i32_0 = arith.constant 0 : i32
    %c0_i32_1 = arith.constant 0 : i32
    return %arg0, %c0_i32, %c0_i32_0 : i32, i32, i32
  }
  func.func @transform_1(%arg0: i32) -> (i32, i32, i32) {
    %c0_i32 = arith.constant 0 : i32
    %c0_i32_0 = arith.constant 0 : i32
    %c0_i32_1 = arith.constant 0 : i32
    %c0_i32_2 = arith.constant 0 : i32
    return %c0_i32, %c0_i32_0, %c0_i32_1 : i32, i32, i32
  }
  func.func @transform_2(%arg0: i32) -> (i32, i32) {
    %c0_i32 = arith.constant 0 : i32
    %c0_i32_0 = arith.constant 0 : i32
    %c0_i32_1 = arith.constant 0 : i32
    return %c0_i32, %c0_i32_0 : i32, i32
  }
  func.func @transform_3(%arg0: i32) -> (i32, i32) {
    %c0_i32 = arith.constant 0 : i32
    %c0_i32_0 = arith.constant 0 : i32
    %c0_i32_1 = arith.constant 0 : i32
    return %c0_i32, %c0_i32_0 : i32, i32
  }
  func.func @transform_4(%arg0: i32) -> (i32, i32, i32) {
    %c0_i32 = arith.constant 0 : i32
    %c0_i32_0 = arith.constant 0 : i32
    %c0_i32_1 = arith.constant 0 : i32
    return %arg0, %c0_i32, %c0_i32_0 : i32, i32, i32
  }
  func.func @transform_5(%arg0: i32) -> (i32, i32, i32) {
    %c0_i32 = arith.constant 0 : i32
    %c0_i32_0 = arith.constant 0 : i32
    %c0_i32_1 = arith.constant 0 : i32
    return %arg0, %c0_i32, %c0_i32_0 : i32, i32, i32
  }
}

</mosaic_0001>

<llo_original>
// kernel: tpu_custom_call.1
$region0: #{tpu_custom_call.1}
  #allocation0 [shape = 'u32[]', space=smem, size = 0x4, offset = 0x4, fixed_abs, tag = 'smem constant byte address 0x4 - core index']
  #allocation1 [shape = 'u32[72,128]{1,0:T(1,128)}', space=vmem, size = 0x9000, scoped, tag = 'internal scratch']
  #allocation2 [shape = 'bf16[342,128]{1,0:T(8,128)(2,1)}', space=vmem, size = 0x15800, scoped, tag = 'scratch operand']
  %s0 = inlined_call_operand.hbm [shape: f32[2,288,128], index: 0, kind: input, shape index: {}]
  %s1 = inlined_call_operand.hbm [shape: bf16[9,128,128], index: 1, kind: input, shape index: {}]
  %s2 = inlined_call_operand.vmem [shape: f32[1,128], index: 2, kind: input, shape index: {}]
  %s3 = inlined_call_operand.vmem [shape: f32[1,128], index: 3, kind: input, shape index: {}]
  %s4 = inlined_call_operand.hbm [shape: bf16[2,288,128], index: 4, kind: output, shape index: {0}]
  %s5 = inlined_call_operand.hbm [shape: f32[2,8,128], index: 5, kind: output, shape index: {1}]
  %6 = xla_tuple %s4, %s5
  %s7 = sld [smem:[#allocation0]]
  $region65: #{tpu_custom_call.1} parent=0
    _
  %s9 = ssub.s32 1, %s7
  %s10 = scalar_select 0, %s9, %s7
  $region1: #{tpu_custom_call.1} parent=0
    #allocation3 [shape = 'u8[294912]{0}', space=vmem, size = 0x48000, scoped, tag = 'input window, operand 0']
    #allocation4 [shape = 's32[2]{0}', space=sflag, size = 0x8, scoped, tag = 'scoped memory for tpu_custom_call.1']
    #allocation5 [shape = 's32[2]{0}', space=sflag, size = 0x8, scoped, tag = 'scoped memory for tpu_custom_call.1']
    #allocation6 [shape = 'u8[294912]{0}', space=vmem, size = 0x48000, scoped, tag = 'input window, operand 1, single buffered']
    #allocation7 [shape = 's32[1]{0}', space=sflag, size = 0x4, scoped, tag = 'scoped memory for tpu_custom_call.1']
    #allocation8 [shape = 'u8[147456]{0}', space=vmem, size = 0x24000, scoped, tag = 'output window, operand 0']
    #allocation9 [shape = 'u8[8192]{0}', space=vmem, size = 0x2000, scoped, tag = 'output window, operand 1']
    #allocation10 [shape = 's32[2]{0}', space=sflag, size = 0x8, scoped, tag = 'scoped memory for tpu_custom_call.1']
    %11 = vsyncpa [#allocation4], 0
    %s12 = scalar_lea.sflag [#allocation4], 1
    %13 = vsyncpa %s12, 0
    %14 = vsyncpa [#allocation7], 0
    %15 = vsyncpa [#allocation5], 0
    %s16 = scalar_lea.sflag [#allocation5], 1
    %17 = vsyncpa %s16, 0
    %18 = vsyncpa [#allocation10], 0
    %s19 = scalar_lea.sflag [#allocation10], 1
    %20 = vsyncpa %s19, 0
    loop: start=0, step=1, limit=4
    $region2: #{tpu_custom_call.1} parent=1 // loop_pre_header
      _
    $region3: #{tpu_custom_call.1} parent=1 // loop_header
      %s22 = sphi 0, %s26
      %p23 = scmp.ge.s32.totalorder %s22, 4
      %s32 = sphi 0, %s34
      %s35 = sphi 0, %s32
      %s36 = sphi 0, %s35
      %s52 = sphi 0, %s36
      %s56 = sphi 0, %s56
      %s58 = sphi 0, %s56
      %s59 = sphi 0, %s58
      %s73 = sphi 0, %s59
      %s77 = sphi 0, %s77
      %s79 = sphi 0, %s77
      %s80 = sphi 0, %s79
      %s94 = sphi 0, %s80
      %s98 = sphi 0, %s98
      %s100 = sphi 0, %s98
      %s101 = sphi 0, %s100
      %s115 = sphi 0, %s101
      %s121 = sphi 0, %s123
      %s124 = sphi 0, %s121
      %s125 = sphi 0, %s124
      %s141 = sphi 0, %s125
      %s147 = sphi 0, %s149
      %s150 = sphi 0, %s147
      %s151 = sphi 0, %s150
      %s167 = sphi 0, %s151
    $region4: #{tpu_custom_call.1} parent=1 // loop_header_branch
      %25 = sbr.rel (%p23) target = $region8
    $region5: #{tpu_custom_call.1} parent=1 // loop_body
      %s27 = ssub.s32 %s22, 1
      %s28 = ssub.s32 %s22, 2
      %s29 = sadd.s32 %s22, 1
      %s30 = ssub.s32 %s22, %s29
      %p31 = scmp.eq.s32.totalorder %s30, 0
      %s33 = sadd.s32 %s32, 1
      %s34 = scalar_select %p31, %s32, %s33
      %p37 = pneg %p31
      %p38 = scmp.eq.s32.totalorder %s22, 1
      %p39 = por %p37, %p38
      %p40 = scmp.ne.s32.totalorder %s32, %s35
      %p41 = scmp.eq.s32.totalorder %s22, 0
      %p42 = por %p40, %p41
      %p43 = scmp.ne.s32.totalorder %s32, %s35
      %p44 = scmp.eq.s32.totalorder %s27, 1
      %p45 = por %p43, %p44
      %p46 = scmp.ne.s32.totalorder %s35, %s36
      %p47 = scmp.eq.s32.totalorder %s27, 0
      %p48 = por %p46, %p47
      %p49 = scmp.ne.s32.totalorder %s35, %s36
      %p50 = scmp.eq.s32.totalorder %s28, 1
      %p51 = por %p49, %p50
      %p53 = scmp.ne.s32.totalorder %s36, %s52
      %p54 = scmp.eq.s32.totalorder %s28, 0
      %p55 = por %p53, %p54
      %s57 = sadd.s32 %s56, 1
      %p60 = scmp.eq.s32.totalorder %s22, 1
      %p61 = scmp.ne.s32.totalorder %s56, %s58
      %p62 = scmp.eq.s32.totalorder %s22, 0
      %p63 = por %p61, %p62
      %p64 = scmp.ne.s32.totalorder %s56, %s58
      %p65 = scmp.eq.s32.totalorder %s27, 1
      %p66 = por %p64, %p65
      %p67 = scmp.ne.s32.totalorder %s58, %s59
      %p68 = scmp.eq.s32.totalorder %s27, 0
      %p69 = por %p67, %p68
      %p70 = scmp.ne.s32.totalorder %s58, %s59
      %p71 = scmp.eq.s32.totalorder %s28, 1
      %p72 = por %p70, %p71
      %p74 = scmp.ne.s32.totalorder %s59, %s73
      %p75 = scmp.eq.s32.totalorder %s28, 0
      %p76 = por %p74, %p75
      %s78 = sadd.s32 %s77, 1
      %p81 = scmp.eq.s32.totalorder %s22, 1
      %p82 = scmp.ne.s32.totalorder %s77, %s79
      %p83 = scmp.eq.s32.totalorder %s22, 0
      %p84 = por %p82, %p83
      %p85 = scmp.ne.s32.totalorder %s77, %s79
      %p86 = scmp.eq.s32.totalorder %s27, 1
      %p87 = por %p85, %p86
      %p88 = scmp.ne.s32.totalorder %s79, %s80
      %p89 = scmp.eq.s32.totalorder %s27, 0
      %p90 = por %p88, %p89
      %p91 = scmp.ne.s32.totalorder %s79, %s80
      %p92 = scmp.eq.s32.totalorder %s28, 1
      %p93 = por %p91, %p92
      %p95 = scmp.ne.s32.totalorder %s80, %s94
      %p96 = scmp.eq.s32.totalorder %s28, 0
      %p97 = por %p95, %p96
      %s99 = sadd.s32 %s98, 1
      %p102 = scmp.eq.s32.totalorder %s22, 1
      %p103 = scmp.ne.s32.totalorder %s98, %s100
      %p104 = scmp.eq.s32.totalorder %s22, 0
      %p105 = por %p103, %p104
      %p106 = scmp.ne.s32.totalorder %s98, %s100
      %p107 = scmp.eq.s32.totalorder %s27, 1
      %p108 = por %p106, %p107
      %p109 = scmp.ne.s32.totalorder %s100, %s101
      %p110 = scmp.eq.s32.totalorder %s27, 0
      %p111 = por %p109, %p110
      %p112 = scmp.ne.s32.totalorder %s100, %s101
      %p113 = scmp.eq.s32.totalorder %s28, 1
      %p114 = por %p112, %p113
      %p116 = scmp.ne.s32.totalorder %s101, %s115
      %p117 = scmp.eq.s32.totalorder %s28, 0
      %p118 = por %p116, %p117
      %s119 = ssub.s32 %s22, %s29
      %p120 = scmp.eq.s32.totalorder %s119, 0
      %s122 = sadd.s32 %s121, 1
      %s123 = scalar_select %p120, %s121, %s122
      %p126 = pneg %p120
      %p127 = scmp.eq.s32.totalorder %s22, 1
      %p128 = por %p126, %p127
      %p129 = scmp.ne.s32.totalorder %s121, %s124
      %p130 = scmp.eq.s32.totalorder %s22, 0
      %p131 = por %p129, %p130
      %p132 = scmp.ne.s32.totalorder %s121, %s124
      %p133 = scmp.eq.s32.totalorder %s27, 1
      %p134 = por %p132, %p133
      %p135 = scmp.ne.s32.totalorder %s124, %s125
      %p136 = scmp.eq.s32.totalorder %s27, 0
      %p137 = por %p135, %p136
      %p138 = scmp.ne.s32.totalorder %s124, %s125
      %p139 = scmp.eq.s32.totalorder %s28, 1
      %p140 = por %p138, %p139
      %p142 = scmp.ne.s32.totalorder %s125, %s141
      %p143 = scmp.eq.s32.totalorder %s28, 0
      %p144 = por %p142, %p143
      %s145 = ssub.s32 %s22, %s29
      %p146 = scmp.eq.s32.totalorder %s145, 0
      %s148 = sadd.s32 %s147, 1
      %s149 = scalar_select %p146, %s147, %s148
      %p152 = pneg %p146
      %p153 = scmp.eq.s32.totalorder %s22, 1
      %p154 = por %p152, %p153
      %p155 = scmp.ne.s32.totalorder %s147, %s150
      %p156 = scmp.eq.s32.totalorder %s22, 0
      %p157 = por %p155, %p156
      %p158 = scmp.ne.s32.totalorder %s147, %s150
      %p159 = scmp.eq.s32.totalorder %s27, 1
      %p160 = por %p158, %p159
      %p161 = scmp.ne.s32.totalorder %s150, %s151
      %p162 = scmp.eq.s32.totalorder %s27, 0
      %p163 = por %p161, %p162
      %p164 = scmp.ne.s32.totalorder %s150, %s151
      %p165 = scmp.eq.s32.totalorder %s28, 1
      %p166 = por %p164, %p165
      %p168 = scmp.ne.s32.totalorder %s151, %s167
      %p169 = scmp.eq.s32.totalorder %s28, 0
      %p170 = por %p168, %p169
      %p171 = scmp.le.s32.totalorder 1, %s22
      %p172 = scmp.lt.s32.totalorder %s22, 3
      %p173 = pnand %p171, %p172
      %p174 = pneg %p173
      // Predicated region
      $region9: #{tpu_custom_call.1} parent=5 // pred_check
        _
      $region10: #{tpu_custom_call.1} parent=5 // pred_check_branch
        %176 = sbr.rel (%p173) target = $region12
      $region11: #{tpu_custom_call.1} parent=5 // pred_region
        %s177 = ssub.s32 %s22, 1
        // Predicated region
        $region13: #{tpu_custom_call.1} parent=11 // pred_check
          %p178 = pneg %p69
        $region14: #{tpu_custom_call.1} parent=11 // pred_check_branch
          %180 = sbr.rel (%p178) target = $region16
        $region15: #{tpu_custom_call.1} parent=11 // pred_region
          %182 = vsyncadd [#allocation7], 0
          %s183 = sshll.u32 %s1, 4
          %s184 = int_to_ptr.hbm [resolvable:$true] %s183
          %s185 = sshll.u32 [#allocation6], 4
          %s186 = int_to_ptr.vmem [resolvable:$true] %s185
          %191 = dma.hbm_to_vmem [thread:$0]  %s184, 9216, %s186, [#allocation7], 64, 64, 4
        $region16: #{tpu_custom_call.1} parent=11 // pred_fallthru
          _
        // Predicated region
        $region17: #{tpu_custom_call.1} parent=11 // pred_check
          %p192 = pneg %p90
        $region18: #{tpu_custom_call.1} parent=11 // pred_check_branch
          %194 = sbr.rel (%p192) target = $region20
        $region19: #{tpu_custom_call.1} parent=11 // pred_region
          _
        $region20: #{tpu_custom_call.1} parent=11 // pred_fallthru
          _
        // Predicated region
        $region21: #{tpu_custom_call.1} parent=11 // pred_check
          %p195 = pneg %p111
        $region22: #{tpu_custom_call.1} parent=11 // pred_check_branch
          %197 = sbr.rel (%p195) target = $region24
        $region23: #{tpu_custom_call.1} parent=11 // pred_region
          _
        $region24: #{tpu_custom_call.1} parent=11 // pred_fallthru
          _
      $region12: #{tpu_custom_call.1} parent=5 // pred_fallthru
        _
      %p198 = scmp.lt.s32.totalorder %s22, 2
      // Predicated region
      $region25: #{tpu_custom_call.1} parent=5 // pred_check
        %p199 = pneg %p198
      $region26: #{tpu_custom_call.1} parent=5 // pred_check_branch
        %201 = sbr.rel (%p199) target = $region28
      $region27: #{tpu_custom_call.1} parent=5 // pred_region
        // Predicated region
        $region29: #{tpu_custom_call.1} parent=27 // pred_check
          %p202 = pneg %p42
        $region30: #{tpu_custom_call.1} parent=27 // pred_check_branch
          %204 = sbr.rel (%p202) target = $region32
        $region31: #{tpu_custom_call.1} parent=27 // pred_region
          %s205 = sand.u32 %s32, 1
          %s206 = scalar_lea.sflag [#allocation4], %s205
          %s207 = sand.u32 %s32, 1
          %s208 = smul.addr %s207, 288
          %s209 = scalar_lea.vmem [#allocation3], %s208
          %211 = vsyncadd %s206, 0
          %s212 = smul.addr %s22, 36
          %s213 = smul.addr %s212, 8
          %s214 = scalar_lea.hbm %s0, %s213
          %s215 = sshll.u32 %s214, 4
          %s216 = int_to_ptr.hbm [resolvable:$true] %s215
          %s217 = sshll.u32 %s209, 4
          %s218 = int_to_ptr.vmem [resolvable:$true] %s217
          %223 = dma.hbm_to_vmem [thread:$0]  %s216, 4608, %s218, %s206, 128, 128, 8
        $region32: #{tpu_custom_call.1} parent=27 // pred_fallthru
          _
      $region28: #{tpu_custom_call.1} parent=5 // pred_fallthru
        _
      %p224 = scmp.le.s32.totalorder 1, %s22
      %p225 = scmp.lt.s32.totalorder %s22, 3
      %p226 = pnand %p224, %p225
      %p227 = pneg %p226
      // Predicated region
      $region33: #{tpu_custom_call.1} parent=5 // pred_check
        _
      $region34: #{tpu_custom_call.1} parent=5 // pred_check_branch
        %229 = sbr.rel (%p226) target = $region36
      $region35: #{tpu_custom_call.1} parent=5 // pred_region
        %s230 = ssub.s32 %s22, 1
        %s231 = sand.u32 %s35, 1
        %s232 = scalar_lea.sflag [#allocation4], %s231
        %s233 = sand.u32 %s35, 1
        %s234 = smul.addr %s233, 288
        %s235 = scalar_lea.vmem [#allocation3], %s234
        // Predicated region
        $region37: #{tpu_custom_call.1} parent=35 // pred_check
          %p236 = pneg %p48
        $region38: #{tpu_custom_call.1} parent=35 // pred_check_branch
          %238 = sbr.rel (%p236) target = $region40
        $region39: #{tpu_custom_call.1} parent=35 // pred_region
          %240 = dma.done %s232, 4608
        $region40: #{tpu_custom_call.1} parent=35 // pred_fallthru
          _
        // Predicated region
        $region41: #{tpu_custom_call.1} parent=35 // pred_check
          %p241 = pneg %p69
        $region42: #{tpu_custom_call.1} parent=35 // pred_check_branch
          %243 = sbr.rel (%p241) target = $region44
        $region43: #{tpu_custom_call.1} parent=35 // pred_region
          %245 = dma.done [#allocation7], 9216
        $region44: #{tpu_custom_call.1} parent=35 // pred_fallthru
          _
        %s246 = sand.u32 %s35, 1
        %s247 = scalar_lea.sflag [#allocation4], %s246
        %s248 = sand.u32 %s35, 1
        %s249 = smul.addr %s248, 288
        %s250 = scalar_lea.vmem [#allocation3], %s249
        %p251 = pneg %p48
        %p252 = pneg %p45
        %p253 = pneg %p69
        %p254 = pneg %p66
        %p255 = pneg %p90
        %p256 = pneg %p87
        %p257 = pneg %p111
        %p258 = pneg %p108
        %p259 = pneg %p137
        %p260 = pneg %p134
        %s261 = sand.u32 %s124, 1
        %s262 = scalar_lea.sflag [#allocation5], %s261
        %s263 = sand.u32 %s124, 1
        %s264 = smul.addr %s263, 144
        %s265 = scalar_lea.vmem [#allocation8], %s264
        %p266 = pneg %p163
        %p267 = pneg %p160
        %s268 = sand.u32 %s150, 1
        %s269 = scalar_lea.sflag [#allocation10], %s268
        %s270 = sand.u32 %s150, 1
        %s271 = smul.addr %s270, 8
        %s272 = scalar_lea.vmem [#allocation9], %s271
        %v274 = vlaneseq
        %v275 = vshrl.u32 %v274, 7
        %v276 = vadd.s32 %v275, 8
        %v277 = vadd.s32 %v275, 16
        %v278 = vadd.s32 %v275, 24
        %v279 = vadd.s32 %v275, 32
        %v280 = vadd.s32 %v275, 40
        %v281 = vadd.s32 %v275, 48
        %v282 = vadd.s32 %v275, 56
        %v283 = vadd.s32 %v275, 64
        %v284 = vadd.s32 %v275, 72
        %v285 = vadd.s32 %v275, 80
        %v286 = vadd.s32 %v275, 88
        %v287 = vadd.s32 %v275, 96
        %v288 = vadd.s32 %v275, 104
        %v289 = vadd.s32 %v275, 112
        %v290 = vadd.s32 %v275, 120
        %v291 = vadd.s32 %v275, 128
        %v292 = vadd.s32 %v275, 136
        %v293 = vadd.s32 %v275, 144
        %v294 = vadd.s32 %v275, 152
        %v295 = vadd.s32 %v275, 160
        %v296 = vadd.s32 %v275, 168
        %v297 = vadd.s32 %v275, 176
        %v298 = vadd.s32 %v275, 184
        %v299 = vadd.s32 %v275, 192
        %v300 = vadd.s32 %v275, 200
        %v301 = vadd.s32 %v275, 208
        %v302 = vadd.s32 %v275, 216
        %v303 = vadd.s32 %v275, 224
        %v304 = vadd.s32 %v275, 232
        %v305 = vadd.s32 %v275, 240
        %v306 = vadd.s32 %v275, 248
        %v307 = vadd.s32 %v275, 256
        %v308 = vadd.s32 %v275, 264
        %v309 = vadd.s32 %v275, 272
        %v310 = vadd.s32 %v275, 280
        %vm311 = vcmp.lt.s32.totalorder %v275, 0
        %v312 = vsub.s32 0, %v275
        %v313 = vsel %vm311, %v312, %v275
        %v314 = vand.u32 %v313, 65535
        %v315 = vshrl.u32 %v313, 16
        %v317 = vmul.u32 %v314, 14564
        %v318 = vmul.u32 %v314, 58254
        %v319 = vmul.u32 %v315, 14564
        %v320 = vmul.u32 %v315, 58254
        %v321 = vshll.u32 %v318, 16
        %v322 = vshrl.u32 %v318, 16
        %v323 = vshll.u32 %v319, 16
        %v324 = vshrl.u32 %v319, 16
        %vm325 = vc.u32 %v317, %v321
        %v326 = vsel %vm325, 1, 0
        %v327 = vadd.s32 %v317, %v321
        %v328 = vadd.s32 %v320, %v326
        %vm329 = vc.u32 %v327, %v323
        %v330 = vsel %vm329, 1, 0
        %v331 = vadd.s32 %v327, %v323
        %v332 = vadd.s32 %v328, %v330
        %v333 = vadd.s32 %v332, %v322
        %v334 = vadd.s32 %v333, %v324
        %v335 = vshrl.u32 %v334, 4
        %v336 = vmul.u32 %v335, 18
        %v337 = vsub.s32 %v313, %v336
        %v338 = vsub.s32 0, %v337
        %v339 = vsel %vm311, %v338, %v337
        %vm340 = vcmp.lt.s32.totalorder %v276, 0
        %v341 = vsub.s32 0, %v276
        %v342 = vsel %vm340, %v341, %v276
        %v343 = vand.u32 %v342, 65535
        %v344 = vshrl.u32 %v342, 16
        %v346 = vmul.u32 %v343, 14564
        %v347 = vmul.u32 %v343, 58254
        %v348 = vmul.u32 %v344, 14564
        %v349 = vmul.u32 %v344, 58254
        %v350 = vshll.u32 %v347, 16
        %v351 = vshrl.u32 %v347, 16
        %v352 = vshll.u32 %v348, 16
        %v353 = vshrl.u32 %v348, 16
        %vm354 = vc.u32 %v346, %v350
        %v355 = vsel %vm354, 1, 0
        %v356 = vadd.s32 %v346, %v350
        %v357 = vadd.s32 %v349, %v355
        %vm358 = vc.u32 %v356, %v352
        %v359 = vsel %vm358, 1, 0
        %v360 = vadd.s32 %v356, %v352
        %v361 = vadd.s32 %v357, %v359
        %v362 = vadd.s32 %v361, %v351
        %v363 = vadd.s32 %v362, %v353
        %v364 = vshrl.u32 %v363, 4
        %v365 = vmul.u32 %v364, 18
        %v366 = vsub.s32 %v342, %v365
        %v367 = vsub.s32 0, %v366
        %v368 = vsel %vm340, %v367, %v366
        %vm369 = vcmp.lt.s32.totalorder %v277, 0
        %v370 = vsub.s32 0, %v277
        %v371 = vsel %vm369, %v370, %v277
        %v372 = vand.u32 %v371, 65535
        %v373 = vshrl.u32 %v371, 16
        %v375 = vmul.u32 %v372, 14564
        %v376 = vmul.u32 %v372, 58254
        %v377 = vmul.u32 %v373, 14564
        %v378 = vmul.u32 %v373, 58254
        %v379 = vshll.u32 %v376, 16
        %v380 = vshrl.u32 %v376, 16
        %v381 = vshll.u32 %v377, 16
        %v382 = vshrl.u32 %v377, 16
        %vm383 = vc.u32 %v375, %v379
        %v384 = vsel %vm383, 1, 0
        %v385 = vadd.s32 %v375, %v379
        %v386 = vadd.s32 %v378, %v384
        %vm387 = vc.u32 %v385, %v381
        %v388 = vsel %vm387, 1, 0
        %v389 = vadd.s32 %v385, %v381
        %v390 = vadd.s32 %v386, %v388
        %v391 = vadd.s32 %v390, %v380
        %v392 = vadd.s32 %v391, %v382
        %v393 = vshrl.u32 %v392, 4
        %v394 = vmul.u32 %v393, 18
        %v395 = vsub.s32 %v371, %v394
        %v396 = vsub.s32 0, %v395
        %v397 = vsel %vm369, %v396, %v395
        %vm398 = vcmp.lt.s32.totalorder %v278, 0
        %v399 = vsub.s32 0, %v278
        %v400 = vsel %vm398, %v399, %v278
        %v401 = vand.u32 %v400, 65535
        %v402 = vshrl.u32 %v400, 16
        %v404 = vmul.u32 %v401, 14564
        %v405 = vmul.u32 %v401, 58254
        %v406 = vmul.u32 %v402, 14564
        %v407 = vmul.u32 %v402, 58254
        %v408 = vshll.u32 %v405, 16
        %v409 = vshrl.u32 %v405, 16
        %v410 = vshll.u32 %v406, 16
        %v411 = vshrl.u32 %v406, 16
        %vm412 = vc.u32 %v404, %v408
        %v413 = vsel %vm412, 1, 0
        %v414 = vadd.s32 %v404, %v408
        %v415 = vadd.s32 %v407, %v413
        %vm416 = vc.u32 %v414, %v410
        %v417 = vsel %vm416, 1, 0
        %v418 = vadd.s32 %v414, %v410
        %v419 = vadd.s32 %v415, %v417
        %v420 = vadd.s32 %v419, %v409
        %v421 = vadd.s32 %v420, %v411
        %v422 = vshrl.u32 %v421, 4
        %v423 = vmul.u32 %v422, 18
        %v424 = vsub.s32 %v400, %v423
        %v425 = vsub.s32 0, %v424
        %v426 = vsel %vm398, %v425, %v424
        %vm427 = vcmp.lt.s32.totalorder %v279, 0
        %v428 = vsub.s32 0, %v279
        %v429 = vsel %vm427, %v428, %v279
        %v430 = vand.u32 %v429, 65535
        %v431 = vshrl.u32 %v429, 16
        %v433 = vmul.u32 %v430, 14564
        %v434 = vmul.u32 %v430, 58254
        %v435 = vmul.u32 %v431, 14564
        %v436 = vmul.u32 %v431, 58254
        %v437 = vshll.u32 %v434, 16
        %v438 = vshrl.u32 %v434, 16
        %v439 = vshll.u32 %v435, 16
        %v440 = vshrl.u32 %v435, 16
        %vm441 = vc.u32 %v433, %v437
        %v442 = vsel %vm441, 1, 0
        %v443 = vadd.s32 %v433, %v437
        %v444 = vadd.s32 %v436, %v442
        %vm445 = vc.u32 %v443, %v439
        %v446 = vsel %vm445, 1, 0
        %v447 = vadd.s32 %v443, %v439
        %v448 = vadd.s32 %v444, %v446
        %v449 = vadd.s32 %v448, %v438
        %v450 = vadd.s32 %v449, %v440
        %v451 = vshrl.u32 %v450, 4
        %v452 = vmul.u32 %v451, 18
        %v453 = vsub.s32 %v429, %v452
        %v454 = vsub.s32 0, %v453
        %v455 = vsel %vm427, %v454, %v453
        %vm456 = vcmp.lt.s32.totalorder %v280, 0
        %v457 = vsub.s32 0, %v280
        %v458 = vsel %vm456, %v457, %v280
        %v459 = vand.u32 %v458, 65535
        %v460 = vshrl.u32 %v458, 16
        %v462 = vmul.u32 %v459, 14564
        %v463 = vmul.u32 %v459, 58254
        %v464 = vmul.u32 %v460, 14564
        %v465 = vmul.u32 %v460, 58254
        %v466 = vshll.u32 %v463, 16
        %v467 = vshrl.u32 %v463, 16
        %v468 = vshll.u32 %v464, 16
        %v469 = vshrl.u32 %v464, 16
        %vm470 = vc.u32 %v462, %v466
        %v471 = vsel %vm470, 1, 0
        %v472 = vadd.s32 %v462, %v466
        %v473 = vadd.s32 %v465, %v471
        %vm474 = vc.u32 %v472, %v468
        %v475 = vsel %vm474, 1, 0
        %v476 = vadd.s32 %v472, %v468
        %v477 = vadd.s32 %v473, %v475
        %v478 = vadd.s32 %v477, %v467
        %v479 = vadd.s32 %v478, %v469
        %v480 = vshrl.u32 %v479, 4
        %v481 = vmul.u32 %v480, 18
        %v482 = vsub.s32 %v458, %v481
        %v483 = vsub.s32 0, %v482
        %v484 = vsel %vm456, %v483, %v482
        %vm485 = vcmp.lt.s32.totalorder %v281, 0
        %v486 = vsub.s32 0, %v281
        %v487 = vsel %vm485, %v486, %v281
        %v488 = vand.u32 %v487, 65535
        %v489 = vshrl.u32 %v487, 16
        %v491 = vmul.u32 %v488, 14564
        %v492 = vmul.u32 %v488, 58254
        %v493 = vmul.u32 %v489, 14564
        %v494 = vmul.u32 %v489, 58254
        %v495 = vshll.u32 %v492, 16
        %v496 = vshrl.u32 %v492, 16
        %v497 = vshll.u32 %v493, 16
        %v498 = vshrl.u32 %v493, 16
        %vm499 = vc.u32 %v491, %v495
        %v500 = vsel %vm499, 1, 0
        %v501 = vadd.s32 %v491, %v495
        %v502 = vadd.s32 %v494, %v500
        %vm503 = vc.u32 %v501, %v497
        %v504 = vsel %vm503, 1, 0
        %v505 = vadd.s32 %v501, %v497
        %v506 = vadd.s32 %v502, %v504
        %v507 = vadd.s32 %v506, %v496
        %v508 = vadd.s32 %v507, %v498
        %v509 = vshrl.u32 %v508, 4
        %v510 = vmul.u32 %v509, 18
        %v511 = vsub.s32 %v487, %v510
        %v512 = vsub.s32 0, %v511
        %v513 = vsel %vm485, %v512, %v511
        %vm514 = vcmp.lt.s32.totalorder %v282, 0
        %v515 = vsub.s32 0, %v282
        %v516 = vsel %vm514, %v515, %v282
        %v517 = vand.u32 %v516, 65535
        %v518 = vshrl.u32 %v516, 16
        %v520 = vmul.u32 %v517, 14564
        %v521 = vmul.u32 %v517, 58254
        %v522 = vmul.u32 %v518, 14564
        %v523 = vmul.u32 %v518, 58254
        %v524 = vshll.u32 %v521, 16
        %v525 = vshrl.u32 %v521, 16
        %v526 = vshll.u32 %v522, 16
        %v527 = vshrl.u32 %v522, 16
        %vm528 = vc.u32 %v520, %v524
        %v529 = vsel %vm528, 1, 0
        %v530 = vadd.s32 %v520, %v524
        %v531 = vadd.s32 %v523, %v529
        %vm532 = vc.u32 %v530, %v526
        %v533 = vsel %vm532, 1, 0
        %v534 = vadd.s32 %v530, %v526
        %v535 = vadd.s32 %v531, %v533
        %v536 = vadd.s32 %v535, %v525
        %v537 = vadd.s32 %v536, %v527
        %v538 = vshrl.u32 %v537, 4
        %v539 = vmul.u32 %v538, 18
        %v540 = vsub.s32 %v516, %v539
        %v541 = vsub.s32 0, %v540
        %v542 = vsel %vm514, %v541, %v540
        %vm543 = vcmp.lt.s32.totalorder %v283, 0
        %v544 = vsub.s32 0, %v283
        %v545 = vsel %vm543, %v544, %v283
        %v546 = vand.u32 %v545, 65535
        %v547 = vshrl.u32 %v545, 16
        %v549 = vmul.u32 %v546, 14564
        %v550 = vmul.u32 %v546, 58254
        %v551 = vmul.u32 %v547, 14564
        %v552 = vmul.u32 %v547, 58254
        %v553 = vshll.u32 %v550, 16
        %v554 = vshrl.u32 %v550, 16
        %v555 = vshll.u32 %v551, 16
        %v556 = vshrl.u32 %v551, 16
        %vm557 = vc.u32 %v549, %v553
        %v558 = vsel %vm557, 1, 0
        %v559 = vadd.s32 %v549, %v553
        %v560 = vadd.s32 %v552, %v558
        %vm561 = vc.u32 %v559, %v555
        %v562 = vsel %vm561, 1, 0
        %v563 = vadd.s32 %v559, %v555
        %v564 = vadd.s32 %v560, %v562
        %v565 = vadd.s32 %v564, %v554
        %v566 = vadd.s32 %v565, %v556
        %v567 = vshrl.u32 %v566, 4
        %v568 = vmul.u32 %v567, 18
        %v569 = vsub.s32 %v545, %v568
        %v570 = vsub.s32 0, %v569
        %v571 = vsel %vm543, %v570, %v569
        %vm572 = vcmp.lt.s32.totalorder %v284, 0
        %v573 = vsub.s32 0, %v284
        %v574 = vsel %vm572, %v573, %v284
        %v575 = vand.u32 %v574, 65535
        %v576 = vshrl.u32 %v574, 16
        %v578 = vmul.u32 %v575, 14564
        %v579 = vmul.u32 %v575, 58254
        %v580 = vmul.u32 %v576, 14564
        %v581 = vmul.u32 %v576, 58254
        %v582 = vshll.u32 %v579, 16
        %v583 = vshrl.u32 %v579, 16
        %v584 = vshll.u32 %v580, 16
        %v585 = vshrl.u32 %v580, 16
        %vm586 = vc.u32 %v578, %v582
        %v587 = vsel %vm586, 1, 0
        %v588 = vadd.s32 %v578, %v582
        %v589 = vadd.s32 %v581, %v587
        %vm590 = vc.u32 %v588, %v584
        %v591 = vsel %vm590, 1, 0
        %v592 = vadd.s32 %v588, %v584
        %v593 = vadd.s32 %v589, %v591
        %v594 = vadd.s32 %v593, %v583
        %v595 = vadd.s32 %v594, %v585
        %v596 = vshrl.u32 %v595, 4
        %v597 = vmul.u32 %v596, 18
        %v598 = vsub.s32 %v574, %v597
        %v599 = vsub.s32 0, %v598
        %v600 = vsel %vm572, %v599, %v598
        %vm601 = vcmp.lt.s32.totalorder %v285, 0
        %v602 = vsub.s32 0, %v285
        %v603 = vsel %vm601, %v602, %v285
        %v604 = vand.u32 %v603, 65535
        %v605 = vshrl.u32 %v603, 16
        %v607 = vmul.u32 %v604, 14564
        %v608 = vmul.u32 %v604, 58254
        %v609 = vmul.u32 %v605, 14564
        %v610 = vmul.u32 %v605, 58254
        %v611 = vshll.u32 %v608, 16
        %v612 = vshrl.u32 %v608, 16
        %v613 = vshll.u32 %v609, 16
        %v614 = vshrl.u32 %v609, 16
        %vm615 = vc.u32 %v607, %v611
        %v616 = vsel %vm615, 1, 0
        %v617 = vadd.s32 %v607, %v611
        %v618 = vadd.s32 %v610, %v616
        %vm619 = vc.u32 %v617, %v613
        %v620 = vsel %vm619, 1, 0
        %v621 = vadd.s32 %v617, %v613
        %v622 = vadd.s32 %v618, %v620
        %v623 = vadd.s32 %v622, %v612
        %v624 = vadd.s32 %v623, %v614
        %v625 = vshrl.u32 %v624, 4
        %v626 = vmul.u32 %v625, 18
        %v627 = vsub.s32 %v603, %v626
        %v628 = vsub.s32 0, %v627
        %v629 = vsel %vm601, %v628, %v627
        %vm630 = vcmp.lt.s32.totalorder %v286, 0
        %v631 = vsub.s32 0, %v286
        %v632 = vsel %vm630, %v631, %v286
        %v633 = vand.u32 %v632, 65535
        %v634 = vshrl.u32 %v632, 16
        %v636 = vmul.u32 %v633, 14564
        %v637 = vmul.u32 %v633, 58254
        %v638 = vmul.u32 %v634, 14564
        %v639 = vmul.u32 %v634, 58254
        %v640 = vshll.u32 %v637, 16
        %v641 = vshrl.u32 %v637, 16
        %v642 = vshll.u32 %v638, 16
        %v643 = vshrl.u32 %v638, 16
        %vm644 = vc.u32 %v636, %v640
        %v645 = vsel %vm644, 1, 0
        %v646 = vadd.s32 %v636, %v640
        %v647 = vadd.s32 %v639, %v645
        %vm648 = vc.u32 %v646, %v642
        %v649 = vsel %vm648, 1, 0
        %v650 = vadd.s32 %v646, %v642
        %v651 = vadd.s32 %v647, %v649
        %v652 = vadd.s32 %v651, %v641
        %v653 = vadd.s32 %v652, %v643
        %v654 = vshrl.u32 %v653, 4
        %v655 = vmul.u32 %v654, 18
        %v656 = vsub.s32 %v632, %v655
        %v657 = vsub.s32 0, %v656
        %v658 = vsel %vm630, %v657, %v656
        %vm659 = vcmp.lt.s32.totalorder %v287, 0
        %v660 = vsub.s32 0, %v287
        %v661 = vsel %vm659, %v660, %v287
        %v662 = vand.u32 %v661, 65535
        %v663 = vshrl.u32 %v661, 16
        %v665 = vmul.u32 %v662, 14564
        %v666 = vmul.u32 %v662, 58254
        %v667 = vmul.u32 %v663, 14564
        %v668 = vmul.u32 %v663, 58254
        %v669 = vshll.u32 %v666, 16
        %v670 = vshrl.u32 %v666, 16
        %v671 = vshll.u32 %v667, 16
        %v672 = vshrl.u32 %v667, 16
        %vm673 = vc.u32 %v665, %v669
        %v674 = vsel %vm673, 1, 0
        %v675 = vadd.s32 %v665, %v669
        %v676 = vadd.s32 %v668, %v674
        %vm677 = vc.u32 %v675, %v671
        %v678 = vsel %vm677, 1, 0
        %v679 = vadd.s32 %v675, %v671
        %v680 = vadd.s32 %v676, %v678
        %v681 = vadd.s32 %v680, %v670
        %v682 = vadd.s32 %v681, %v672
        %v683 = vshrl.u32 %v682, 4
        %v684 = vmul.u32 %v683, 18
        %v685 = vsub.s32 %v661, %v684
        %v686 = vsub.s32 0, %v685
        %v687 = vsel %vm659, %v686, %v685
        %vm688 = vcmp.lt.s32.totalorder %v288, 0
        %v689 = vsub.s32 0, %v288
        %v690 = vsel %vm688, %v689, %v288
        %v691 = vand.u32 %v690, 65535
        %v692 = vshrl.u32 %v690, 16
        %v694 = vmul.u32 %v691, 14564
        %v695 = vmul.u32 %v691, 58254
        %v696 = vmul.u32 %v692, 14564
        %v697 = vmul.u32 %v692, 58254
        %v698 = vshll.u32 %v695, 16
        %v699 = vshrl.u32 %v695, 16
        %v700 = vshll.u32 %v696, 16
        %v701 = vshrl.u32 %v696, 16
        %vm702 = vc.u32 %v694, %v698
        %v703 = vsel %vm702, 1, 0
        %v704 = vadd.s32 %v694, %v698
        %v705 = vadd.s32 %v697, %v703
        %vm706 = vc.u32 %v704, %v700
        %v707 = vsel %vm706, 1, 0
        %v708 = vadd.s32 %v704, %v700
        %v709 = vadd.s32 %v705, %v707
        %v710 = vadd.s32 %v709, %v699
        %v711 = vadd.s32 %v710, %v701
        %v712 = vshrl.u32 %v711, 4
        %v713 = vmul.u32 %v712, 18
        %v714 = vsub.s32 %v690, %v713
        %v715 = vsub.s32 0, %v714
        %v716 = vsel %vm688, %v715, %v714
        %vm717 = vcmp.lt.s32.totalorder %v289, 0
        %v718 = vsub.s32 0, %v289
        %v719 = vsel %vm717, %v718, %v289
        %v720 = vand.u32 %v719, 65535
        %v721 = vshrl.u32 %v719, 16
        %v723 = vmul.u32 %v720, 14564
        %v724 = vmul.u32 %v720, 58254
        %v725 = vmul.u32 %v721, 14564
        %v726 = vmul.u32 %v721, 58254
        %v727 = vshll.u32 %v724, 16
        %v728 = vshrl.u32 %v724, 16
        %v729 = vshll.u32 %v725, 16
        %v730 = vshrl.u32 %v725, 16
        %vm731 = vc.u32 %v723, %v727
        %v732 = vsel %vm731, 1, 0
        %v733 = vadd.s32 %v723, %v727
        %v734 = vadd.s32 %v726, %v732
        %vm735 = vc.u32 %v733, %v729
        %v736 = vsel %vm735, 1, 0
        %v737 = vadd.s32 %v733, %v729
        %v738 = vadd.s32 %v734, %v736
        %v739 = vadd.s32 %v738, %v728
        %v740 = vadd.s32 %v739, %v730
        %v741 = vshrl.u32 %v740, 4
        %v742 = vmul.u32 %v741, 18
        %v743 = vsub.s32 %v719, %v742
        %v744 = vsub.s32 0, %v743
        %v745 = vsel %vm717, %v744, %v743
        %vm746 = vcmp.lt.s32.totalorder %v290, 0
        %v747 = vsub.s32 0, %v290
        %v748 = vsel %vm746, %v747, %v290
        %v749 = vand.u32 %v748, 65535
        %v750 = vshrl.u32 %v748, 16
        %v752 = vmul.u32 %v749, 14564
        %v753 = vmul.u32 %v749, 58254
        %v754 = vmul.u32 %v750, 14564
        %v755 = vmul.u32 %v750, 58254
        %v756 = vshll.u32 %v753, 16
        %v757 = vshrl.u32 %v753, 16
        %v758 = vshll.u32 %v754, 16
        %v759 = vshrl.u32 %v754, 16
        %vm760 = vc.u32 %v752, %v756
        %v761 = vsel %vm760, 1, 0
        %v762 = vadd.s32 %v752, %v756
        %v763 = vadd.s32 %v755, %v761
        %vm764 = vc.u32 %v762, %v758
        %v765 = vsel %vm764, 1, 0
        %v766 = vadd.s32 %v762, %v758
        %v767 = vadd.s32 %v763, %v765
        %v768 = vadd.s32 %v767, %v757
        %v769 = vadd.s32 %v768, %v759
        %v770 = vshrl.u32 %v769, 4
        %v771 = vmul.u32 %v770, 18
        %v772 = vsub.s32 %v748, %v771
        %v773 = vsub.s32 0, %v772
        %v774 = vsel %vm746, %v773, %v772
        %vm775 = vcmp.lt.s32.totalorder %v291, 0
        %v776 = vsub.s32 0, %v291
        %v777 = vsel %vm775, %v776, %v291
        %v778 = vand.u32 %v777, 65535
        %v779 = vshrl.u32 %v777, 16
        %v781 = vmul.u32 %v778, 14564
        %v782 = vmul.u32 %v778, 58254
        %v783 = vmul.u32 %v779, 14564
        %v784 = vmul.u32 %v779, 58254
        %v785 = vshll.u32 %v782, 16
        %v786 = vshrl.u32 %v782, 16
        %v787 = vshll.u32 %v783, 16
        %v788 = vshrl.u32 %v783, 16
        %vm789 = vc.u32 %v781, %v785
        %v790 = vsel %vm789, 1, 0
        %v791 = vadd.s32 %v781, %v785
        %v792 = vadd.s32 %v784, %v790
        %vm793 = vc.u32 %v791, %v787
        %v794 = vsel %vm793, 1, 0
        %v795 = vadd.s32 %v791, %v787
        %v796 = vadd.s32 %v792, %v794
        %v797 = vadd.s32 %v796, %v786
        %v798 = vadd.s32 %v797, %v788
        %v799 = vshrl.u32 %v798, 4
        %v800 = vmul.u32 %v799, 18
        %v801 = vsub.s32 %v777, %v800
        %v802 = vsub.s32 0, %v801
        %v803 = vsel %vm775, %v802, %v801
        %vm804 = vcmp.lt.s32.totalorder %v292, 0
        %v805 = vsub.s32 0, %v292
        %v806 = vsel %vm804, %v805, %v292
        %v807 = vand.u32 %v806, 65535
        %v808 = vshrl.u32 %v806, 16
        %v810 = vmul.u32 %v807, 14564
        %v811 = vmul.u32 %v807, 58254
        %v812 = vmul.u32 %v808, 14564
        %v813 = vmul.u32 %v808, 58254
        %v814 = vshll.u32 %v811, 16
        %v815 = vshrl.u32 %v811, 16
        %v816 = vshll.u32 %v812, 16
        %v817 = vshrl.u32 %v812, 16
        %vm818 = vc.u32 %v810, %v814
        %v819 = vsel %vm818, 1, 0
        %v820 = vadd.s32 %v810, %v814
        %v821 = vadd.s32 %v813, %v819
        %vm822 = vc.u32 %v820, %v816
        %v823 = vsel %vm822, 1, 0
        %v824 = vadd.s32 %v820, %v816
        %v825 = vadd.s32 %v821, %v823
        %v826 = vadd.s32 %v825, %v815
        %v827 = vadd.s32 %v826, %v817
        %v828 = vshrl.u32 %v827, 4
        %v829 = vmul.u32 %v828, 18
        %v830 = vsub.s32 %v806, %v829
        %v831 = vsub.s32 0, %v830
        %v832 = vsel %vm804, %v831, %v830
        %vm833 = vcmp.lt.s32.totalorder %v293, 0
        %v834 = vsub.s32 0, %v293
        %v835 = vsel %vm833, %v834, %v293
        %v836 = vand.u32 %v835, 65535
        %v837 = vshrl.u32 %v835, 16
        %v839 = vmul.u32 %v836, 14564
        %v840 = vmul.u32 %v836, 58254
        %v841 = vmul.u32 %v837, 14564
        %v842 = vmul.u32 %v837, 58254
        %v843 = vshll.u32 %v840, 16
        %v844 = vshrl.u32 %v840, 16
        %v845 = vshll.u32 %v841, 16
        %v846 = vshrl.u32 %v841, 16
        %vm847 = vc.u32 %v839, %v843
        %v848 = vsel %vm847, 1, 0
        %v849 = vadd.s32 %v839, %v843
        %v850 = vadd.s32 %v842, %v848
        %vm851 = vc.u32 %v849, %v845
        %v852 = vsel %vm851, 1, 0
        %v853 = vadd.s32 %v849, %v845
        %v854 = vadd.s32 %v850, %v852
        %v855 = vadd.s32 %v854, %v844
        %v856 = vadd.s32 %v855, %v846
        %v857 = vshrl.u32 %v856, 4
        %v858 = vmul.u32 %v857, 18
        %v859 = vsub.s32 %v835, %v858
        %v860 = vsub.s32 0, %v859
        %v861 = vsel %vm833, %v860, %v859
        %vm862 = vcmp.lt.s32.totalorder %v294, 0
        %v863 = vsub.s32 0, %v294
        %v864 = vsel %vm862, %v863, %v294
        %v865 = vand.u32 %v864, 65535
        %v866 = vshrl.u32 %v864, 16
        %v868 = vmul.u32 %v865, 14564
        %v869 = vmul.u32 %v865, 58254
        %v870 = vmul.u32 %v866, 14564
        %v871 = vmul.u32 %v866, 58254
        %v872 = vshll.u32 %v869, 16
        %v873 = vshrl.u32 %v869, 16
        %v874 = vshll.u32 %v870, 16
        %v875 = vshrl.u32 %v870, 16
        %vm876 = vc.u32 %v868, %v872
        %v877 = vsel %vm876, 1, 0
        %v878 = vadd.s32 %v868, %v872
        %v879 = vadd.s32 %v871, %v877
        %vm880 = vc.u32 %v878, %v874
        %v881 = vsel %vm880, 1, 0
        %v882 = vadd.s32 %v878, %v874
        %v883 = vadd.s32 %v879, %v881
        %v884 = vadd.s32 %v883, %v873
        %v885 = vadd.s32 %v884, %v875
        %v886 = vshrl.u32 %v885, 4
        %v887 = vmul.u32 %v886, 18
        %v888 = vsub.s32 %v864, %v887
        %v889 = vsub.s32 0, %v888
        %v890 = vsel %vm862, %v889, %v888
        %vm891 = vcmp.lt.s32.totalorder %v295, 0
        %v892 = vsub.s32 0, %v295
        %v893 = vsel %vm891, %v892, %v295
        %v894 = vand.u32 %v893, 65535
        %v895 = vshrl.u32 %v893, 16
        %v897 = vmul.u32 %v894, 14564
        %v898 = vmul.u32 %v894, 58254
        %v899 = vmul.u32 %v895, 14564
        %v900 = vmul.u32 %v895, 58254
        %v901 = vshll.u32 %v898, 16
        %v902 = vshrl.u32 %v898, 16
        %v903 = vshll.u32 %v899, 16
        %v904 = vshrl.u32 %v899, 16
        %vm905 = vc.u32 %v897, %v901
        %v906 = vsel %vm905, 1, 0
        %v907 = vadd.s32 %v897, %v901
        %v908 = vadd.s32 %v900, %v906
        %vm909 = vc.u32 %v907, %v903
        %v910 = vsel %vm909, 1, 0
        %v911 = vadd.s32 %v907, %v903
        %v912 = vadd.s32 %v908, %v910
        %v913 = vadd.s32 %v912, %v902
        %v914 = vadd.s32 %v913, %v904
        %v915 = vshrl.u32 %v914, 4
        %v916 = vmul.u32 %v915, 18
        %v917 = vsub.s32 %v893, %v916
        %v918 = vsub.s32 0, %v917
        %v919 = vsel %vm891, %v918, %v917
        %vm920 = vcmp.lt.s32.totalorder %v296, 0
        %v921 = vsub.s32 0, %v296
        %v922 = vsel %vm920, %v921, %v296
        %v923 = vand.u32 %v922, 65535
        %v924 = vshrl.u32 %v922, 16
        %v926 = vmul.u32 %v923, 14564
        %v927 = vmul.u32 %v923, 58254
        %v928 = vmul.u32 %v924, 14564
        %v929 = vmul.u32 %v924, 58254
        %v930 = vshll.u32 %v927, 16
        %v931 = vshrl.u32 %v927, 16
        %v932 = vshll.u32 %v928, 16
        %v933 = vshrl.u32 %v928, 16
        %vm934 = vc.u32 %v926, %v930
        %v935 = vsel %vm934, 1, 0
        %v936 = vadd.s32 %v926, %v930
        %v937 = vadd.s32 %v929, %v935
        %vm938 = vc.u32 %v936, %v932
        %v939 = vsel %vm938, 1, 0
        %v940 = vadd.s32 %v936, %v932
        %v941 = vadd.s32 %v937, %v939
        %v942 = vadd.s32 %v941, %v931
        %v943 = vadd.s32 %v942, %v933
        %v944 = vshrl.u32 %v943, 4
        %v945 = vmul.u32 %v944, 18
        %v946 = vsub.s32 %v922, %v945
        %v947 = vsub.s32 0, %v946
        %v948 = vsel %vm920, %v947, %v946
        %vm949 = vcmp.lt.s32.totalorder %v297, 0
        %v950 = vsub.s32 0, %v297
        %v951 = vsel %vm949, %v950, %v297
        %v952 = vand.u32 %v951, 65535
        %v953 = vshrl.u32 %v951, 16
        %v955 = vmul.u32 %v952, 14564
        %v956 = vmul.u32 %v952, 58254
        %v957 = vmul.u32 %v953, 14564
        %v958 = vmul.u32 %v953, 58254
        %v959 = vshll.u32 %v956, 16
        %v960 = vshrl.u32 %v956, 16
        %v961 = vshll.u32 %v957, 16
        %v962 = vshrl.u32 %v957, 16
        %vm963 = vc.u32 %v955, %v959
        %v964 = vsel %vm963, 1, 0
        %v965 = vadd.s32 %v955, %v959
        %v966 = vadd.s32 %v958, %v964
        %vm967 = vc.u32 %v965, %v961
        %v968 = vsel %vm967, 1, 0
        %v969 = vadd.s32 %v965, %v961
        %v970 = vadd.s32 %v966, %v968
        %v971 = vadd.s32 %v970, %v960
        %v972 = vadd.s32 %v971, %v962
        %v973 = vshrl.u32 %v972, 4
        %v974 = vmul.u32 %v973, 18
        %v975 = vsub.s32 %v951, %v974
        %v976 = vsub.s32 0, %v975
        %v977 = vsel %vm949, %v976, %v975
        %vm978 = vcmp.lt.s32.totalorder %v298, 0
        %v979 = vsub.s32 0, %v298
        %v980 = vsel %vm978, %v979, %v298
        %v981 = vand.u32 %v980, 65535
        %v982 = vshrl.u32 %v980, 16
        %v984 = vmul.u32 %v981, 14564
        %v985 = vmul.u32 %v981, 58254
        %v986 = vmul.u32 %v982, 14564
        %v987 = vmul.u32 %v982, 58254
        %v988 = vshll.u32 %v985, 16
        %v989 = vshrl.u32 %v985, 16
        %v990 = vshll.u32 %v986, 16
        %v991 = vshrl.u32 %v986, 16
        %vm992 = vc.u32 %v984, %v988
        %v993 = vsel %vm992, 1, 0
        %v994 = vadd.s32 %v984, %v988
        %v995 = vadd.s32 %v987, %v993
        %vm996 = vc.u32 %v994, %v990
        %v997 = vsel %vm996, 1, 0
        %v998 = vadd.s32 %v994, %v990
        %v999 = vadd.s32 %v995, %v997
        %v1000 = vadd.s32 %v999, %v989
        %v1001 = vadd.s32 %v1000, %v991
        %v1002 = vshrl.u32 %v1001, 4
        %v1003 = vmul.u32 %v1002, 18
        %v1004 = vsub.s32 %v980, %v1003
        %v1005 = vsub.s32 0, %v1004
        %v1006 = vsel %vm978, %v1005, %v1004
        %vm1007 = vcmp.lt.s32.totalorder %v299, 0
        %v1008 = vsub.s32 0, %v299
        %v1009 = vsel %vm1007, %v1008, %v299
        %v1010 = vand.u32 %v1009, 65535
        %v1011 = vshrl.u32 %v1009, 16
        %v1013 = vmul.u32 %v1010, 14564
        %v1014 = vmul.u32 %v1010, 58254
        %v1015 = vmul.u32 %v1011, 14564
        %v1016 = vmul.u32 %v1011, 58254
        %v1017 = vshll.u32 %v1014, 16
        %v1018 = vshrl.u32 %v1014, 16
        %v1019 = vshll.u32 %v1015, 16
        %v1020 = vshrl.u32 %v1015, 16
        %vm1021 = vc.u32 %v1013, %v1017
        %v1022 = vsel %vm1021, 1, 0
        %v1023 = vadd.s32 %v1013, %v1017
        %v1024 = vadd.s32 %v1016, %v1022
        %vm1025 = vc.u32 %v1023, %v1019
        %v1026 = vsel %vm1025, 1, 0
        %v1027 = vadd.s32 %v1023, %v1019
        %v1028 = vadd.s32 %v1024, %v1026
        %v1029 = vadd.s32 %v1028, %v1018
        %v1030 = vadd.s32 %v1029, %v1020
        %v1031 = vshrl.u32 %v1030, 4
        %v1032 = vmul.u32 %v1031, 18
        %v1033 = vsub.s32 %v1009, %v1032
        %v1034 = vsub.s32 0, %v1033
        %v1035 = vsel %vm1007, %v1034, %v1033
        %vm1036 = vcmp.lt.s32.totalorder %v300, 0
        %v1037 = vsub.s32 0, %v300
        %v1038 = vsel %vm1036, %v1037, %v300
        %v1039 = vand.u32 %v1038, 65535
        %v1040 = vshrl.u32 %v1038, 16
        %v1042 = vmul.u32 %v1039, 14564
        %v1043 = vmul.u32 %v1039, 58254
        %v1044 = vmul.u32 %v1040, 14564
        %v1045 = vmul.u32 %v1040, 58254
        %v1046 = vshll.u32 %v1043, 16
        %v1047 = vshrl.u32 %v1043, 16
        %v1048 = vshll.u32 %v1044, 16
        %v1049 = vshrl.u32 %v1044, 16
        %vm1050 = vc.u32 %v1042, %v1046
        %v1051 = vsel %vm1050, 1, 0
        %v1052 = vadd.s32 %v1042, %v1046
        %v1053 = vadd.s32 %v1045, %v1051
        %vm1054 = vc.u32 %v1052, %v1048
        %v1055 = vsel %vm1054, 1, 0
        %v1056 = vadd.s32 %v1052, %v1048
        %v1057 = vadd.s32 %v1053, %v1055
        %v1058 = vadd.s32 %v1057, %v1047
        %v1059 = vadd.s32 %v1058, %v1049
        %v1060 = vshrl.u32 %v1059, 4
        %v1061 = vmul.u32 %v1060, 18
        %v1062 = vsub.s32 %v1038, %v1061
        %v1063 = vsub.s32 0, %v1062
        %v1064 = vsel %vm1036, %v1063, %v1062
        %vm1065 = vcmp.lt.s32.totalorder %v301, 0
        %v1066 = vsub.s32 0, %v301
        %v1067 = vsel %vm1065, %v1066, %v301
        %v1068 = vand.u32 %v1067, 65535
        %v1069 = vshrl.u32 %v1067, 16
        %v1071 = vmul.u32 %v1068, 14564
        %v1072 = vmul.u32 %v1068, 58254
        %v1073 = vmul.u32 %v1069, 14564
        %v1074 = vmul.u32 %v1069, 58254
        %v1075 = vshll.u32 %v1072, 16
        %v1076 = vshrl.u32 %v1072, 16
        %v1077 = vshll.u32 %v1073, 16
        %v1078 = vshrl.u32 %v1073, 16
        %vm1079 = vc.u32 %v1071, %v1075
        %v1080 = vsel %vm1079, 1, 0
        %v1081 = vadd.s32 %v1071, %v1075
        %v1082 = vadd.s32 %v1074, %v1080
        %vm1083 = vc.u32 %v1081, %v1077
        %v1084 = vsel %vm1083, 1, 0
        %v1085 = vadd.s32 %v1081, %v1077
        %v1086 = vadd.s32 %v1082, %v1084
        %v1087 = vadd.s32 %v1086, %v1076
        %v1088 = vadd.s32 %v1087, %v1078
        %v1089 = vshrl.u32 %v1088, 4
        %v1090 = vmul.u32 %v1089, 18
        %v1091 = vsub.s32 %v1067, %v1090
        %v1092 = vsub.s32 0, %v1091
        %v1093 = vsel %vm1065, %v1092, %v1091
        %vm1094 = vcmp.lt.s32.totalorder %v302, 0
        %v1095 = vsub.s32 0, %v302
        %v1096 = vsel %vm1094, %v1095, %v302
        %v1097 = vand.u32 %v1096, 65535
        %v1098 = vshrl.u32 %v1096, 16
        %v1100 = vmul.u32 %v1097, 14564
        %v1101 = vmul.u32 %v1097, 58254
        %v1102 = vmul.u32 %v1098, 14564
        %v1103 = vmul.u32 %v1098, 58254
        %v1104 = vshll.u32 %v1101, 16
        %v1105 = vshrl.u32 %v1101, 16
        %v1106 = vshll.u32 %v1102, 16
        %v1107 = vshrl.u32 %v1102, 16
        %vm1108 = vc.u32 %v1100, %v1104
        %v1109 = vsel %vm1108, 1, 0
        %v1110 = vadd.s32 %v1100, %v1104
        %v1111 = vadd.s32 %v1103, %v1109
        %vm1112 = vc.u32 %v1110, %v1106
        %v1113 = vsel %vm1112, 1, 0
        %v1114 = vadd.s32 %v1110, %v1106
        %v1115 = vadd.s32 %v1111, %v1113
        %v1116 = vadd.s32 %v1115, %v1105
        %v1117 = vadd.s32 %v1116, %v1107
        %v1118 = vshrl.u32 %v1117, 4
        %v1119 = vmul.u32 %v1118, 18
        %v1120 = vsub.s32 %v1096, %v1119
        %v1121 = vsub.s32 0, %v1120
        %v1122 = vsel %vm1094, %v1121, %v1120
        %vm1123 = vcmp.lt.s32.totalorder %v303, 0
        %v1124 = vsub.s32 0, %v303
        %v1125 = vsel %vm1123, %v1124, %v303
        %v1126 = vand.u32 %v1125, 65535
        %v1127 = vshrl.u32 %v1125, 16
        %v1129 = vmul.u32 %v1126, 14564
        %v1130 = vmul.u32 %v1126, 58254
        %v1131 = vmul.u32 %v1127, 14564
        %v1132 = vmul.u32 %v1127, 58254
        %v1133 = vshll.u32 %v1130, 16
        %v1134 = vshrl.u32 %v1130, 16
        %v1135 = vshll.u32 %v1131, 16
        %v1136 = vshrl.u32 %v1131, 16
        %vm1137 = vc.u32 %v1129, %v1133
        %v1138 = vsel %vm1137, 1, 0
        %v1139 = vadd.s32 %v1129, %v1133
        %v1140 = vadd.s32 %v1132, %v1138
        %vm1141 = vc.u32 %v1139, %v1135
        %v1142 = vsel %vm1141, 1, 0
        %v1143 = vadd.s32 %v1139, %v1135
        %v1144 = vadd.s32 %v1140, %v1142
        %v1145 = vadd.s32 %v1144, %v1134
        %v1146 = vadd.s32 %v1145, %v1136
        %v1147 = vshrl.u32 %v1146, 4
        %v1148 = vmul.u32 %v1147, 18
        %v1149 = vsub.s32 %v1125, %v1148
        %v1150 = vsub.s32 0, %v1149
        %v1151 = vsel %vm1123, %v1150, %v1149
        %vm1152 = vcmp.lt.s32.totalorder %v304, 0
        %v1153 = vsub.s32 0, %v304
        %v1154 = vsel %vm1152, %v1153, %v304
        %v1155 = vand.u32 %v1154, 65535
        %v1156 = vshrl.u32 %v1154, 16
        %v1158 = vmul.u32 %v1155, 14564
        %v1159 = vmul.u32 %v1155, 58254
        %v1160 = vmul.u32 %v1156, 14564
        %v1161 = vmul.u32 %v1156, 58254
        %v1162 = vshll.u32 %v1159, 16
        %v1163 = vshrl.u32 %v1159, 16
        %v1164 = vshll.u32 %v1160, 16
        %v1165 = vshrl.u32 %v1160, 16
        %vm1166 = vc.u32 %v1158, %v1162
        %v1167 = vsel %vm1166, 1, 0
        %v1168 = vadd.s32 %v1158, %v1162
        %v1169 = vadd.s32 %v1161, %v1167
        %vm1170 = vc.u32 %v1168, %v1164
        %v1171 = vsel %vm1170, 1, 0
        %v1172 = vadd.s32 %v1168, %v1164
        %v1173 = vadd.s32 %v1169, %v1171
        %v1174 = vadd.s32 %v1173, %v1163
        %v1175 = vadd.s32 %v1174, %v1165
        %v1176 = vshrl.u32 %v1175, 4
        %v1177 = vmul.u32 %v1176, 18
        %v1178 = vsub.s32 %v1154, %v1177
        %v1179 = vsub.s32 0, %v1178
        %v1180 = vsel %vm1152, %v1179, %v1178
        %vm1181 = vcmp.lt.s32.totalorder %v305, 0
        %v1182 = vsub.s32 0, %v305
        %v1183 = vsel %vm1181, %v1182, %v305
        %v1184 = vand.u32 %v1183, 65535
        %v1185 = vshrl.u32 %v1183, 16
        %v1187 = vmul.u32 %v1184, 14564
        %v1188 = vmul.u32 %v1184, 58254
        %v1189 = vmul.u32 %v1185, 14564
        %v1190 = vmul.u32 %v1185, 58254
        %v1191 = vshll.u32 %v1188, 16
        %v1192 = vshrl.u32 %v1188, 16
        %v1193 = vshll.u32 %v1189, 16
        %v1194 = vshrl.u32 %v1189, 16
        %vm1195 = vc.u32 %v1187, %v1191
        %v1196 = vsel %vm1195, 1, 0
        %v1197 = vadd.s32 %v1187, %v1191
        %v1198 = vadd.s32 %v1190, %v1196
        %vm1199 = vc.u32 %v1197, %v1193
        %v1200 = vsel %vm1199, 1, 0
        %v1201 = vadd.s32 %v1197, %v1193
        %v1202 = vadd.s32 %v1198, %v1200
        %v1203 = vadd.s32 %v1202, %v1192
        %v1204 = vadd.s32 %v1203, %v1194
        %v1205 = vshrl.u32 %v1204, 4
        %v1206 = vmul.u32 %v1205, 18
        %v1207 = vsub.s32 %v1183, %v1206
        %v1208 = vsub.s32 0, %v1207
        %v1209 = vsel %vm1181, %v1208, %v1207
        %vm1210 = vcmp.lt.s32.totalorder %v306, 0
        %v1211 = vsub.s32 0, %v306
        %v1212 = vsel %vm1210, %v1211, %v306
        %v1213 = vand.u32 %v1212, 65535
        %v1214 = vshrl.u32 %v1212, 16
        %v1216 = vmul.u32 %v1213, 14564
        %v1217 = vmul.u32 %v1213, 58254
        %v1218 = vmul.u32 %v1214, 14564
        %v1219 = vmul.u32 %v1214, 58254
        %v1220 = vshll.u32 %v1217, 16
        %v1221 = vshrl.u32 %v1217, 16
        %v1222 = vshll.u32 %v1218, 16
        %v1223 = vshrl.u32 %v1218, 16
        %vm1224 = vc.u32 %v1216, %v1220
        %v1225 = vsel %vm1224, 1, 0
        %v1226 = vadd.s32 %v1216, %v1220
        %v1227 = vadd.s32 %v1219, %v1225
        %vm1228 = vc.u32 %v1226, %v1222
        %v1229 = vsel %vm1228, 1, 0
        %v1230 = vadd.s32 %v1226, %v1222
        %v1231 = vadd.s32 %v1227, %v1229
        %v1232 = vadd.s32 %v1231, %v1221
        %v1233 = vadd.s32 %v1232, %v1223
        %v1234 = vshrl.u32 %v1233, 4
        %v1235 = vmul.u32 %v1234, 18
        %v1236 = vsub.s32 %v1212, %v1235
        %v1237 = vsub.s32 0, %v1236
        %v1238 = vsel %vm1210, %v1237, %v1236
        %vm1239 = vcmp.lt.s32.totalorder %v307, 0
        %v1240 = vsub.s32 0, %v307
        %v1241 = vsel %vm1239, %v1240, %v307
        %v1242 = vand.u32 %v1241, 65535
        %v1243 = vshrl.u32 %v1241, 16
        %v1245 = vmul.u32 %v1242, 14564
        %v1246 = vmul.u32 %v1242, 58254
        %v1247 = vmul.u32 %v1243, 14564
        %v1248 = vmul.u32 %v1243, 58254
        %v1249 = vshll.u32 %v1246, 16
        %v1250 = vshrl.u32 %v1246, 16
        %v1251 = vshll.u32 %v1247, 16
        %v1252 = vshrl.u32 %v1247, 16
        %vm1253 = vc.u32 %v1245, %v1249
        %v1254 = vsel %vm1253, 1, 0
        %v1255 = vadd.s32 %v1245, %v1249
        %v1256 = vadd.s32 %v1248, %v1254
        %vm1257 = vc.u32 %v1255, %v1251
        %v1258 = vsel %vm1257, 1, 0
        %v1259 = vadd.s32 %v1255, %v1251
        %v1260 = vadd.s32 %v1256, %v1258
        %v1261 = vadd.s32 %v1260, %v1250
        %v1262 = vadd.s32 %v1261, %v1252
        %v1263 = vshrl.u32 %v1262, 4
        %v1264 = vmul.u32 %v1263, 18
        %v1265 = vsub.s32 %v1241, %v1264
        %v1266 = vsub.s32 0, %v1265
        %v1267 = vsel %vm1239, %v1266, %v1265
        %vm1268 = vcmp.lt.s32.totalorder %v308, 0
        %v1269 = vsub.s32 0, %v308
        %v1270 = vsel %vm1268, %v1269, %v308
        %v1271 = vand.u32 %v1270, 65535
        %v1272 = vshrl.u32 %v1270, 16
        %v1274 = vmul.u32 %v1271, 14564
        %v1275 = vmul.u32 %v1271, 58254
        %v1276 = vmul.u32 %v1272, 14564
        %v1277 = vmul.u32 %v1272, 58254
        %v1278 = vshll.u32 %v1275, 16
        %v1279 = vshrl.u32 %v1275, 16
        %v1280 = vshll.u32 %v1276, 16
        %v1281 = vshrl.u32 %v1276, 16
        %vm1282 = vc.u32 %v1274, %v1278
        %v1283 = vsel %vm1282, 1, 0
        %v1284 = vadd.s32 %v1274, %v1278
        %v1285 = vadd.s32 %v1277, %v1283
        %vm1286 = vc.u32 %v1284, %v1280
        %v1287 = vsel %vm1286, 1, 0
        %v1288 = vadd.s32 %v1284, %v1280
        %v1289 = vadd.s32 %v1285, %v1287
        %v1290 = vadd.s32 %v1289, %v1279
        %v1291 = vadd.s32 %v1290, %v1281
        %v1292 = vshrl.u32 %v1291, 4
        %v1293 = vmul.u32 %v1292, 18
        %v1294 = vsub.s32 %v1270, %v1293
        %v1295 = vsub.s32 0, %v1294
        %v1296 = vsel %vm1268, %v1295, %v1294
        %vm1297 = vcmp.lt.s32.totalorder %v309, 0
        %v1298 = vsub.s32 0, %v309
        %v1299 = vsel %vm1297, %v1298, %v309
        %v1300 = vand.u32 %v1299, 65535
        %v1301 = vshrl.u32 %v1299, 16
        %v1303 = vmul.u32 %v1300, 14564
        %v1304 = vmul.u32 %v1300, 58254
        %v1305 = vmul.u32 %v1301, 14564
        %v1306 = vmul.u32 %v1301, 58254
        %v1307 = vshll.u32 %v1304, 16
        %v1308 = vshrl.u32 %v1304, 16
        %v1309 = vshll.u32 %v1305, 16
        %v1310 = vshrl.u32 %v1305, 16
        %vm1311 = vc.u32 %v1303, %v1307
        %v1312 = vsel %vm1311, 1, 0
        %v1313 = vadd.s32 %v1303, %v1307
        %v1314 = vadd.s32 %v1306, %v1312
        %vm1315 = vc.u32 %v1313, %v1309
        %v1316 = vsel %vm1315, 1, 0
        %v1317 = vadd.s32 %v1313, %v1309
        %v1318 = vadd.s32 %v1314, %v1316
        %v1319 = vadd.s32 %v1318, %v1308
        %v1320 = vadd.s32 %v1319, %v1310
        %v1321 = vshrl.u32 %v1320, 4
        %v1322 = vmul.u32 %v1321, 18
        %v1323 = vsub.s32 %v1299, %v1322
        %v1324 = vsub.s32 0, %v1323
        %v1325 = vsel %vm1297, %v1324, %v1323
        %vm1326 = vcmp.lt.s32.totalorder %v310, 0
        %v1327 = vsub.s32 0, %v310
        %v1328 = vsel %vm1326, %v1327, %v310
        %v1329 = vand.u32 %v1328, 65535
        %v1330 = vshrl.u32 %v1328, 16
        %v1332 = vmul.u32 %v1329, 14564
        %v1333 = vmul.u32 %v1329, 58254
        %v1334 = vmul.u32 %v1330, 14564
        %v1335 = vmul.u32 %v1330, 58254
        %v1336 = vshll.u32 %v1333, 16
        %v1337 = vshrl.u32 %v1333, 16
        %v1338 = vshll.u32 %v1334, 16
        %v1339 = vshrl.u32 %v1334, 16
        %vm1340 = vc.u32 %v1332, %v1336
        %v1341 = vsel %vm1340, 1, 0
        %v1342 = vadd.s32 %v1332, %v1336
        %v1343 = vadd.s32 %v1335, %v1341
        %vm1344 = vc.u32 %v1342, %v1338
        %v1345 = vsel %vm1344, 1, 0
        %v1346 = vadd.s32 %v1342, %v1338
        %v1347 = vadd.s32 %v1343, %v1345
        %v1348 = vadd.s32 %v1347, %v1337
        %v1349 = vadd.s32 %v1348, %v1339
        %v1350 = vshrl.u32 %v1349, 4
        %v1351 = vmul.u32 %v1350, 18
        %v1352 = vsub.s32 %v1328, %v1351
        %v1353 = vsub.s32 0, %v1352
        %v1354 = vsel %vm1326, %v1353, %v1352
        %vm1355 = vcmp.ne.s32.totalorder %v339, 0
        %vm1356 = vcmp.ne.s32.totalorder %v368, 0
        %vm1357 = vcmp.ne.s32.totalorder %v397, 0
        %vm1358 = vcmp.ne.s32.totalorder %v426, 0
        %vm1359 = vcmp.ne.s32.totalorder %v455, 0
        %vm1360 = vcmp.ne.s32.totalorder %v484, 0
        %vm1361 = vcmp.ne.s32.totalorder %v513, 0
        %vm1362 = vcmp.ne.s32.totalorder %v542, 0
        %vm1363 = vcmp.ne.s32.totalorder %v571, 0
        %vm1364 = vcmp.ne.s32.totalorder %v600, 0
        %vm1365 = vcmp.ne.s32.totalorder %v629, 0
        %vm1366 = vcmp.ne.s32.totalorder %v658, 0
        %vm1367 = vcmp.ne.s32.totalorder %v687, 0
        %vm1368 = vcmp.ne.s32.totalorder %v716, 0
        %vm1369 = vcmp.ne.s32.totalorder %v745, 0
        %vm1370 = vcmp.ne.s32.totalorder %v774, 0
        %vm1371 = vcmp.ne.s32.totalorder %v803, 0
        %vm1372 = vcmp.ne.s32.totalorder %v832, 0
        %vm1373 = vcmp.ne.s32.totalorder %v861, 0
        %vm1374 = vcmp.ne.s32.totalorder %v890, 0
        %vm1375 = vcmp.ne.s32.totalorder %v919, 0
        %vm1376 = vcmp.ne.s32.totalorder %v948, 0
        %vm1377 = vcmp.ne.s32.totalorder %v977, 0
        %vm1378 = vcmp.ne.s32.totalorder %v1006, 0
        %vm1379 = vcmp.ne.s32.totalorder %v1035, 0
        %vm1380 = vcmp.ne.s32.totalorder %v1064, 0
        %vm1381 = vcmp.ne.s32.totalorder %v1093, 0
        %vm1382 = vcmp.ne.s32.totalorder %v1122, 0
        %vm1383 = vcmp.ne.s32.totalorder %v1151, 0
        %vm1384 = vcmp.ne.s32.totalorder %v1180, 0
        %vm1385 = vcmp.ne.s32.totalorder %v1209, 0
        %vm1386 = vcmp.ne.s32.totalorder %v1238, 0
        %vm1387 = vcmp.ne.s32.totalorder %v1267, 0
        %vm1388 = vcmp.ne.s32.totalorder %v1296, 0
        %vm1389 = vcmp.ne.s32.totalorder %v1325, 0
        %vm1390 = vcmp.ne.s32.totalorder %v1354, 0
        %vm1391 = vcmp.lt.s32.totalorder %v339, 0
        %vm1392 = vcmp.lt.s32.totalorder %v368, 0
        %vm1393 = vcmp.lt.s32.totalorder %v397, 0
        %vm1394 = vcmp.lt.s32.totalorder %v426, 0
        %vm1395 = vcmp.lt.s32.totalorder %v455, 0
        %vm1396 = vcmp.lt.s32.totalorder %v484, 0
        %vm1397 = vcmp.lt.s32.totalorder %v513, 0
        %vm1398 = vcmp.lt.s32.totalorder %v542, 0
        %vm1399 = vcmp.lt.s32.totalorder %v571, 0
        %vm1400 = vcmp.lt.s32.totalorder %v600, 0
        %vm1401 = vcmp.lt.s32.totalorder %v629, 0
        %vm1402 = vcmp.lt.s32.totalorder %v658, 0
        %vm1403 = vcmp.lt.s32.totalorder %v687, 0
        %vm1404 = vcmp.lt.s32.totalorder %v716, 0
        %vm1405 = vcmp.lt.s32.totalorder %v745, 0
        %vm1406 = vcmp.lt.s32.totalorder %v774, 0
        %vm1407 = vcmp.lt.s32.totalorder %v803, 0
        %vm1408 = vcmp.lt.s32.totalorder %v832, 0
        %vm1409 = vcmp.lt.s32.totalorder %v861, 0
        %vm1410 = vcmp.lt.s32.totalorder %v890, 0
        %vm1411 = vcmp.lt.s32.totalorder %v919, 0
        %vm1412 = vcmp.lt.s32.totalorder %v948, 0
        %vm1413 = vcmp.lt.s32.totalorder %v977, 0
        %vm1414 = vcmp.lt.s32.totalorder %v1006, 0
        %vm1415 = vcmp.lt.s32.totalorder %v1035, 0
        %vm1416 = vcmp.lt.s32.totalorder %v1064, 0
        %vm1417 = vcmp.lt.s32.totalorder %v1093, 0
        %vm1418 = vcmp.lt.s32.totalorder %v1122, 0
        %vm1419 = vcmp.lt.s32.totalorder %v1151, 0
        %vm1420 = vcmp.lt.s32.totalorder %v1180, 0
        %vm1421 = vcmp.lt.s32.totalorder %v1209, 0
        %vm1422 = vcmp.lt.s32.totalorder %v1238, 0
        %vm1423 = vcmp.lt.s32.totalorder %v1267, 0
        %vm1424 = vcmp.lt.s32.totalorder %v1296, 0
        %vm1425 = vcmp.lt.s32.totalorder %v1325, 0
        %vm1426 = vcmp.lt.s32.totalorder %v1354, 0
        %vm1427 = vmand %vm1391, %vm1355
        %vm1428 = vmand %vm1392, %vm1356
        %vm1429 = vmand %vm1393, %vm1357
        %vm1430 = vmand %vm1394, %vm1358
        %vm1431 = vmand %vm1395, %vm1359
        %vm1432 = vmand %vm1396, %vm1360
        %vm1433 = vmand %vm1397, %vm1361
        %vm1434 = vmand %vm1398, %vm1362
        %vm1435 = vmand %vm1399, %vm1363
        %vm1436 = vmand %vm1400, %vm1364
        %vm1437 = vmand %vm1401, %vm1365
        %vm1438 = vmand %vm1402, %vm1366
        %vm1439 = vmand %vm1403, %vm1367
        %vm1440 = vmand %vm1404, %vm1368
        %vm1441 = vmand %vm1405, %vm1369
        %vm1442 = vmand %vm1406, %vm1370
        %vm1443 = vmand %vm1407, %vm1371
        %vm1444 = vmand %vm1408, %vm1372
        %vm1445 = vmand %vm1409, %vm1373
        %vm1446 = vmand %vm1410, %vm1374
        %vm1447 = vmand %vm1411, %vm1375
        %vm1448 = vmand %vm1412, %vm1376
        %vm1449 = vmand %vm1413, %vm1377
        %vm1450 = vmand %vm1414, %vm1378
        %vm1451 = vmand %vm1415, %vm1379
        %vm1452 = vmand %vm1416, %vm1380
        %vm1453 = vmand %vm1417, %vm1381
        %vm1454 = vmand %vm1418, %vm1382
        %vm1455 = vmand %vm1419, %vm1383
        %vm1456 = vmand %vm1420, %vm1384
        %vm1457 = vmand %vm1421, %vm1385
        %vm1458 = vmand %vm1422, %vm1386
        %vm1459 = vmand %vm1423, %vm1387
        %vm1460 = vmand %vm1424, %vm1388
        %vm1461 = vmand %vm1425, %vm1389
        %vm1462 = vmand %vm1426, %vm1390
        %v1463 = vadd.s32 %v339, 18
        %v1464 = vadd.s32 %v368, 18
        %v1465 = vadd.s32 %v397, 18
        %v1466 = vadd.s32 %v426, 18
        %v1467 = vadd.s32 %v455, 18
        %v1468 = vadd.s32 %v484, 18
        %v1469 = vadd.s32 %v513, 18
        %v1470 = vadd.s32 %v542, 18
        %v1471 = vadd.s32 %v571, 18
        %v1472 = vadd.s32 %v600, 18
        %v1473 = vadd.s32 %v629, 18
        %v1474 = vadd.s32 %v658, 18
        %v1475 = vadd.s32 %v687, 18
        %v1476 = vadd.s32 %v716, 18
        %v1477 = vadd.s32 %v745, 18
        %v1478 = vadd.s32 %v774, 18
        %v1479 = vadd.s32 %v803, 18
        %v1480 = vadd.s32 %v832, 18
        %v1481 = vadd.s32 %v861, 18
        %v1482 = vadd.s32 %v890, 18
        %v1483 = vadd.s32 %v919, 18
        %v1484 = vadd.s32 %v948, 18
        %v1485 = vadd.s32 %v977, 18
        %v1486 = vadd.s32 %v1006, 18
        %v1487 = vadd.s32 %v1035, 18
        %v1488 = vadd.s32 %v1064, 18
        %v1489 = vadd.s32 %v1093, 18
        %v1490 = vadd.s32 %v1122, 18
        %v1491 = vadd.s32 %v1151, 18
        %v1492 = vadd.s32 %v1180, 18
        %v1493 = vadd.s32 %v1209, 18
        %v1494 = vadd.s32 %v1238, 18
        %v1495 = vadd.s32 %v1267, 18
        %v1496 = vadd.s32 %v1296, 18
        %v1497 = vadd.s32 %v1325, 18
        %v1498 = vadd.s32 %v1354, 18
        %v1499 = vsel %vm1427, %v1463, %v339
        %v1500 = vsel %vm1428, %v1464, %v368
        %v1501 = vsel %vm1429, %v1465, %v397
        %v1502 = vsel %vm1430, %v1466, %v426
        %v1503 = vsel %vm1431, %v1467, %v455
        %v1504 = vsel %vm1432, %v1468, %v484
        %v1505 = vsel %vm1433, %v1469, %v513
        %v1506 = vsel %vm1434, %v1470, %v542
        %v1507 = vsel %vm1435, %v1471, %v571
        %v1508 = vsel %vm1436, %v1472, %v600
        %v1509 = vsel %vm1437, %v1473, %v629
        %v1510 = vsel %vm1438, %v1474, %v658
        %v1511 = vsel %vm1439, %v1475, %v687
        %v1512 = vsel %vm1440, %v1476, %v716
        %v1513 = vsel %vm1441, %v1477, %v745
        %v1514 = vsel %vm1442, %v1478, %v774
        %v1515 = vsel %vm1443, %v1479, %v803
        %v1516 = vsel %vm1444, %v1480, %v832
        %v1517 = vsel %vm1445, %v1481, %v861
        %v1518 = vsel %vm1446, %v1482, %v890
        %v1519 = vsel %vm1447, %v1483, %v919
        %v1520 = vsel %vm1448, %v1484, %v948
        %v1521 = vsel %vm1449, %v1485, %v977
        %v1522 = vsel %vm1450, %v1486, %v1006
        %v1523 = vsel %vm1451, %v1487, %v1035
        %v1524 = vsel %vm1452, %v1488, %v1064
        %v1525 = vsel %vm1453, %v1489, %v1093
        %v1526 = vsel %vm1454, %v1490, %v1122
        %v1527 = vsel %vm1455, %v1491, %v1151
        %v1528 = vsel %vm1456, %v1492, %v1180
        %v1529 = vsel %vm1457, %v1493, %v1209
        %v1530 = vsel %vm1458, %v1494, %v1238
        %v1531 = vsel %vm1459, %v1495, %v1267
        %v1532 = vsel %vm1460, %v1496, %v1296
        %v1533 = vsel %vm1461, %v1497, %v1325
        %v1534 = vsel %vm1462, %v1498, %v1354
        %vm1535 = vcmp.lt.s32.totalorder %v1499, 16
        %vm1536 = vcmp.lt.s32.totalorder %v1500, 16
        %vm1537 = vcmp.lt.s32.totalorder %v1501, 16
        %vm1538 = vcmp.lt.s32.totalorder %v1502, 16
        %vm1539 = vcmp.lt.s32.totalorder %v1503, 16
        %vm1540 = vcmp.lt.s32.totalorder %v1504, 16
        %vm1541 = vcmp.lt.s32.totalorder %v1505, 16
        %vm1542 = vcmp.lt.s32.totalorder %v1506, 16
        %vm1543 = vcmp.lt.s32.totalorder %v1507, 16
        %vm1544 = vcmp.lt.s32.totalorder %v1508, 16
        %vm1545 = vcmp.lt.s32.totalorder %v1509, 16
        %vm1546 = vcmp.lt.s32.totalorder %v1510, 16
        %vm1547 = vcmp.lt.s32.totalorder %v1511, 16
        %vm1548 = vcmp.lt.s32.totalorder %v1512, 16
        %vm1549 = vcmp.lt.s32.totalorder %v1513, 16
        %vm1550 = vcmp.lt.s32.totalorder %v1514, 16
        %vm1551 = vcmp.lt.s32.totalorder %v1515, 16
        %vm1552 = vcmp.lt.s32.totalorder %v1516, 16
        %vm1553 = vcmp.lt.s32.totalorder %v1517, 16
        %vm1554 = vcmp.lt.s32.totalorder %v1518, 16
        %vm1555 = vcmp.lt.s32.totalorder %v1519, 16
        %vm1556 = vcmp.lt.s32.totalorder %v1520, 16
        %vm1557 = vcmp.lt.s32.totalorder %v1521, 16
        %vm1558 = vcmp.lt.s32.totalorder %v1522, 16
        %vm1559 = vcmp.lt.s32.totalorder %v1523, 16
        %vm1560 = vcmp.lt.s32.totalorder %v1524, 16
        %vm1561 = vcmp.lt.s32.totalorder %v1525, 16
        %vm1562 = vcmp.lt.s32.totalorder %v1526, 16
        %vm1563 = vcmp.lt.s32.totalorder %v1527, 16
        %vm1564 = vcmp.lt.s32.totalorder %v1528, 16
        %vm1565 = vcmp.lt.s32.totalorder %v1529, 16
        %vm1566 = vcmp.lt.s32.totalorder %v1530, 16
        %vm1567 = vcmp.lt.s32.totalorder %v1531, 16
        %vm1568 = vcmp.lt.s32.totalorder %v1532, 16
        %vm1569 = vcmp.lt.s32.totalorder %v1533, 16
        %vm1570 = vcmp.lt.s32.totalorder %v1534, 16
        %v1571 = vsel %vm1535, 1, 0
        %v1572 = vsel %vm1536, 1, 0
        %v1573 = vsel %vm1537, 1, 0
        %v1574 = vsel %vm1538, 1, 0
        %v1575 = vsel %vm1539, 1, 0
        %v1576 = vsel %vm1540, 1, 0
        %v1577 = vsel %vm1541, 1, 0
        %v1578 = vsel %vm1542, 1, 0
        %v1579 = vsel %vm1543, 1, 0
        %v1580 = vsel %vm1544, 1, 0
        %v1581 = vsel %vm1545, 1, 0
        %v1582 = vsel %vm1546, 1, 0
        %v1583 = vsel %vm1547, 1, 0
        %v1584 = vsel %vm1548, 1, 0
        %v1585 = vsel %vm1549, 1, 0
        %v1586 = vsel %vm1550, 1, 0
        %v1587 = vsel %vm1551, 1, 0
        %v1588 = vsel %vm1552, 1, 0
        %v1589 = vsel %vm1553, 1, 0
        %v1590 = vsel %vm1554, 1, 0
        %v1591 = vsel %vm1555, 1, 0
        %v1592 = vsel %vm1556, 1, 0
        %v1593 = vsel %vm1557, 1, 0
        %v1594 = vsel %vm1558, 1, 0
        %v1595 = vsel %vm1559, 1, 0
        %v1596 = vsel %vm1560, 1, 0
        %v1597 = vsel %vm1561, 1, 0
        %v1598 = vsel %vm1562, 1, 0
        %v1599 = vsel %vm1563, 1, 0
        %v1600 = vsel %vm1564, 1, 0
        %v1601 = vsel %vm1565, 1, 0
        %v1602 = vsel %vm1566, 1, 0
        %v1603 = vsel %vm1567, 1, 0
        %v1604 = vsel %vm1568, 1, 0
        %v1605 = vsel %vm1569, 1, 0
        %v1606 = vsel %vm1570, 1, 0
        %v1607 = vcvt.s32.f32 %v1571
        %v1608 = vcvt.s32.f32 %v1572
        %v1609 = vcvt.s32.f32 %v1573
        %v1610 = vcvt.s32.f32 %v1574
        %v1611 = vcvt.s32.f32 %v1575
        %v1612 = vcvt.s32.f32 %v1576
        %v1613 = vcvt.s32.f32 %v1577
        %v1614 = vcvt.s32.f32 %v1578
        %v1615 = vcvt.s32.f32 %v1579
        %v1616 = vcvt.s32.f32 %v1580
        %v1617 = vcvt.s32.f32 %v1581
        %v1618 = vcvt.s32.f32 %v1582
        %v1619 = vcvt.s32.f32 %v1583
        %v1620 = vcvt.s32.f32 %v1584
        %v1621 = vcvt.s32.f32 %v1585
        %v1622 = vcvt.s32.f32 %v1586
        %v1623 = vcvt.s32.f32 %v1587
        %v1624 = vcvt.s32.f32 %v1588
        %v1625 = vcvt.s32.f32 %v1589
        %v1626 = vcvt.s32.f32 %v1590
        %v1627 = vcvt.s32.f32 %v1591
        %v1628 = vcvt.s32.f32 %v1592
        %v1629 = vcvt.s32.f32 %v1593
        %v1630 = vcvt.s32.f32 %v1594
        %v1631 = vcvt.s32.f32 %v1595
        %v1632 = vcvt.s32.f32 %v1596
        %v1633 = vcvt.s32.f32 %v1597
        %v1634 = vcvt.s32.f32 %v1598
        %v1635 = vcvt.s32.f32 %v1599
        %v1636 = vcvt.s32.f32 %v1600
        %v1637 = vcvt.s32.f32 %v1601
        %v1638 = vcvt.s32.f32 %v1602
        %v1639 = vcvt.s32.f32 %v1603
        %v1640 = vcvt.s32.f32 %v1604
        %v1641 = vcvt.s32.f32 %v1605
        %v1642 = vcvt.s32.f32 %v1606
        %v1643 = vld [vmem:[%s235] sm:$0xff]
        %v1644 = vld [vmem:[%s235 + $0x8] sm:$0xff]
        %v1645 = vld [vmem:[%s235 + $0x10] sm:$0xff]
        %v1646 = vld [vmem:[%s235 + $0x18] sm:$0xff]
        %v1647 = vld [vmem:[%s235 + $0x20] sm:$0xff]
        %v1648 = vld [vmem:[%s235 + $0x28] sm:$0xff]
        %v1649 = vld [vmem:[%s235 + $0x30] sm:$0xff]
        %v1650 = vld [vmem:[%s235 + $0x38] sm:$0xff]
        %v1651 = vld [vmem:[%s235 + $0x40] sm:$0xff]
        %v1652 = vld [vmem:[%s235 + $0x48] sm:$0xff]
        %v1653 = vld [vmem:[%s235 + $0x50] sm:$0xff]
        %v1654 = vld [vmem:[%s235 + $0x58] sm:$0xff]
        %v1655 = vld [vmem:[%s235 + $0x60] sm:$0xff]
        %v1656 = vld [vmem:[%s235 + $0x68] sm:$0xff]
        %v1657 = vld [vmem:[%s235 + $0x70] sm:$0xff]
        %v1658 = vld [vmem:[%s235 + $0x78] sm:$0xff]
        %v1659 = vld [vmem:[%s235 + $0x80] sm:$0xff]
        %v1660 = vld [vmem:[%s235 + $0x88] sm:$0xff]
        %v1661 = vld [vmem:[%s235 + $0x90] sm:$0xff]
        %v1662 = vld [vmem:[%s235 + $0x98] sm:$0xff]
        %v1663 = vld [vmem:[%s235 + $0xa0] sm:$0xff]
        %v1664 = vld [vmem:[%s235 + $0xa8] sm:$0xff]
        %v1665 = vld [vmem:[%s235 + $0xb0] sm:$0xff]
        %v1666 = vld [vmem:[%s235 + $0xb8] sm:$0xff]
        %v1667 = vld [vmem:[%s235 + $0xc0] sm:$0xff]
        %v1668 = vld [vmem:[%s235 + $0xc8] sm:$0xff]
        %v1669 = vld [vmem:[%s235 + $0xd0] sm:$0xff]
        %v1670 = vld [vmem:[%s235 + $0xd8] sm:$0xff]
        %v1671 = vld [vmem:[%s235 + $0xe0] sm:$0xff]
        %v1672 = vld [vmem:[%s235 + $0xe8] sm:$0xff]
        %v1673 = vld [vmem:[%s235 + $0xf0] sm:$0xff]
        %v1674 = vld [vmem:[%s235 + $0xf8] sm:$0xff]
        %v1675 = vld [vmem:[%s235 + $0x100] sm:$0xff]
        %v1676 = vld [vmem:[%s235 + $0x108] sm:$0xff]
        %v1677 = vld [vmem:[%s235 + $0x110] sm:$0xff]
        %v1678 = vld [vmem:[%s235 + $0x118] sm:$0xff]
        %v1679 = vmul.f32 %v1643, %v1607
        %v1680 = vmul.f32 %v1644, %v1608
        %v1681 = vmul.f32 %v1645, %v1609
        %v1682 = vmul.f32 %v1646, %v1610
        %v1683 = vmul.f32 %v1647, %v1611
        %v1684 = vmul.f32 %v1648, %v1612
        %v1685 = vmul.f32 %v1649, %v1613
        %v1686 = vmul.f32 %v1650, %v1614
        %v1687 = vmul.f32 %v1651, %v1615
        %v1688 = vmul.f32 %v1652, %v1616
        %v1689 = vmul.f32 %v1653, %v1617
        %v1690 = vmul.f32 %v1654, %v1618
        %v1691 = vmul.f32 %v1655, %v1619
        %v1692 = vmul.f32 %v1656, %v1620
        %v1693 = vmul.f32 %v1657, %v1621
        %v1694 = vmul.f32 %v1658, %v1622
        %v1695 = vmul.f32 %v1659, %v1623
        %v1696 = vmul.f32 %v1660, %v1624
        %v1697 = vmul.f32 %v1661, %v1625
        %v1698 = vmul.f32 %v1662, %v1626
        %v1699 = vmul.f32 %v1663, %v1627
        %v1700 = vmul.f32 %v1664, %v1628
        %v1701 = vmul.f32 %v1665, %v1629
        %v1702 = vmul.f32 %v1666, %v1630
        %v1703 = vmul.f32 %v1667, %v1631
        %v1704 = vmul.f32 %v1668, %v1632
        %v1705 = vmul.f32 %v1669, %v1633
        %v1706 = vmul.f32 %v1670, %v1634
        %v1707 = vmul.f32 %v1671, %v1635
        %v1708 = vmul.f32 %v1672, %v1636
        %v1709 = vmul.f32 %v1673, %v1637
        %v1710 = vmul.f32 %v1674, %v1638
        %v1711 = vmul.f32 %v1675, %v1639
        %v1712 = vmul.f32 %v1676, %v1640
        %v1713 = vmul.f32 %v1677, %v1641
        %v1714 = vmul.f32 %v1678, %v1642
        %1715 = vst [vmem:[#allocation2] sm:$0xf] 0
        %1716 = vst [vmem:[#allocation2 + $0x4] sm:$0xf] 0
        %1717 = vst [vmem:[#allocation2 + $0x8] sm:$0xf] 0
        %1718 = vst [vmem:[#allocation2 + $0xc] sm:$0xf] 0
        %1719 = vst [vmem:[#allocation2 + $0x10] sm:$0xf] 0
        %1720 = vst [vmem:[#allocation2 + $0x14] sm:$0xf] 0
        %1721 = vst [vmem:[#allocation2 + $0x18] sm:$0xf] 0
        %1722 = vst [vmem:[#allocation2 + $0x1c] sm:$0xf] 0
        %1723 = vst [vmem:[#allocation2 + $0x20] sm:$0xf] 0
        %1724 = vst [vmem:[#allocation2 + $0x24] sm:$0xf] 0
        %1725 = vst [vmem:[#allocation2 + $0x28] sm:$0xf] 0
        %1726 = vst [vmem:[#allocation2 + $0x2c] sm:$0xf] 0
        %1727 = vst [vmem:[#allocation2 + $0x30] sm:$0xf] 0
        %1728 = vst [vmem:[#allocation2 + $0x34] sm:$0xf] 0
        %1729 = vst [vmem:[#allocation2 + $0x38] sm:$0xf] 0
        %1730 = vst [vmem:[#allocation2 + $0x3c] sm:$0xf] 0
        %1731 = vst [vmem:[#allocation2 + $0x40] sm:$0xf] 0
        %1732 = vst [vmem:[#allocation2 + $0x44] sm:$0xf] 0
        %1733 = vst [vmem:[#allocation2 + $0x48] sm:$0xf] 0
        %1734 = vst [vmem:[#allocation2 + $0x4c] sm:$0xf] 0
        %1735 = vst [vmem:[#allocation2 + $0x50] sm:$0xf] 0
        %1736 = vst [vmem:[#allocation2 + $0x54] sm:$0xf] 0
        %1737 = vst [vmem:[#allocation2 + $0x58] sm:$0xf] 0
        %1738 = vst [vmem:[#allocation2 + $0x5c] sm:$0xf] 0
        %1739 = vst [vmem:[#allocation2 + $0x60] sm:$0xf] 0
        %1740 = vst [vmem:[#allocation2 + $0x64] sm:$0xf] 0
        %1741 = vst [vmem:[#allocation2 + $0x68] sm:$0xf] 0
        %1742 = vst [vmem:[#allocation2 + $0x6c] sm:$0xf] 0
        %1743 = vst [vmem:[#allocation2 + $0x70] sm:$0xf] 0
        %1744 = vst [vmem:[#allocation2 + $0x74] sm:$0xf] 0
        %1745 = vst [vmem:[#allocation2 + $0x78] sm:$0xf] 0
        %1746 = vst [vmem:[#allocation2 + $0x7c] sm:$0xf] 0
        %1747 = vst [vmem:[#allocation2 + $0x80] sm:$0xf] 0
        %1748 = vst [vmem:[#allocation2 + $0x84] sm:$0xf] 0
        %1749 = vst [vmem:[#allocation2 + $0x88] sm:$0xf] 0
        %1750 = vst [vmem:[#allocation2 + $0x8c] sm:$0xf] 0
        %1751 = vst [vmem:[#allocation2 + $0x90] sm:$0xf] 0
        %1752 = vst [vmem:[#allocation2 + $0x94] sm:$0xf] 0
        %1753 = vst [vmem:[#allocation2 + $0x98] sm:$0xf] 0
        %1754 = vst [vmem:[#allocation2 + $0x9c] sm:$0xf] 0
        %1755 = vst [vmem:[#allocation2 + $0xa0] sm:$0xf] 0
        %1756 = vst [vmem:[#allocation2 + $0xa4] sm:$0xf] 0
        %1757 = vst [vmem:[#allocation2 + $0xa8] sm:$0x7] 0
        %v1758 = vpack.c.bf16 %v1679, %v1679
        %v1759 = vpack.c.bf16 %v1680, %v1680
        %v1760 = vpack.c.bf16 %v1681, %v1681
        %v1761 = vpack.c.bf16 %v1682, %v1682
        %v1762 = vpack.c.bf16 %v1683, %v1683
        %v1763 = vpack.c.bf16 %v1684, %v1684
        %v1764 = vpack.c.bf16 %v1685, %v1685
        %v1765 = vpack.c.bf16 %v1686, %v1686
        %v1766 = vpack.c.bf16 %v1687, %v1687
        %v1767 = vpack.c.bf16 %v1688, %v1688
        %v1768 = vpack.c.bf16 %v1689, %v1689
        %v1769 = vpack.c.bf16 %v1690, %v1690
        %v1770 = vpack.c.bf16 %v1691, %v1691
        %v1771 = vpack.c.bf16 %v1692, %v1692
        %v1772 = vpack.c.bf16 %v1693, %v1693
        %v1773 = vpack.c.bf16 %v1694, %v1694
        %v1774 = vpack.c.bf16 %v1695, %v1695
        %v1775 = vpack.c.bf16 %v1696, %v1696
        %v1776 = vpack.c.bf16 %v1697, %v1697
        %v1777 = vpack.c.bf16 %v1698, %v1698
        %v1778 = vpack.c.bf16 %v1699, %v1699
        %v1779 = vpack.c.bf16 %v1700, %v1700
        %v1780 = vpack.c.bf16 %v1701, %v1701
        %v1781 = vpack.c.bf16 %v1702, %v1702
        %v1782 = vpack.c.bf16 %v1703, %v1703
        %v1783 = vpack.c.bf16 %v1704, %v1704
        %v1784 = vpack.c.bf16 %v1705, %v1705
        %v1785 = vpack.c.bf16 %v1706, %v1706
        %v1786 = vpack.c.bf16 %v1707, %v1707
        %v1787 = vpack.c.bf16 %v1708, %v1708
        %v1788 = vpack.c.bf16 %v1709, %v1709
        %v1789 = vpack.c.bf16 %v1710, %v1710
        %v1790 = vpack.c.bf16 %v1711, %v1711
        %v1791 = vpack.c.bf16 %v1712, %v1712
        %v1792 = vpack.c.bf16 %v1713, %v1713
        %v1793 = vpack.c.bf16 %v1714, %v1714
        %vm1794 = vsmask.f32 1280
        %vm1795 = vsmask.f32 5392
        %vm1796 = vmor %vm1794, %vm1795
        %v1798 = vshrl.u32 %v1758, 16
        %v1800 = vrot.slane %v1798, 6
        %v1801 = vshll.u32 %v1758, 16
        %v1803 = vrot.slane %v1801, 7
        %v1804 = vor.u32 %v1800, %v1803
        %v1805 = vrot.slane %v1804, 4
        %v1807 = vshrl.u32 %v1759, 16
        %v1809 = vrot.slane %v1807, 6
        %v1810 = vshll.u32 %v1759, 16
        %v1812 = vrot.slane %v1810, 7
        %v1813 = vor.u32 %v1809, %v1812
        %v1814 = vsel %vm1796, %v1805, %v1813
        %v1815 = vrot.slane %v1813, 4
        %v1817 = vshrl.u32 %v1760, 16
        %v1819 = vrot.slane %v1817, 6
        %v1820 = vshll.u32 %v1760, 16
        %v1822 = vrot.slane %v1820, 7
        %v1823 = vor.u32 %v1819, %v1822
        %v1824 = vsel %vm1796, %v1815, %v1823
        %v1825 = vrot.slane %v1823, 4
        %v1827 = vshrl.u32 %v1761, 16
        %v1829 = vrot.slane %v1827, 6
        %v1830 = vshll.u32 %v1761, 16
        %v1832 = vrot.slane %v1830, 7
        %v1833 = vor.u32 %v1829, %v1832
        %v1834 = vsel %vm1796, %v1825, %v1833
        %v1835 = vrot.slane %v1833, 4
        %v1837 = vshrl.u32 %v1762, 16
        %v1839 = vrot.slane %v1837, 6
        %v1840 = vshll.u32 %v1762, 16
        %v1842 = vrot.slane %v1840, 7
        %v1843 = vor.u32 %v1839, %v1842
        %v1844 = vsel %vm1796, %v1835, %v1843
        %v1845 = vrot.slane %v1843, 4
        %v1847 = vshrl.u32 %v1763, 16
        %v1849 = vrot.slane %v1847, 6
        %v1850 = vshll.u32 %v1763, 16
        %v1852 = vrot.slane %v1850, 7
        %v1853 = vor.u32 %v1849, %v1852
        %v1854 = vsel %vm1796, %v1845, %v1853
        %v1855 = vrot.slane %v1853, 4
        %v1857 = vshrl.u32 %v1764, 16
        %v1859 = vrot.slane %v1857, 6
        %v1860 = vshll.u32 %v1764, 16
        %v1862 = vrot.slane %v1860, 7
        %v1863 = vor.u32 %v1859, %v1862
        %v1864 = vsel %vm1796, %v1855, %v1863
        %v1865 = vrot.slane %v1863, 4
        %v1867 = vshrl.u32 %v1765, 16
        %v1869 = vrot.slane %v1867, 6
        %v1870 = vshll.u32 %v1765, 16
        %v1872 = vrot.slane %v1870, 7
        %v1873 = vor.u32 %v1869, %v1872
        %v1874 = vsel %vm1796, %v1865, %v1873
        %v1875 = vrot.slane %v1873, 4
        %v1877 = vshrl.u32 %v1766, 16
        %v1879 = vrot.slane %v1877, 6
        %v1880 = vshll.u32 %v1766, 16
        %v1882 = vrot.slane %v1880, 7
        %v1883 = vor.u32 %v1879, %v1882
        %v1884 = vsel %vm1796, %v1875, %v1883
        %v1885 = vrot.slane %v1883, 4
        %v1887 = vshrl.u32 %v1767, 16
        %v1889 = vrot.slane %v1887, 6
        %v1890 = vshll.u32 %v1767, 16
        %v1892 = vrot.slane %v1890, 7
        %v1893 = vor.u32 %v1889, %v1892
        %v1894 = vsel %vm1796, %v1885, %v1893
        %v1895 = vrot.slane %v1893, 4
        %v1897 = vshrl.u32 %v1768, 16
        %v1899 = vrot.slane %v1897, 6
        %v1900 = vshll.u32 %v1768, 16
        %v1902 = vrot.slane %v1900, 7
        %v1903 = vor.u32 %v1899, %v1902
        %v1904 = vsel %vm1796, %v1895, %v1903
        %v1905 = vrot.slane %v1903, 4
        %v1907 = vshrl.u32 %v1769, 16
        %v1909 = vrot.slane %v1907, 6
        %v1910 = vshll.u32 %v1769, 16
        %v1912 = vrot.slane %v1910, 7
        %v1913 = vor.u32 %v1909, %v1912
        %v1914 = vsel %vm1796, %v1905, %v1913
        %v1915 = vrot.slane %v1913, 4
        %v1917 = vshrl.u32 %v1770, 16
        %v1919 = vrot.slane %v1917, 6
        %v1920 = vshll.u32 %v1770, 16
        %v1922 = vrot.slane %v1920, 7
        %v1923 = vor.u32 %v1919, %v1922
        %v1924 = vsel %vm1796, %v1915, %v1923
        %v1925 = vrot.slane %v1923, 4
        %v1927 = vshrl.u32 %v1771, 16
        %v1929 = vrot.slane %v1927, 6
        %v1930 = vshll.u32 %v1771, 16
        %v1932 = vrot.slane %v1930, 7
        %v1933 = vor.u32 %v1929, %v1932
        %v1934 = vsel %vm1796, %v1925, %v1933
        %v1935 = vrot.slane %v1933, 4
        %v1937 = vshrl.u32 %v1772, 16
        %v1939 = vrot.slane %v1937, 6
        %v1940 = vshll.u32 %v1772, 16
        %v1942 = vrot.slane %v1940, 7
        %v1943 = vor.u32 %v1939, %v1942
        %v1944 = vsel %vm1796, %v1935, %v1943
        %v1945 = vrot.slane %v1943, 4
        %v1947 = vshrl.u32 %v1773, 16
        %v1949 = vrot.slane %v1947, 6
        %v1950 = vshll.u32 %v1773, 16
        %v1952 = vrot.slane %v1950, 7
        %v1953 = vor.u32 %v1949, %v1952
        %v1954 = vsel %vm1796, %v1945, %v1953
        %v1955 = vrot.slane %v1953, 4
        %v1957 = vshrl.u32 %v1774, 16
        %v1959 = vrot.slane %v1957, 6
        %v1960 = vshll.u32 %v1774, 16
        %v1962 = vrot.slane %v1960, 7
        %v1963 = vor.u32 %v1959, %v1962
        %v1964 = vsel %vm1796, %v1955, %v1963
        %v1965 = vrot.slane %v1963, 4
        %v1967 = vshrl.u32 %v1775, 16
        %v1969 = vrot.slane %v1967, 6
        %v1970 = vshll.u32 %v1775, 16
        %v1972 = vrot.slane %v1970, 7
        %v1973 = vor.u32 %v1969, %v1972
        %v1974 = vsel %vm1796, %v1965, %v1973
        %v1975 = vrot.slane %v1973, 4
        %v1977 = vshrl.u32 %v1776, 16
        %v1979 = vrot.slane %v1977, 6
        %v1980 = vshll.u32 %v1776, 16
        %v1982 = vrot.slane %v1980, 7
        %v1983 = vor.u32 %v1979, %v1982
        %v1984 = vsel %vm1796, %v1975, %v1983
        %v1985 = vrot.slane %v1983, 4
        %v1987 = vshrl.u32 %v1777, 16
        %v1989 = vrot.slane %v1987, 6
        %v1990 = vshll.u32 %v1777, 16
        %v1992 = vrot.slane %v1990, 7
        %v1993 = vor.u32 %v1989, %v1992
        %v1994 = vsel %vm1796, %v1985, %v1993
        %v1995 = vrot.slane %v1993, 4
        %v1997 = vshrl.u32 %v1778, 16
        %v1999 = vrot.slane %v1997, 6
        %v2000 = vshll.u32 %v1778, 16
        %v2002 = vrot.slane %v2000, 7
        %v2003 = vor.u32 %v1999, %v2002
        %v2004 = vsel %vm1796, %v1995, %v2003
        %v2005 = vrot.slane %v2003, 4
        %v2007 = vshrl.u32 %v1779, 16
        %v2009 = vrot.slane %v2007, 6
        %v2010 = vshll.u32 %v1779, 16
        %v2012 = vrot.slane %v2010, 7
        %v2013 = vor.u32 %v2009, %v2012
        %v2014 = vsel %vm1796, %v2005, %v2013
        %v2015 = vrot.slane %v2013, 4
        %v2017 = vshrl.u32 %v1780, 16
        %v2019 = vrot.slane %v2017, 6
        %v2020 = vshll.u32 %v1780, 16
        %v2022 = vrot.slane %v2020, 7
        %v2023 = vor.u32 %v2019, %v2022
        %v2024 = vsel %vm1796, %v2015, %v2023
        %v2025 = vrot.slane %v2023, 4
        %v2027 = vshrl.u32 %v1781, 16
        %v2029 = vrot.slane %v2027, 6
        %v2030 = vshll.u32 %v1781, 16
        %v2032 = vrot.slane %v2030, 7
        %v2033 = vor.u32 %v2029, %v2032
        %v2034 = vsel %vm1796, %v2025, %v2033
        %v2035 = vrot.slane %v2033, 4
        %v2037 = vshrl.u32 %v1782, 16
        %v2039 = vrot.slane %v2037, 6
        %v2040 = vshll.u32 %v1782, 16
        %v2042 = vrot.slane %v2040, 7
        %v2043 = vor.u32 %v2039, %v2042
        %v2044 = vsel %vm1796, %v2035, %v2043
        %v2045 = vrot.slane %v2043, 4
        %v2047 = vshrl.u32 %v1783, 16
        %v2049 = vrot.slane %v2047, 6
        %v2050 = vshll.u32 %v1783, 16
        %v2052 = vrot.slane %v2050, 7
        %v2053 = vor.u32 %v2049, %v2052
        %v2054 = vsel %vm1796, %v2045, %v2053
        %v2055 = vrot.slane %v2053, 4
        %v2057 = vshrl.u32 %v1784, 16
        %v2059 = vrot.slane %v2057, 6
        %v2060 = vshll.u32 %v1784, 16
        %v2062 = vrot.slane %v2060, 7
        %v2063 = vor.u32 %v2059, %v2062
        %v2064 = vsel %vm1796, %v2055, %v2063
        %v2065 = vrot.slane %v2063, 4
        %v2067 = vshrl.u32 %v1785, 16
        %v2069 = vrot.slane %v2067, 6
        %v2070 = vshll.u32 %v1785, 16
        %v2072 = vrot.slane %v2070, 7
        %v2073 = vor.u32 %v2069, %v2072
        %v2074 = vsel %vm1796, %v2065, %v2073
        %v2075 = vrot.slane %v2073, 4
        %v2077 = vshrl.u32 %v1786, 16
        %v2079 = vrot.slane %v2077, 6
        %v2080 = vshll.u32 %v1786, 16
        %v2082 = vrot.slane %v2080, 7
        %v2083 = vor.u32 %v2079, %v2082
        %v2084 = vsel %vm1796, %v2075, %v2083
        %v2085 = vrot.slane %v2083, 4
        %v2087 = vshrl.u32 %v1787, 16
        %v2089 = vrot.slane %v2087, 6
        %v2090 = vshll.u32 %v1787, 16
        %v2092 = vrot.slane %v2090, 7
        %v2093 = vor.u32 %v2089, %v2092
        %v2094 = vsel %vm1796, %v2085, %v2093
        %v2095 = vrot.slane %v2093, 4
        %v2097 = vshrl.u32 %v1788, 16
        %v2099 = vrot.slane %v2097, 6
        %v2100 = vshll.u32 %v1788, 16
        %v2102 = vrot.slane %v2100, 7
        %v2103 = vor.u32 %v2099, %v2102
        %v2104 = vsel %vm1796, %v2095, %v2103
        %v2105 = vrot.slane %v2103, 4
        %v2107 = vshrl.u32 %v1789, 16
        %v2109 = vrot.slane %v2107, 6
        %v2110 = vshll.u32 %v1789, 16
        %v2112 = vrot.slane %v2110, 7
        %v2113 = vor.u32 %v2109, %v2112
        %v2114 = vsel %vm1796, %v2105, %v2113
        %v2115 = vrot.slane %v2113, 4
        %v2117 = vshrl.u32 %v1790, 16
        %v2119 = vrot.slane %v2117, 6
        %v2120 = vshll.u32 %v1790, 16
        %v2122 = vrot.slane %v2120, 7
        %v2123 = vor.u32 %v2119, %v2122
        %v2124 = vsel %vm1796, %v2115, %v2123
        %v2125 = vrot.slane %v2123, 4
        %v2127 = vshrl.u32 %v1791, 16
        %v2129 = vrot.slane %v2127, 6
        %v2130 = vshll.u32 %v1791, 16
        %v2132 = vrot.slane %v2130, 7
        %v2133 = vor.u32 %v2129, %v2132
        %v2134 = vsel %vm1796, %v2125, %v2133
        %v2135 = vrot.slane %v2133, 4
        %v2137 = vshrl.u32 %v1792, 16
        %v2139 = vrot.slane %v2137, 6
        %v2140 = vshll.u32 %v1792, 16
        %v2142 = vrot.slane %v2140, 7
        %v2143 = vor.u32 %v2139, %v2142
        %v2144 = vsel %vm1796, %v2135, %v2143
        %v2145 = vrot.slane %v2143, 4
        %v2147 = vshrl.u32 %v1793, 16
        %v2149 = vrot.slane %v2147, 6
        %v2150 = vshll.u32 %v1793, 16
        %v2152 = vrot.slane %v2150, 7
        %v2153 = vor.u32 %v2149, %v2152
        %v2154 = vsel %vm1796, %v2145, %v2153
        %v2155 = vrot.slane %v2153, 4
        %vm2193 = vcmask 1043457
        %vm2194 = vsmask.f32 7942
        %vm2195 = vmand %vm2193, %vm2194
        %v2196 = vld [vmem:[#allocation2 + $0x8] sm:$0xe]
        %v2197 = vsel %vm2195, %v1804, %v2196
        %2198 = vst [vmem:[#allocation2 + $0x8] sm:$0xe] %v2197
        %2199 = vst [vmem:[#allocation2 + $0xc] sm:$0xf] %v1814
        %2200 = vst [vmem:[#allocation2 + $0x10] sm:$0xf] %v1824
        %2201 = vst [vmem:[#allocation2 + $0x14] sm:$0xf] %v1834
        %2202 = vst [vmem:[#allocation2 + $0x18] sm:$0xf] %v1844
        %2203 = vst [vmem:[#allocation2 + $0x1c] sm:$0xf] %v1854
        %2204 = vst [vmem:[#allocation2 + $0x20] sm:$0xf] %v1864
        %2205 = vst [vmem:[#allocation2 + $0x24] sm:$0xf] %v1874
        %2206 = vst [vmem:[#allocation2 + $0x28] sm:$0xf] %v1884
        %2207 = vst [vmem:[#allocation2 + $0x2c] sm:$0xf] %v1894
        %2208 = vst [vmem:[#allocation2 + $0x30] sm:$0xf] %v1904
        %2209 = vst [vmem:[#allocation2 + $0x34] sm:$0xf] %v1914
        %2210 = vst [vmem:[#allocation2 + $0x38] sm:$0xf] %v1924
        %2211 = vst [vmem:[#allocation2 + $0x3c] sm:$0xf] %v1934
        %2212 = vst [vmem:[#allocation2 + $0x40] sm:$0xf] %v1944
        %2213 = vst [vmem:[#allocation2 + $0x44] sm:$0xf] %v1954
        %2214 = vst [vmem:[#allocation2 + $0x48] sm:$0xf] %v1964
        %2215 = vst [vmem:[#allocation2 + $0x4c] sm:$0xf] %v1974
        %2216 = vst [vmem:[#allocation2 + $0x50] sm:$0xf] %v1984
        %2217 = vst [vmem:[#allocation2 + $0x54] sm:$0xf] %v1994
        %2218 = vst [vmem:[#allocation2 + $0x58] sm:$0xf] %v2004
        %2219 = vst [vmem:[#allocation2 + $0x5c] sm:$0xf] %v2014
        %2220 = vst [vmem:[#allocation2 + $0x60] sm:$0xf] %v2024
        %2221 = vst [vmem:[#allocation2 + $0x64] sm:$0xf] %v2034
        %2222 = vst [vmem:[#allocation2 + $0x68] sm:$0xf] %v2044
        %2223 = vst [vmem:[#allocation2 + $0x6c] sm:$0xf] %v2054
        %2224 = vst [vmem:[#allocation2 + $0x70] sm:$0xf] %v2064
        %2225 = vst [vmem:[#allocation2 + $0x74] sm:$0xf] %v2074
        %2226 = vst [vmem:[#allocation2 + $0x78] sm:$0xf] %v2084
        %2227 = vst [vmem:[#allocation2 + $0x7c] sm:$0xf] %v2094
        %2228 = vst [vmem:[#allocation2 + $0x80] sm:$0xf] %v2104
        %2229 = vst [vmem:[#allocation2 + $0x84] sm:$0xf] %v2114
        %2230 = vst [vmem:[#allocation2 + $0x88] sm:$0xf] %v2124
        %2231 = vst [vmem:[#allocation2 + $0x8c] sm:$0xf] %v2134
        %2232 = vst [vmem:[#allocation2 + $0x90] sm:$0xf] %v2144
        %2233 = vst [vmem:[#allocation2 + $0x94] sm:$0xf] %v2154
        %vm2234 = vcmask 1041408
        %vm2235 = vmand %vm2234, %vm1794
        %v2236 = vld [vmem:[#allocation2 + $0x98] sm:$0x3]
        %v2237 = vsel %vm2235, %v2155, %v2236
        %2238 = vst [vmem:[#allocation2 + $0x98] sm:$0x3] %v2237
        %v2239 = vld [vmem:[#allocation2] sm:$0xf]
        %v2240 = vld [vmem:[#allocation2 + $0x4] sm:$0xf]
        %v2241 = vld [vmem:[#allocation2 + $0x8] sm:$0xf]
        %v2242 = vld [vmem:[#allocation2 + $0xc] sm:$0xf]
        %v2243 = vld [vmem:[#allocation2 + $0x10] sm:$0xf]
        %v2244 = vld [vmem:[#allocation2 + $0x14] sm:$0xf]
        %v2245 = vld [vmem:[#allocation2 + $0x18] sm:$0xf]
        %v2246 = vld [vmem:[#allocation2 + $0x1c] sm:$0xf]
        %v2247 = vld [vmem:[#allocation2 + $0x20] sm:$0xf]
        %v2248 = vld [vmem:[#allocation2 + $0x24] sm:$0xf]
        %v2249 = vld [vmem:[#allocation2 + $0x28] sm:$0xf]
        %v2250 = vld [vmem:[#allocation2 + $0x2c] sm:$0xf]
        %v2251 = vld [vmem:[#allocation2 + $0x30] sm:$0xf]
        %v2252 = vld [vmem:[#allocation2 + $0x34] sm:$0xf]
        %v2253 = vld [vmem:[#allocation2 + $0x38] sm:$0xf]
        %v2254 = vld [vmem:[#allocation2 + $0x3c] sm:$0xf]
        %v2255 = vld [vmem:[#allocation2 + $0x40] sm:$0xf]
        %v2256 = vld [vmem:[#allocation2 + $0x44] sm:$0xf]
        %v2257 = vld [vmem:[#allocation2 + $0x48] sm:$0xf]
        %v2258 = vld [vmem:[#allocation2 + $0x4c] sm:$0xf]
        %v2259 = vld [vmem:[#allocation2 + $0x50] sm:$0xf]
        %v2260 = vld [vmem:[#allocation2 + $0x54] sm:$0xf]
        %v2261 = vld [vmem:[#allocation2 + $0x58] sm:$0xf]
        %v2262 = vld [vmem:[#allocation2 + $0x5c] sm:$0xf]
        %v2263 = vld [vmem:[#allocation2 + $0x60] sm:$0xf]
        %v2264 = vld [vmem:[#allocation2 + $0x64] sm:$0xf]
        %v2265 = vld [vmem:[#allocation2 + $0x68] sm:$0xf]
        %v2266 = vld [vmem:[#allocation2 + $0x6c] sm:$0xf]
        %v2267 = vld [vmem:[#allocation2 + $0x70] sm:$0xf]
        %v2268 = vld [vmem:[#allocation2 + $0x74] sm:$0xf]
        %v2269 = vld [vmem:[#allocation2 + $0x78] sm:$0xf]
        %v2270 = vld [vmem:[#allocation2 + $0x7c] sm:$0xf]
        %v2271 = vld [vmem:[#allocation2 + $0x80] sm:$0xf]
        %v2272 = vld [vmem:[#allocation2 + $0x84] sm:$0xf]
        %v2273 = vld [vmem:[#allocation2 + $0x88] sm:$0xf]
        %v2274 = vld [vmem:[#allocation2 + $0x8c] sm:$0xf]
        %v2275 = vld [vmem:[#allocation6] sm:$0xf]
        %v2276 = vld [vmem:[#allocation6 + $0x4] sm:$0xf]
        %v2277 = vld [vmem:[#allocation6 + $0x8] sm:$0xf]
        %v2278 = vld [vmem:[#allocation6 + $0xc] sm:$0xf]
        %v2279 = vld [vmem:[#allocation6 + $0x10] sm:$0xf]
        %v2280 = vld [vmem:[#allocation6 + $0x14] sm:$0xf]
        %v2281 = vld [vmem:[#allocation6 + $0x18] sm:$0xf]
        %v2282 = vld [vmem:[#allocation6 + $0x1c] sm:$0xf]
        %v2283 = vld [vmem:[#allocation6 + $0x20] sm:$0xf]
        %v2284 = vld [vmem:[#allocation6 + $0x24] sm:$0xf]
        %v2285 = vld [vmem:[#allocation6 + $0x28] sm:$0xf]
        %v2286 = vld [vmem:[#allocation6 + $0x2c] sm:$0xf]
        %v2287 = vld [vmem:[#allocation6 + $0x30] sm:$0xf]
        %v2288 = vld [vmem:[#allocation6 + $0x34] sm:$0xf]
        %v2289 = vld [vmem:[#allocation6 + $0x38] sm:$0xf]
        %v2290 = vld [vmem:[#allocation6 + $0x3c] sm:$0xf]
        %v2291 = vld [vmem:[#allocation2 + $0x90] sm:$0x1]
        %s2292 = scalar_lea.vmem [#allocation6], 64
        %v2293 = vld [vmem:[%s2292] sm:$0xf]
        %v2294 = vld [vmem:[%s2292 + $0x4] sm:$0xf]
        %v2295 = vld [vmem:[%s2292 + $0x8] sm:$0xf]
        %v2296 = vld [vmem:[%s2292 + $0xc] sm:$0xf]
        %v2297 = vld [vmem:[%s2292 + $0x10] sm:$0xf]
        %v2298 = vld [vmem:[%s2292 + $0x14] sm:$0xf]
        %v2299 = vld [vmem:[%s2292 + $0x18] sm:$0xf]
        %v2300 = vld [vmem:[%s2292 + $0x1c] sm:$0xf]
        %v2301 = vld [vmem:[%s2292 + $0x20] sm:$0xf]
        %v2302 = vld [vmem:[%s2292 + $0x24] sm:$0xf]
        %v2303 = vld [vmem:[%s2292 + $0x28] sm:$0xf]
        %v2304 = vld [vmem:[%s2292 + $0x2c] sm:$0xf]
        %v2305 = vld [vmem:[%s2292 + $0x30] sm:$0xf]
        %v2306 = vld [vmem:[%s2292 + $0x34] sm:$0xf]
        %v2307 = vld [vmem:[%s2292 + $0x38] sm:$0xf]
        %v2308 = vld [vmem:[%s2292 + $0x3c] sm:$0xf]
        %v2346 = vunpack.c.l.b16 %v2239
        %v2347 = vunpack.c.l.b16 %v2240
        %v2348 = vunpack.c.l.b16 %v2241
        %v2349 = vunpack.c.l.b16 %v2242
        %v2350 = vunpack.c.l.b16 %v2243
        %v2351 = vunpack.c.l.b16 %v2244
        %v2352 = vunpack.c.l.b16 %v2245
        %v2353 = vunpack.c.l.b16 %v2246
        %v2354 = vunpack.c.l.b16 %v2247
        %v2355 = vunpack.c.l.b16 %v2248
        %v2356 = vunpack.c.l.b16 %v2249
        %v2357 = vunpack.c.l.b16 %v2250
        %v2358 = vunpack.c.l.b16 %v2251
        %v2359 = vunpack.c.l.b16 %v2252
        %v2360 = vunpack.c.l.b16 %v2253
        %v2361 = vunpack.c.l.b16 %v2254
        %v2362 = vunpack.c.l.b16 %v2255
        %v2363 = vunpack.c.l.b16 %v2256
        %v2364 = vunpack.c.l.b16 %v2257
        %v2365 = vunpack.c.l.b16 %v2258
        %v2366 = vunpack.c.l.b16 %v2259
        %v2367 = vunpack.c.l.b16 %v2260
        %v2368 = vunpack.c.l.b16 %v2261
        %v2369 = vunpack.c.l.b16 %v2262
        %v2370 = vunpack.c.l.b16 %v2263
        %v2371 = vunpack.c.l.b16 %v2264
        %v2372 = vunpack.c.l.b16 %v2265
        %v2373 = vunpack.c.l.b16 %v2266
        %v2374 = vunpack.c.l.b16 %v2267
        %v2375 = vunpack.c.l.b16 %v2268
        %v2376 = vunpack.c.l.b16 %v2269
        %v2377 = vunpack.c.l.b16 %v2270
        %v2378 = vunpack.c.l.b16 %v2271
        %v2379 = vunpack.c.l.b16 %v2272
        %v2380 = vunpack.c.l.b16 %v2273
        %v2381 = vunpack.c.l.b16 %v2274
        %v2382 = vunpack.c.l.b16 %v2291
        %v2383 = vpack.c.b16 %v2347, %v2346
        %v2384 = vpack.c.b16 %v2349, %v2348
        %v2385 = vpack.c.b16 %v2351, %v2350
        %v2386 = vpack.c.b16 %v2353, %v2352
        %v2387 = vpack.c.b16 %v2355, %v2354
        %v2388 = vpack.c.b16 %v2357, %v2356
        %v2389 = vpack.c.b16 %v2359, %v2358
        %v2390 = vpack.c.b16 %v2361, %v2360
        %v2391 = vpack.c.b16 %v2363, %v2362
        %v2392 = vpack.c.b16 %v2365, %v2364
        %v2393 = vpack.c.b16 %v2367, %v2366
        %v2394 = vpack.c.b16 %v2369, %v2368
        %v2395 = vpack.c.b16 %v2371, %v2370
        %v2396 = vpack.c.b16 %v2373, %v2372
        %v2397 = vpack.c.b16 %v2375, %v2374
        %v2398 = vpack.c.b16 %v2377, %v2376
        %v2399 = vpack.c.b16 %v2379, %v2378
        %v2400 = vpack.c.b16 %v2381, %v2380
        %v2401 = vpack.c.b16 %v2382, %v2382
        %vm2402 = vsmask.f32 7424
        %v2404 = vshrl.u32 %v2383, 16
        %v2406 = vshll.u32 %v2383, 16
        %v2408 = vrot.slane %v2406, 1
        %v2409 = vor.u32 %v2404, %v2408
        %v2411 = vshll.u32 %v2384, 16
        %v2413 = vrot.slane %v2411, 1
        %v2414 = vsel %vm2402, %v2409, %v2413
        %v2415 = vshrl.u32 %v2384, 16
        %v2417 = vor.u32 %v2415, %v2413
        %v2419 = vshll.u32 %v2385, 16
        %v2421 = vrot.slane %v2419, 1
        %v2422 = vsel %vm2402, %v2417, %v2421
        %v2423 = vshrl.u32 %v2385, 16
        %v2425 = vor.u32 %v2423, %v2421
        %v2427 = vshll.u32 %v2386, 16
        %v2429 = vrot.slane %v2427, 1
        %v2430 = vsel %vm2402, %v2425, %v2429
        %v2431 = vshrl.u32 %v2386, 16
        %v2433 = vor.u32 %v2431, %v2429
        %v2435 = vshll.u32 %v2387, 16
        %v2437 = vrot.slane %v2435, 1
        %v2438 = vsel %vm2402, %v2433, %v2437
        %v2439 = vshrl.u32 %v2387, 16
        %v2441 = vor.u32 %v2439, %v2437
        %v2443 = vshll.u32 %v2388, 16
        %v2445 = vrot.slane %v2443, 1
        %v2446 = vsel %vm2402, %v2441, %v2445
        %v2447 = vshrl.u32 %v2388, 16
        %v2449 = vor.u32 %v2447, %v2445
        %v2451 = vshll.u32 %v2389, 16
        %v2453 = vrot.slane %v2451, 1
        %v2454 = vsel %vm2402, %v2449, %v2453
        %v2455 = vshrl.u32 %v2389, 16
        %v2457 = vor.u32 %v2455, %v2453
        %v2459 = vshll.u32 %v2390, 16
        %v2461 = vrot.slane %v2459, 1
        %v2462 = vsel %vm2402, %v2457, %v2461
        %v2463 = vshrl.u32 %v2390, 16
        %v2465 = vor.u32 %v2463, %v2461
        %v2467 = vshll.u32 %v2391, 16
        %v2469 = vrot.slane %v2467, 1
        %v2470 = vsel %vm2402, %v2465, %v2469
        %v2471 = vshrl.u32 %v2391, 16
        %v2473 = vor.u32 %v2471, %v2469
        %v2475 = vshll.u32 %v2392, 16
        %v2477 = vrot.slane %v2475, 1
        %v2478 = vsel %vm2402, %v2473, %v2477
        %v2479 = vshrl.u32 %v2392, 16
        %v2481 = vor.u32 %v2479, %v2477
        %v2483 = vshll.u32 %v2393, 16
        %v2485 = vrot.slane %v2483, 1
        %v2486 = vsel %vm2402, %v2481, %v2485
        %v2487 = vshrl.u32 %v2393, 16
        %v2489 = vor.u32 %v2487, %v2485
        %v2491 = vshll.u32 %v2394, 16
        %v2493 = vrot.slane %v2491, 1
        %v2494 = vsel %vm2402, %v2489, %v2493
        %v2495 = vshrl.u32 %v2394, 16
        %v2497 = vor.u32 %v2495, %v2493
        %v2499 = vshll.u32 %v2395, 16
        %v2501 = vrot.slane %v2499, 1
        %v2502 = vsel %vm2402, %v2497, %v2501
        %v2503 = vshrl.u32 %v2395, 16
        %v2505 = vor.u32 %v2503, %v2501
        %v2507 = vshll.u32 %v2396, 16
        %v2509 = vrot.slane %v2507, 1
        %v2510 = vsel %vm2402, %v2505, %v2509
        %v2511 = vshrl.u32 %v2396, 16
        %v2513 = vor.u32 %v2511, %v2509
        %v2515 = vshll.u32 %v2397, 16
        %v2517 = vrot.slane %v2515, 1
        %v2518 = vsel %vm2402, %v2513, %v2517
        %v2519 = vshrl.u32 %v2397, 16
        %v2521 = vor.u32 %v2519, %v2517
        %v2523 = vshll.u32 %v2398, 16
        %v2525 = vrot.slane %v2523, 1
        %v2526 = vsel %vm2402, %v2521, %v2525
        %v2527 = vshrl.u32 %v2398, 16
        %v2529 = vor.u32 %v2527, %v2525
        %v2531 = vshll.u32 %v2399, 16
        %v2533 = vrot.slane %v2531, 1
        %v2534 = vsel %vm2402, %v2529, %v2533
        %v2535 = vshrl.u32 %v2399, 16
        %v2537 = vor.u32 %v2535, %v2533
        %v2539 = vshll.u32 %v2400, 16
        %v2541 = vrot.slane %v2539, 1
        %v2542 = vsel %vm2402, %v2537, %v2541
        %v2543 = vshrl.u32 %v2400, 16
        %v2545 = vor.u32 %v2543, %v2541
        %v2547 = vshll.u32 %v2401, 16
        %v2549 = vrot.slane %v2547, 1
        %v2550 = vsel %vm2402, %v2545, %v2549
        %v2585 = vunpack.c.l.b16 %v2293
        %v2586 = vunpack.c.l.b16 %v2294
        %v2587 = vunpack.c.l.b16 %v2295
        %v2588 = vunpack.c.l.b16 %v2296
        %v2589 = vunpack.c.l.b16 %v2297
        %v2590 = vunpack.c.l.b16 %v2298
        %v2591 = vunpack.c.l.b16 %v2299
        %v2592 = vunpack.c.l.b16 %v2300
        %v2593 = vunpack.c.l.b16 %v2301
        %v2594 = vunpack.c.l.b16 %v2302
        %v2595 = vunpack.c.l.b16 %v2303
        %v2596 = vunpack.c.l.b16 %v2304
        %v2597 = vunpack.c.l.b16 %v2305
        %v2598 = vunpack.c.l.b16 %v2306
        %v2599 = vunpack.c.l.b16 %v2307
        %v2600 = vunpack.c.l.b16 %v2308
        %v2601 = vpack.c.b16 %v2586, %v2585
        %v2602 = vpack.c.b16 %v2588, %v2587
        %v2603 = vpack.c.b16 %v2590, %v2589
        %v2604 = vpack.c.b16 %v2592, %v2591
        %v2605 = vpack.c.b16 %v2594, %v2593
        %v2606 = vpack.c.b16 %v2596, %v2595
        %v2607 = vpack.c.b16 %v2598, %v2597
        %v2608 = vpack.c.b16 %v2600, %v2599
        %2617 = vmatpush.bf16.msra.mxu0 %v2608
        %2618 = vmatpush.bf16.msra.mxu0 %v2607
        %2619 = vmatpush.bf16.msra.mxu0 %v2606
        %2620 = vmatpush.bf16.msra.mxu0 %v2605
        %2621 = vmatpush.bf16.msra.mxu0 %v2604
        %2622 = vmatpush.bf16.msra.mxu0 %v2603
        %2623 = vmatpush.bf16.msra.mxu0 %v2602
        %2624 = vmatpush.bf16.msra.mxu0 %v2601
        %2625 = vmatmul.bf16.gmra.mxu0 %v2414
        %v2626 = vpop.f32.mrf.mxu0
        %v2627 = vadd.f32 0.0, %v2626
        %v2628 = vpop.f32.mrf.mxu0
        %v2629 = vadd.f32 0.0, %v2628
        %2630 = vmatmul.bf16.gmra.mxu0 %v2422
        %v2631 = vpop.f32.mrf.mxu0
        %v2632 = vadd.f32 0.0, %v2631
        %v2633 = vpop.f32.mrf.mxu0
        %v2634 = vadd.f32 0.0, %v2633
        %2635 = vmatmul.bf16.gmra.mxu0 %v2430
        %v2636 = vpop.f32.mrf.mxu0
        %v2637 = vadd.f32 0.0, %v2636
        %v2638 = vpop.f32.mrf.mxu0
        %v2639 = vadd.f32 0.0, %v2638
        %2640 = vmatmul.bf16.gmra.mxu0 %v2438
        %v2641 = vpop.f32.mrf.mxu0
        %v2642 = vadd.f32 0.0, %v2641
        %v2643 = vpop.f32.mrf.mxu0
        %v2644 = vadd.f32 0.0, %v2643
        %2645 = vmatmul.bf16.gmra.mxu0 %v2446
        %v2646 = vpop.f32.mrf.mxu0
        %v2647 = vadd.f32 0.0, %v2646
        %v2648 = vpop.f32.mrf.mxu0
        %v2649 = vadd.f32 0.0, %v2648
        %2650 = vmatmul.bf16.gmra.mxu0 %v2454
        %v2651 = vpop.f32.mrf.mxu0
        %v2652 = vadd.f32 0.0, %v2651
        %v2653 = vpop.f32.mrf.mxu0
        %v2654 = vadd.f32 0.0, %v2653
        %2655 = vmatmul.bf16.gmra.mxu0 %v2462
        %v2656 = vpop.f32.mrf.mxu0
        %v2657 = vadd.f32 0.0, %v2656
        %v2658 = vpop.f32.mrf.mxu0
        %v2659 = vadd.f32 0.0, %v2658
        %2660 = vmatmul.bf16.gmra.mxu0 %v2470
        %v2661 = vpop.f32.mrf.mxu0
        %v2662 = vadd.f32 0.0, %v2661
        %v2663 = vpop.f32.mrf.mxu0
        %v2664 = vadd.f32 0.0, %v2663
        %2665 = vmatmul.bf16.gmra.mxu0 %v2478
        %v2666 = vpop.f32.mrf.mxu0
        %v2667 = vadd.f32 0.0, %v2666
        %v2668 = vpop.f32.mrf.mxu0
        %v2669 = vadd.f32 0.0, %v2668
        %2670 = vmatmul.bf16.gmra.mxu0 %v2486
        %v2671 = vpop.f32.mrf.mxu0
        %v2672 = vadd.f32 0.0, %v2671
        %v2673 = vpop.f32.mrf.mxu0
        %v2674 = vadd.f32 0.0, %v2673
        %2675 = vmatmul.bf16.gmra.mxu0 %v2494
        %v2676 = vpop.f32.mrf.mxu0
        %v2677 = vadd.f32 0.0, %v2676
        %v2678 = vpop.f32.mrf.mxu0
        %v2679 = vadd.f32 0.0, %v2678
        %2680 = vmatmul.bf16.gmra.mxu0 %v2502
        %v2681 = vpop.f32.mrf.mxu0
        %v2682 = vadd.f32 0.0, %v2681
        %v2683 = vpop.f32.mrf.mxu0
        %v2684 = vadd.f32 0.0, %v2683
        %2685 = vmatmul.bf16.gmra.mxu0 %v2510
        %v2686 = vpop.f32.mrf.mxu0
        %v2687 = vadd.f32 0.0, %v2686
        %v2688 = vpop.f32.mrf.mxu0
        %v2689 = vadd.f32 0.0, %v2688
        %2690 = vmatmul.bf16.gmra.mxu0 %v2518
        %v2691 = vpop.f32.mrf.mxu0
        %v2692 = vadd.f32 0.0, %v2691
        %v2693 = vpop.f32.mrf.mxu0
        %v2694 = vadd.f32 0.0, %v2693
        %2695 = vmatmul.bf16.gmra.mxu0 %v2526
        %v2696 = vpop.f32.mrf.mxu0
        %v2697 = vadd.f32 0.0, %v2696
        %v2698 = vpop.f32.mrf.mxu0
        %v2699 = vadd.f32 0.0, %v2698
        %2700 = vmatmul.bf16.gmra.mxu0 %v2534
        %v2701 = vpop.f32.mrf.mxu0
        %v2702 = vadd.f32 0.0, %v2701
        %v2703 = vpop.f32.mrf.mxu0
        %v2704 = vadd.f32 0.0, %v2703
        %2705 = vmatmul.bf16.gmra.mxu0 %v2542
        %v2706 = vpop.f32.mrf.mxu0
        %v2707 = vadd.f32 0.0, %v2706
        %v2708 = vpop.f32.mrf.mxu0
        %v2709 = vadd.f32 0.0, %v2708
        %2710 = vmatmul.bf16.gmra.mxu0 %v2550
        %v2711 = vpop.f32.mrf.mxu0
        %v2712 = vadd.f32 0.0, %v2711
        %v2713 = vpop.f32.mrf.mxu0
        %v2714 = vadd.f32 0.0, %v2713
        %2715 = vdwg.mxu0
        %v2750 = vunpack.c.l.b16 %v2275
        %v2751 = vunpack.c.l.b16 %v2276
        %v2752 = vunpack.c.l.b16 %v2277
        %v2753 = vunpack.c.l.b16 %v2278
        %v2754 = vunpack.c.l.b16 %v2279
        %v2755 = vunpack.c.l.b16 %v2280
        %v2756 = vunpack.c.l.b16 %v2281
        %v2757 = vunpack.c.l.b16 %v2282
        %v2758 = vunpack.c.l.b16 %v2283
        %v2759 = vunpack.c.l.b16 %v2284
        %v2760 = vunpack.c.l.b16 %v2285
        %v2761 = vunpack.c.l.b16 %v2286
        %v2762 = vunpack.c.l.b16 %v2287
        %v2763 = vunpack.c.l.b16 %v2288
        %v2764 = vunpack.c.l.b16 %v2289
        %v2765 = vunpack.c.l.b16 %v2290
        %v2766 = vpack.c.b16 %v2751, %v2750
        %v2767 = vpack.c.b16 %v2753, %v2752
        %v2768 = vpack.c.b16 %v2755, %v2754
        %v2769 = vpack.c.b16 %v2757, %v2756
        %v2770 = vpack.c.b16 %v2759, %v2758
        %v2771 = vpack.c.b16 %v2761, %v2760
        %v2772 = vpack.c.b16 %v2763, %v2762
        %v2773 = vpack.c.b16 %v2765, %v2764
        %2782 = vmatpush.bf16.msra.mxu0 %v2773
        %2783 = vmatpush.bf16.msra.mxu0 %v2772
        %2784 = vmatpush.bf16.msra.mxu0 %v2771
        %2785 = vmatpush.bf16.msra.mxu0 %v2770
        %2786 = vmatpush.bf16.msra.mxu0 %v2769
        %2787 = vmatpush.bf16.msra.mxu0 %v2768
        %2788 = vmatpush.bf16.msra.mxu0 %v2767
        %2789 = vmatpush.bf16.msra.mxu0 %v2766
        %2790 = vmatmul.bf16.gmra.mxu0 %v2383
        %v2791 = vpop.f32.mrf.mxu0
        %v2792 = vadd.f32 %v2627, %v2791
        %v2793 = vpop.f32.mrf.mxu0
        %v2794 = vadd.f32 %v2629, %v2793
        %2795 = vmatmul.bf16.gmra.mxu0 %v2384
        %v2796 = vpop.f32.mrf.mxu0
        %v2797 = vadd.f32 %v2632, %v2796
        %v2798 = vpop.f32.mrf.mxu0
        %v2799 = vadd.f32 %v2634, %v2798
        %2800 = vmatmul.bf16.gmra.mxu0 %v2385
        %v2801 = vpop.f32.mrf.mxu0
        %v2802 = vadd.f32 %v2637, %v2801
        %v2803 = vpop.f32.mrf.mxu0
        %v2804 = vadd.f32 %v2639, %v2803
        %2805 = vmatmul.bf16.gmra.mxu0 %v2386
        %v2806 = vpop.f32.mrf.mxu0
        %v2807 = vadd.f32 %v2642, %v2806
        %v2808 = vpop.f32.mrf.mxu0
        %v2809 = vadd.f32 %v2644, %v2808
        %2810 = vmatmul.bf16.gmra.mxu0 %v2387
        %v2811 = vpop.f32.mrf.mxu0
        %v2812 = vadd.f32 %v2647, %v2811
        %v2813 = vpop.f32.mrf.mxu0
        %v2814 = vadd.f32 %v2649, %v2813
        %2815 = vmatmul.bf16.gmra.mxu0 %v2388
        %v2816 = vpop.f32.mrf.mxu0
        %v2817 = vadd.f32 %v2652, %v2816
        %v2818 = vpop.f32.mrf.mxu0
        %v2819 = vadd.f32 %v2654, %v2818
        %2820 = vmatmul.bf16.gmra.mxu0 %v2389
        %v2821 = vpop.f32.mrf.mxu0
        %v2822 = vadd.f32 %v2657, %v2821
        %v2823 = vpop.f32.mrf.mxu0
        %v2824 = vadd.f32 %v2659, %v2823
        %2825 = vmatmul.bf16.gmra.mxu0 %v2390
        %v2826 = vpop.f32.mrf.mxu0
        %v2827 = vadd.f32 %v2662, %v2826
        %v2828 = vpop.f32.mrf.mxu0
        %v2829 = vadd.f32 %v2664, %v2828
        %2830 = vmatmul.bf16.gmra.mxu0 %v2391
        %v2831 = vpop.f32.mrf.mxu0
        %v2832 = vadd.f32 %v2667, %v2831
        %v2833 = vpop.f32.mrf.mxu0
        %v2834 = vadd.f32 %v2669, %v2833
        %2835 = vmatmul.bf16.gmra.mxu0 %v2392
        %v2836 = vpop.f32.mrf.mxu0
        %v2837 = vadd.f32 %v2672, %v2836
        %v2838 = vpop.f32.mrf.mxu0
        %v2839 = vadd.f32 %v2674, %v2838
        %2840 = vmatmul.bf16.gmra.mxu0 %v2393
        %v2841 = vpop.f32.mrf.mxu0
        %v2842 = vadd.f32 %v2677, %v2841
        %v2843 = vpop.f32.mrf.mxu0
        %v2844 = vadd.f32 %v2679, %v2843
        %2845 = vmatmul.bf16.gmra.mxu0 %v2394
        %v2846 = vpop.f32.mrf.mxu0
        %v2847 = vadd.f32 %v2682, %v2846
        %v2848 = vpop.f32.mrf.mxu0
        %v2849 = vadd.f32 %v2684, %v2848
        %2850 = vmatmul.bf16.gmra.mxu0 %v2395
        %v2851 = vpop.f32.mrf.mxu0
        %v2852 = vadd.f32 %v2687, %v2851
        %v2853 = vpop.f32.mrf.mxu0
        %v2854 = vadd.f32 %v2689, %v2853
        %2855 = vmatmul.bf16.gmra.mxu0 %v2396
        %v2856 = vpop.f32.mrf.mxu0
        %v2857 = vadd.f32 %v2692, %v2856
        %v2858 = vpop.f32.mrf.mxu0
        %v2859 = vadd.f32 %v2694, %v2858
        %2860 = vmatmul.bf16.gmra.mxu0 %v2397
        %v2861 = vpop.f32.mrf.mxu0
        %v2862 = vadd.f32 %v2697, %v2861
        %v2863 = vpop.f32.mrf.mxu0
        %v2864 = vadd.f32 %v2699, %v2863
        %2865 = vmatmul.bf16.gmra.mxu0 %v2398
        %v2866 = vpop.f32.mrf.mxu0
        %v2867 = vadd.f32 %v2702, %v2866
        %v2868 = vpop.f32.mrf.mxu0
        %v2869 = vadd.f32 %v2704, %v2868
        %2870 = vmatmul.bf16.gmra.mxu0 %v2399
        %v2871 = vpop.f32.mrf.mxu0
        %v2872 = vadd.f32 %v2707, %v2871
        %v2873 = vpop.f32.mrf.mxu0
        %v2874 = vadd.f32 %v2709, %v2873
        %2875 = vmatmul.bf16.gmra.mxu0 %v2400
        %v2876 = vpop.f32.mrf.mxu0
        %v2877 = vadd.f32 %v2712, %v2876
        %v2878 = vpop.f32.mrf.mxu0
        %v2879 = vadd.f32 %v2714, %v2878
        %2880 = vdwg.mxu0
        %v2881 = vld [vmem:[#allocation2] sm:$0xe]
        %s2882 = scalar_lea.vmem [#allocation6], 128
        %v2883 = vld [vmem:[%s2882] sm:$0xf]
        %v2884 = vld [vmem:[%s2882 + $0x4] sm:$0xf]
        %v2885 = vld [vmem:[%s2882 + $0x8] sm:$0xf]
        %v2886 = vld [vmem:[%s2882 + $0xc] sm:$0xf]
        %v2887 = vld [vmem:[%s2882 + $0x10] sm:$0xf]
        %v2888 = vld [vmem:[%s2882 + $0x14] sm:$0xf]
        %v2889 = vld [vmem:[%s2882 + $0x18] sm:$0xf]
        %v2890 = vld [vmem:[%s2882 + $0x1c] sm:$0xf]
        %v2891 = vld [vmem:[%s2882 + $0x20] sm:$0xf]
        %v2892 = vld [vmem:[%s2882 + $0x24] sm:$0xf]
        %v2893 = vld [vmem:[%s2882 + $0x28] sm:$0xf]
        %v2894 = vld [vmem:[%s2882 + $0x2c] sm:$0xf]
        %v2895 = vld [vmem:[%s2882 + $0x30] sm:$0xf]
        %v2896 = vld [vmem:[%s2882 + $0x34] sm:$0xf]
        %v2897 = vld [vmem:[%s2882 + $0x38] sm:$0xf]
        %v2898 = vld [vmem:[%s2882 + $0x3c] sm:$0xf]
        %v2900 = vunpack.c.l.b16 %v2881
        %v2901 = vpack.c.b16 %v2347, %v2900
        %vm2902 = vcmask 1046528
        %v2903 = vrot.slane %v2901, 1
        %v2904 = vrot.slane %v2384, 1
        %v2905 = vsel %vm2902, %v2903, %v2904
        %v2906 = vrot.slane %v2385, 1
        %v2907 = vsel %vm2902, %v2904, %v2906
        %v2908 = vrot.slane %v2386, 1
        %v2909 = vsel %vm2902, %v2906, %v2908
        %v2910 = vrot.slane %v2387, 1
        %v2911 = vsel %vm2902, %v2908, %v2910
        %v2912 = vrot.slane %v2388, 1
        %v2913 = vsel %vm2902, %v2910, %v2912
        %v2914 = vrot.slane %v2389, 1
        %v2915 = vsel %vm2902, %v2912, %v2914
        %v2916 = vrot.slane %v2390, 1
        %v2917 = vsel %vm2902, %v2914, %v2916
        %v2918 = vrot.slane %v2391, 1
        %v2919 = vsel %vm2902, %v2916, %v2918
        %v2920 = vrot.slane %v2392, 1
        %v2921 = vsel %vm2902, %v2918, %v2920
        %v2922 = vrot.slane %v2393, 1
        %v2923 = vsel %vm2902, %v2920, %v2922
        %v2924 = vrot.slane %v2394, 1
        %v2925 = vsel %vm2902, %v2922, %v2924
        %v2926 = vrot.slane %v2395, 1
        %v2927 = vsel %vm2902, %v2924, %v2926
        %v2928 = vrot.slane %v2396, 1
        %v2929 = vsel %vm2902, %v2926, %v2928
        %v2930 = vrot.slane %v2397, 1
        %v2931 = vsel %vm2902, %v2928, %v2930
        %v2932 = vrot.slane %v2398, 1
        %v2933 = vsel %vm2902, %v2930, %v2932
        %v2934 = vrot.slane %v2399, 1
        %v2935 = vsel %vm2902, %v2932, %v2934
        %v2936 = vrot.slane %v2400, 1
        %v2937 = vsel %vm2902, %v2934, %v2936
        %v2938 = vrot.slane %v2401, 1
        %v2939 = vsel %vm2902, %v2936, %v2938
        %v2974 = vunpack.c.l.b16 %v2883
        %v2975 = vunpack.c.l.b16 %v2884
        %v2976 = vunpack.c.l.b16 %v2885
        %v2977 = vunpack.c.l.b16 %v2886
        %v2978 = vunpack.c.l.b16 %v2887
        %v2979 = vunpack.c.l.b16 %v2888
        %v2980 = vunpack.c.l.b16 %v2889
        %v2981 = vunpack.c.l.b16 %v2890
        %v2982 = vunpack.c.l.b16 %v2891
        %v2983 = vunpack.c.l.b16 %v2892
        %v2984 = vunpack.c.l.b16 %v2893
        %v2985 = vunpack.c.l.b16 %v2894
        %v2986 = vunpack.c.l.b16 %v2895
        %v2987 = vunpack.c.l.b16 %v2896
        %v2988 = vunpack.c.l.b16 %v2897
        %v2989 = vunpack.c.l.b16 %v2898
        %v2990 = vpack.c.b16 %v2975, %v2974
        %v2991 = vpack.c.b16 %v2977, %v2976
        %v2992 = vpack.c.b16 %v2979, %v2978
        %v2993 = vpack.c.b16 %v2981, %v2980
        %v2994 = vpack.c.b16 %v2983, %v2982
        %v2995 = vpack.c.b16 %v2985, %v2984
        %v2996 = vpack.c.b16 %v2987, %v2986
        %v2997 = vpack.c.b16 %v2989, %v2988
        %3006 = vmatpush.bf16.msra.mxu0 %v2997
        %3007 = vmatpush.bf16.msra.mxu0 %v2996
        %3008 = vmatpush.bf16.msra.mxu0 %v2995
        %3009 = vmatpush.bf16.msra.mxu0 %v2994
        %3010 = vmatpush.bf16.msra.mxu0 %v2993
        %3011 = vmatpush.bf16.msra.mxu0 %v2992
        %3012 = vmatpush.bf16.msra.mxu0 %v2991
        %3013 = vmatpush.bf16.msra.mxu0 %v2990
        %3014 = vmatmul.bf16.gmra.mxu0 %v2905
        %v3015 = vpop.f32.mrf.mxu0
        %v3016 = vadd.f32 0.0, %v3015
        %v3017 = vpop.f32.mrf.mxu0
        %v3018 = vadd.f32 0.0, %v3017
        %3019 = vmatmul.bf16.gmra.mxu0 %v2907
        %v3020 = vpop.f32.mrf.mxu0
        %v3021 = vadd.f32 0.0, %v3020
        %v3022 = vpop.f32.mrf.mxu0
        %v3023 = vadd.f32 0.0, %v3022
        %3024 = vmatmul.bf16.gmra.mxu0 %v2909
        %v3025 = vpop.f32.mrf.mxu0
        %v3026 = vadd.f32 0.0, %v3025
        %v3027 = vpop.f32.mrf.mxu0
        %v3028 = vadd.f32 0.0, %v3027
        %3029 = vmatmul.bf16.gmra.mxu0 %v2911
        %v3030 = vpop.f32.mrf.mxu0
        %v3031 = vadd.f32 0.0, %v3030
        %v3032 = vpop.f32.mrf.mxu0
        %v3033 = vadd.f32 0.0, %v3032
        %3034 = vmatmul.bf16.gmra.mxu0 %v2913
        %v3035 = vpop.f32.mrf.mxu0
        %v3036 = vadd.f32 0.0, %v3035
        %v3037 = vpop.f32.mrf.mxu0
        %v3038 = vadd.f32 0.0, %v3037
        %3039 = vmatmul.bf16.gmra.mxu0 %v2915
        %v3040 = vpop.f32.mrf.mxu0
        %v3041 = vadd.f32 0.0, %v3040
        %v3042 = vpop.f32.mrf.mxu0
        %v3043 = vadd.f32 0.0, %v3042
        %3044 = vmatmul.bf16.gmra.mxu0 %v2917
        %v3045 = vpop.f32.mrf.mxu0
        %v3046 = vadd.f32 0.0, %v3045
        %v3047 = vpop.f32.mrf.mxu0
        %v3048 = vadd.f32 0.0, %v3047
        %3049 = vmatmul.bf16.gmra.mxu0 %v2919
        %v3050 = vpop.f32.mrf.mxu0
        %v3051 = vadd.f32 0.0, %v3050
        %v3052 = vpop.f32.mrf.mxu0
        %v3053 = vadd.f32 0.0, %v3052
        %3054 = vmatmul.bf16.gmra.mxu0 %v2921
        %v3055 = vpop.f32.mrf.mxu0
        %v3056 = vadd.f32 0.0, %v3055
        %v3057 = vpop.f32.mrf.mxu0
        %v3058 = vadd.f32 0.0, %v3057
        %3059 = vmatmul.bf16.gmra.mxu0 %v2923
        %v3060 = vpop.f32.mrf.mxu0
        %v3061 = vadd.f32 0.0, %v3060
        %v3062 = vpop.f32.mrf.mxu0
        %v3063 = vadd.f32 0.0, %v3062
        %3064 = vmatmul.bf16.gmra.mxu0 %v2925
        %v3065 = vpop.f32.mrf.mxu0
        %v3066 = vadd.f32 0.0, %v3065
        %v3067 = vpop.f32.mrf.mxu0
        %v3068 = vadd.f32 0.0, %v3067
        %3069 = vmatmul.bf16.gmra.mxu0 %v2927
        %v3070 = vpop.f32.mrf.mxu0
        %v3071 = vadd.f32 0.0, %v3070
        %v3072 = vpop.f32.mrf.mxu0
        %v3073 = vadd.f32 0.0, %v3072
        %3074 = vmatmul.bf16.gmra.mxu0 %v2929
        %v3075 = vpop.f32.mrf.mxu0
        %v3076 = vadd.f32 0.0, %v3075
        %v3077 = vpop.f32.mrf.mxu0
        %v3078 = vadd.f32 0.0, %v3077
        %3079 = vmatmul.bf16.gmra.mxu0 %v2931
        %v3080 = vpop.f32.mrf.mxu0
        %v3081 = vadd.f32 0.0, %v3080
        %v3082 = vpop.f32.mrf.mxu0
        %v3083 = vadd.f32 0.0, %v3082
        %3084 = vmatmul.bf16.gmra.mxu0 %v2933
        %v3085 = vpop.f32.mrf.mxu0
        %v3086 = vadd.f32 0.0, %v3085
        %v3087 = vpop.f32.mrf.mxu0
        %v3088 = vadd.f32 0.0, %v3087
        %3089 = vmatmul.bf16.gmra.mxu0 %v2935
        %v3090 = vpop.f32.mrf.mxu0
        %v3091 = vadd.f32 0.0, %v3090
        %v3092 = vpop.f32.mrf.mxu0
        %v3093 = vadd.f32 0.0, %v3092
        %3094 = vmatmul.bf16.gmra.mxu0 %v2937
        %v3095 = vpop.f32.mrf.mxu0
        %v3096 = vadd.f32 0.0, %v3095
        %v3097 = vpop.f32.mrf.mxu0
        %v3098 = vadd.f32 0.0, %v3097
        %3099 = vmatmul.bf16.gmra.mxu0 %v2939
        %v3100 = vpop.f32.mrf.mxu0
        %v3101 = vadd.f32 0.0, %v3100
        %v3102 = vpop.f32.mrf.mxu0
        %v3103 = vadd.f32 0.0, %v3102
        %3104 = vdwg.mxu0
        %v3105 = vadd.f32 %v2792, %v3016
        %v3106 = vadd.f32 %v2794, %v3018
        %v3107 = vadd.f32 %v2797, %v3021
        %v3108 = vadd.f32 %v2799, %v3023
        %v3109 = vadd.f32 %v2802, %v3026
        %v3110 = vadd.f32 %v2804, %v3028
        %v3111 = vadd.f32 %v2807, %v3031
        %v3112 = vadd.f32 %v2809, %v3033
        %v3113 = vadd.f32 %v2812, %v3036
        %v3114 = vadd.f32 %v2814, %v3038
        %v3115 = vadd.f32 %v2817, %v3041
        %v3116 = vadd.f32 %v2819, %v3043
        %v3117 = vadd.f32 %v2822, %v3046
        %v3118 = vadd.f32 %v2824, %v3048
        %v3119 = vadd.f32 %v2827, %v3051
        %v3120 = vadd.f32 %v2829, %v3053
        %v3121 = vadd.f32 %v2832, %v3056
        %v3122 = vadd.f32 %v2834, %v3058
        %v3123 = vadd.f32 %v2837, %v3061
        %v3124 = vadd.f32 %v2839, %v3063
        %v3125 = vadd.f32 %v2842, %v3066
        %v3126 = vadd.f32 %v2844, %v3068
        %v3127 = vadd.f32 %v2847, %v3071
        %v3128 = vadd.f32 %v2849, %v3073
        %v3129 = vadd.f32 %v2852, %v3076
        %v3130 = vadd.f32 %v2854, %v3078
        %v3131 = vadd.f32 %v2857, %v3081
        %v3132 = vadd.f32 %v2859, %v3083
        %v3133 = vadd.f32 %v2862, %v3086
        %v3134 = vadd.f32 %v2864, %v3088
        %v3135 = vadd.f32 %v2867, %v3091
        %v3136 = vadd.f32 %v2869, %v3093
        %v3137 = vadd.f32 %v2872, %v3096
        %v3138 = vadd.f32 %v2874, %v3098
        %v3139 = vadd.f32 %v2877, %v3101
        %v3140 = vadd.f32 %v2879, %v3103
        %v3141 = vld [vmem:[#allocation2 + $0x8] sm:$0xe]
        %v3142 = vld [vmem:[#allocation2 + $0xc] sm:$0xf]
        %v3143 = vld [vmem:[#allocation2 + $0x10] sm:$0xf]
        %v3144 = vld [vmem:[#allocation2 + $0x14] sm:$0xf]
        %v3145 = vld [vmem:[#allocation2 + $0x18] sm:$0xf]
        %v3146 = vld [vmem:[#allocation2 + $0x1c] sm:$0xf]
        %v3147 = vld [vmem:[#allocation2 + $0x20] sm:$0xf]
        %v3148 = vld [vmem:[#allocation2 + $0x24] sm:$0xf]
        %v3149 = vld [vmem:[#allocation2 + $0x28] sm:$0xf]
        %v3150 = vld [vmem:[#allocation2 + $0x2c] sm:$0xf]
        %v3151 = vld [vmem:[#allocation2 + $0x30] sm:$0xf]
        %v3152 = vld [vmem:[#allocation2 + $0x34] sm:$0xf]
        %v3153 = vld [vmem:[#allocation2 + $0x38] sm:$0xf]
        %v3154 = vld [vmem:[#allocation2 + $0x3c] sm:$0xf]
        %v3155 = vld [vmem:[#allocation2 + $0x40] sm:$0xf]
        %v3156 = vld [vmem:[#allocation2 + $0x44] sm:$0xf]
        %v3157 = vld [vmem:[#allocation2 + $0x48] sm:$0xf]
        %v3158 = vld [vmem:[#allocation2 + $0x4c] sm:$0xf]
        %v3159 = vld [vmem:[#allocation2 + $0x50] sm:$0xf]
        %v3160 = vld [vmem:[#allocation2 + $0x54] sm:$0xf]
        %v3161 = vld [vmem:[#allocation2 + $0x58] sm:$0xf]
        %v3162 = vld [vmem:[#allocation2 + $0x5c] sm:$0xf]
        %v3163 = vld [vmem:[#allocation2 + $0x60] sm:$0xf]
        %v3164 = vld [vmem:[#allocation2 + $0x64] sm:$0xf]
        %v3165 = vld [vmem:[#allocation2 + $0x68] sm:$0xf]
        %v3166 = vld [vmem:[#allocation2 + $0x6c] sm:$0xf]
        %v3167 = vld [vmem:[#allocation2 + $0x70] sm:$0xf]
        %v3168 = vld [vmem:[#allocation2 + $0x74] sm:$0xf]
        %v3169 = vld [vmem:[#allocation2 + $0x78] sm:$0xf]
        %v3170 = vld [vmem:[#allocation2 + $0x7c] sm:$0xf]
        %v3171 = vld [vmem:[#allocation2 + $0x80] sm:$0xf]
        %v3172 = vld [vmem:[#allocation2 + $0x84] sm:$0xf]
        %v3173 = vld [vmem:[#allocation2 + $0x88] sm:$0xf]
        %v3174 = vld [vmem:[#allocation2 + $0x8c] sm:$0xf]
        %v3175 = vld [vmem:[#allocation2 + $0x90] sm:$0xf]
        %v3176 = vld [vmem:[#allocation2 + $0x94] sm:$0xf]
        %v3177 = vld [vmem:[#allocation2 + $0x98] sm:$0x1]
        %s3178 = scalar_lea.vmem [#allocation6], 192
        %v3179 = vld [vmem:[%s3178] sm:$0xf]
        %v3180 = vld [vmem:[%s3178 + $0x4] sm:$0xf]
        %v3181 = vld [vmem:[%s3178 + $0x8] sm:$0xf]
        %v3182 = vld [vmem:[%s3178 + $0xc] sm:$0xf]
        %v3183 = vld [vmem:[%s3178 + $0x10] sm:$0xf]
        %v3184 = vld [vmem:[%s3178 + $0x14] sm:$0xf]
        %v3185 = vld [vmem:[%s3178 + $0x18] sm:$0xf]
        %v3186 = vld [vmem:[%s3178 + $0x1c] sm:$0xf]
        %v3187 = vld [vmem:[%s3178 + $0x20] sm:$0xf]
        %v3188 = vld [vmem:[%s3178 + $0x24] sm:$0xf]
        %v3189 = vld [vmem:[%s3178 + $0x28] sm:$0xf]
        %v3190 = vld [vmem:[%s3178 + $0x2c] sm:$0xf]
        %v3191 = vld [vmem:[%s3178 + $0x30] sm:$0xf]
        %v3192 = vld [vmem:[%s3178 + $0x34] sm:$0xf]
        %v3193 = vld [vmem:[%s3178 + $0x38] sm:$0xf]
        %v3194 = vld [vmem:[%s3178 + $0x3c] sm:$0xf]
        %v3232 = vunpack.c.l.b16 %v3141
        %v3233 = vunpack.c.l.b16 %v3142
        %v3234 = vunpack.c.l.b16 %v3143
        %v3235 = vunpack.c.l.b16 %v3144
        %v3236 = vunpack.c.l.b16 %v3145
        %v3237 = vunpack.c.l.b16 %v3146
        %v3238 = vunpack.c.l.b16 %v3147
        %v3239 = vunpack.c.l.b16 %v3148
        %v3240 = vunpack.c.l.b16 %v3149
        %v3241 = vunpack.c.l.b16 %v3150
        %v3242 = vunpack.c.l.b16 %v3151
        %v3243 = vunpack.c.l.b16 %v3152
        %v3244 = vunpack.c.l.b16 %v3153
        %v3245 = vunpack.c.l.b16 %v3154
        %v3246 = vunpack.c.l.b16 %v3155
        %v3247 = vunpack.c.l.b16 %v3156
        %v3248 = vunpack.c.l.b16 %v3157
        %v3249 = vunpack.c.l.b16 %v3158
        %v3250 = vunpack.c.l.b16 %v3159
        %v3251 = vunpack.c.l.b16 %v3160
        %v3252 = vunpack.c.l.b16 %v3161
        %v3253 = vunpack.c.l.b16 %v3162
        %v3254 = vunpack.c.l.b16 %v3163
        %v3255 = vunpack.c.l.b16 %v3164
        %v3256 = vunpack.c.l.b16 %v3165
        %v3257 = vunpack.c.l.b16 %v3166
        %v3258 = vunpack.c.l.b16 %v3167
        %v3259 = vunpack.c.l.b16 %v3168
        %v3260 = vunpack.c.l.b16 %v3169
        %v3261 = vunpack.c.l.b16 %v3170
        %v3262 = vunpack.c.l.b16 %v3171
        %v3263 = vunpack.c.l.b16 %v3172
        %v3264 = vunpack.c.l.b16 %v3173
        %v3265 = vunpack.c.l.b16 %v3174
        %v3266 = vunpack.c.l.b16 %v3175
        %v3267 = vunpack.c.l.b16 %v3176
        %v3268 = vunpack.c.l.b16 %v3177
        %v3269 = vpack.c.b16 %v3233, %v3232
        %v3270 = vpack.c.b16 %v3235, %v3234
        %v3271 = vpack.c.b16 %v3237, %v3236
        %v3272 = vpack.c.b16 %v3239, %v3238
        %v3273 = vpack.c.b16 %v3241, %v3240
        %v3274 = vpack.c.b16 %v3243, %v3242
        %v3275 = vpack.c.b16 %v3245, %v3244
        %v3276 = vpack.c.b16 %v3247, %v3246
        %v3277 = vpack.c.b16 %v3249, %v3248
        %v3278 = vpack.c.b16 %v3251, %v3250
        %v3279 = vpack.c.b16 %v3253, %v3252
        %v3280 = vpack.c.b16 %v3255, %v3254
        %v3281 = vpack.c.b16 %v3257, %v3256
        %v3282 = vpack.c.b16 %v3259, %v3258
        %v3283 = vpack.c.b16 %v3261, %v3260
        %v3284 = vpack.c.b16 %v3263, %v3262
        %v3285 = vpack.c.b16 %v3265, %v3264
        %v3286 = vpack.c.b16 %v3267, %v3266
        %v3287 = vpack.c.b16 %v3268, %v3268
        %v3288 = vrot.slane %v3269, 1
        %v3289 = vrot.slane %v3270, 1
        %v3290 = vsel %vm2902, %v3288, %v3289
        %v3291 = vrot.slane %v3271, 1
        %v3292 = vsel %vm2902, %v3289, %v3291
        %v3293 = vrot.slane %v3272, 1
        %v3294 = vsel %vm2902, %v3291, %v3293
        %v3295 = vrot.slane %v3273, 1
        %v3296 = vsel %vm2902, %v3293, %v3295
        %v3297 = vrot.slane %v3274, 1
        %v3298 = vsel %vm2902, %v3295, %v3297
        %v3299 = vrot.slane %v3275, 1
        %v3300 = vsel %vm2902, %v3297, %v3299
        %v3301 = vrot.slane %v3276, 1
        %v3302 = vsel %vm2902, %v3299, %v3301
        %v3303 = vrot.slane %v3277, 1
        %v3304 = vsel %vm2902, %v3301, %v3303
        %v3305 = vrot.slane %v3278, 1
        %v3306 = vsel %vm2902, %v3303, %v3305
        %v3307 = vrot.slane %v3279, 1
        %v3308 = vsel %vm2902, %v3305, %v3307
        %v3309 = vrot.slane %v3280, 1
        %v3310 = vsel %vm2902, %v3307, %v3309
        %v3311 = vrot.slane %v3281, 1
        %v3312 = vsel %vm2902, %v3309, %v3311
        %v3313 = vrot.slane %v3282, 1
        %v3314 = vsel %vm2902, %v3311, %v3313
        %v3315 = vrot.slane %v3283, 1
        %v3316 = vsel %vm2902, %v3313, %v3315
        %v3317 = vrot.slane %v3284, 1
        %v3318 = vsel %vm2902, %v3315, %v3317
        %v3319 = vrot.slane %v3285, 1
        %v3320 = vsel %vm2902, %v3317, %v3319
        %v3321 = vrot.slane %v3286, 1
        %v3322 = vsel %vm2902, %v3319, %v3321
        %v3323 = vrot.slane %v3287, 1
        %v3324 = vsel %vm2902, %v3321, %v3323
        %v3359 = vunpack.c.l.b16 %v3179
        %v3360 = vunpack.c.l.b16 %v3180
        %v3361 = vunpack.c.l.b16 %v3181
        %v3362 = vunpack.c.l.b16 %v3182
        %v3363 = vunpack.c.l.b16 %v3183
        %v3364 = vunpack.c.l.b16 %v3184
        %v3365 = vunpack.c.l.b16 %v3185
        %v3366 = vunpack.c.l.b16 %v3186
        %v3367 = vunpack.c.l.b16 %v3187
        %v3368 = vunpack.c.l.b16 %v3188
        %v3369 = vunpack.c.l.b16 %v3189
        %v3370 = vunpack.c.l.b16 %v3190
        %v3371 = vunpack.c.l.b16 %v3191
        %v3372 = vunpack.c.l.b16 %v3192
        %v3373 = vunpack.c.l.b16 %v3193
        %v3374 = vunpack.c.l.b16 %v3194
        %v3375 = vpack.c.b16 %v3360, %v3359
        %v3376 = vpack.c.b16 %v3362, %v3361
        %v3377 = vpack.c.b16 %v3364, %v3363
        %v3378 = vpack.c.b16 %v3366, %v3365
        %v3379 = vpack.c.b16 %v3368, %v3367
        %v3380 = vpack.c.b16 %v3370, %v3369
        %v3381 = vpack.c.b16 %v3372, %v3371
        %v3382 = vpack.c.b16 %v3374, %v3373
        %3391 = vmatpush.bf16.msra.mxu0 %v3382
        %3392 = vmatpush.bf16.msra.mxu0 %v3381
        %3393 = vmatpush.bf16.msra.mxu0 %v3380
        %3394 = vmatpush.bf16.msra.mxu0 %v3379
        %3395 = vmatpush.bf16.msra.mxu0 %v3378
        %3396 = vmatpush.bf16.msra.mxu0 %v3377
        %3397 = vmatpush.bf16.msra.mxu0 %v3376
        %3398 = vmatpush.bf16.msra.mxu0 %v3375
        %3399 = vmatmul.bf16.gmra.mxu0 %v3290
        %v3400 = vpop.f32.mrf.mxu0
        %v3401 = vadd.f32 0.0, %v3400
        %v3402 = vpop.f32.mrf.mxu0
        %v3403 = vadd.f32 0.0, %v3402
        %3404 = vmatmul.bf16.gmra.mxu0 %v3292
        %v3405 = vpop.f32.mrf.mxu0
        %v3406 = vadd.f32 0.0, %v3405
        %v3407 = vpop.f32.mrf.mxu0
        %v3408 = vadd.f32 0.0, %v3407
        %3409 = vmatmul.bf16.gmra.mxu0 %v3294
        %v3410 = vpop.f32.mrf.mxu0
        %v3411 = vadd.f32 0.0, %v3410
        %v3412 = vpop.f32.mrf.mxu0
        %v3413 = vadd.f32 0.0, %v3412
        %3414 = vmatmul.bf16.gmra.mxu0 %v3296
        %v3415 = vpop.f32.mrf.mxu0
        %v3416 = vadd.f32 0.0, %v3415
        %v3417 = vpop.f32.mrf.mxu0
        %v3418 = vadd.f32 0.0, %v3417
        %3419 = vmatmul.bf16.gmra.mxu0 %v3298
        %v3420 = vpop.f32.mrf.mxu0
        %v3421 = vadd.f32 0.0, %v3420
        %v3422 = vpop.f32.mrf.mxu0
        %v3423 = vadd.f32 0.0, %v3422
        %3424 = vmatmul.bf16.gmra.mxu0 %v3300
        %v3425 = vpop.f32.mrf.mxu0
        %v3426 = vadd.f32 0.0, %v3425
        %v3427 = vpop.f32.mrf.mxu0
        %v3428 = vadd.f32 0.0, %v3427
        %3429 = vmatmul.bf16.gmra.mxu0 %v3302
        %v3430 = vpop.f32.mrf.mxu0
        %v3431 = vadd.f32 0.0, %v3430
        %v3432 = vpop.f32.mrf.mxu0
        %v3433 = vadd.f32 0.0, %v3432
        %3434 = vmatmul.bf16.gmra.mxu0 %v3304
        %v3435 = vpop.f32.mrf.mxu0
        %v3436 = vadd.f32 0.0, %v3435
        %v3437 = vpop.f32.mrf.mxu0
        %v3438 = vadd.f32 0.0, %v3437
        %3439 = vmatmul.bf16.gmra.mxu0 %v3306
        %v3440 = vpop.f32.mrf.mxu0
        %v3441 = vadd.f32 0.0, %v3440
        %v3442 = vpop.f32.mrf.mxu0
        %v3443 = vadd.f32 0.0, %v3442
        %3444 = vmatmul.bf16.gmra.mxu0 %v3308
        %v3445 = vpop.f32.mrf.mxu0
        %v3446 = vadd.f32 0.0, %v3445
        %v3447 = vpop.f32.mrf.mxu0
        %v3448 = vadd.f32 0.0, %v3447
        %3449 = vmatmul.bf16.gmra.mxu0 %v3310
        %v3450 = vpop.f32.mrf.mxu0
        %v3451 = vadd.f32 0.0, %v3450
        %v3452 = vpop.f32.mrf.mxu0
        %v3453 = vadd.f32 0.0, %v3452
        %3454 = vmatmul.bf16.gmra.mxu0 %v3312
        %v3455 = vpop.f32.mrf.mxu0
        %v3456 = vadd.f32 0.0, %v3455
        %v3457 = vpop.f32.mrf.mxu0
        %v3458 = vadd.f32 0.0, %v3457
        %3459 = vmatmul.bf16.gmra.mxu0 %v3314
        %v3460 = vpop.f32.mrf.mxu0
        %v3461 = vadd.f32 0.0, %v3460
        %v3462 = vpop.f32.mrf.mxu0
        %v3463 = vadd.f32 0.0, %v3462
        %3464 = vmatmul.bf16.gmra.mxu0 %v3316
        %v3465 = vpop.f32.mrf.mxu0
        %v3466 = vadd.f32 0.0, %v3465
        %v3467 = vpop.f32.mrf.mxu0
        %v3468 = vadd.f32 0.0, %v3467
        %3469 = vmatmul.bf16.gmra.mxu0 %v3318
        %v3470 = vpop.f32.mrf.mxu0
        %v3471 = vadd.f32 0.0, %v3470
        %v3472 = vpop.f32.mrf.mxu0
        %v3473 = vadd.f32 0.0, %v3472
        %3474 = vmatmul.bf16.gmra.mxu0 %v3320
        %v3475 = vpop.f32.mrf.mxu0
        %v3476 = vadd.f32 0.0, %v3475
        %v3477 = vpop.f32.mrf.mxu0
        %v3478 = vadd.f32 0.0, %v3477
        %3479 = vmatmul.bf16.gmra.mxu0 %v3322
        %v3480 = vpop.f32.mrf.mxu0
        %v3481 = vadd.f32 0.0, %v3480
        %v3482 = vpop.f32.mrf.mxu0
        %v3483 = vadd.f32 0.0, %v3482
        %3484 = vmatmul.bf16.gmra.mxu0 %v3324
        %v3485 = vpop.f32.mrf.mxu0
        %v3486 = vadd.f32 0.0, %v3485
        %v3487 = vpop.f32.mrf.mxu0
        %v3488 = vadd.f32 0.0, %v3487
        %3489 = vdwg.mxu0
        %v3490 = vadd.f32 %v3105, %v3401
        %v3491 = vadd.f32 %v3106, %v3403
        %v3492 = vadd.f32 %v3107, %v3406
        %v3493 = vadd.f32 %v3108, %v3408
        %v3494 = vadd.f32 %v3109, %v3411
        %v3495 = vadd.f32 %v3110, %v3413
        %v3496 = vadd.f32 %v3111, %v3416
        %v3497 = vadd.f32 %v3112, %v3418
        %v3498 = vadd.f32 %v3113, %v3421
        %v3499 = vadd.f32 %v3114, %v3423
        %v3500 = vadd.f32 %v3115, %v3426
        %v3501 = vadd.f32 %v3116, %v3428
        %v3502 = vadd.f32 %v3117, %v3431
        %v3503 = vadd.f32 %v3118, %v3433
        %v3504 = vadd.f32 %v3119, %v3436
        %v3505 = vadd.f32 %v3120, %v3438
        %v3506 = vadd.f32 %v3121, %v3441
        %v3507 = vadd.f32 %v3122, %v3443
        %v3508 = vadd.f32 %v3123, %v3446
        %v3509 = vadd.f32 %v3124, %v3448
        %v3510 = vadd.f32 %v3125, %v3451
        %v3511 = vadd.f32 %v3126, %v3453
        %v3512 = vadd.f32 %v3127, %v3456
        %v3513 = vadd.f32 %v3128, %v3458
        %v3514 = vadd.f32 %v3129, %v3461
        %v3515 = vadd.f32 %v3130, %v3463
        %v3516 = vadd.f32 %v3131, %v3466
        %v3517 = vadd.f32 %v3132, %v3468
        %v3518 = vadd.f32 %v3133, %v3471
        %v3519 = vadd.f32 %v3134, %v3473
        %v3520 = vadd.f32 %v3135, %v3476
        %v3521 = vadd.f32 %v3136, %v3478
        %v3522 = vadd.f32 %v3137, %v3481
        %v3523 = vadd.f32 %v3138, %v3483
        %v3524 = vadd.f32 %v3139, %v3486
        %v3525 = vadd.f32 %v3140, %v3488
        %v3526 = vld [vmem:[#allocation2 + $0x98] sm:$0x3]
        %s3527 = scalar_lea.vmem [#allocation6], 256
        %v3528 = vld [vmem:[%s3527] sm:$0xf]
        %v3529 = vld [vmem:[%s3527 + $0x4] sm:$0xf]
        %v3530 = vld [vmem:[%s3527 + $0x8] sm:$0xf]
        %v3531 = vld [vmem:[%s3527 + $0xc] sm:$0xf]
        %v3532 = vld [vmem:[%s3527 + $0x10] sm:$0xf]
        %v3533 = vld [vmem:[%s3527 + $0x14] sm:$0xf]
        %v3534 = vld [vmem:[%s3527 + $0x18] sm:$0xf]
        %v3535 = vld [vmem:[%s3527 + $0x1c] sm:$0xf]
        %v3536 = vld [vmem:[%s3527 + $0x20] sm:$0xf]
        %v3537 = vld [vmem:[%s3527 + $0x24] sm:$0xf]
        %v3538 = vld [vmem:[%s3527 + $0x28] sm:$0xf]
        %v3539 = vld [vmem:[%s3527 + $0x2c] sm:$0xf]
        %v3540 = vld [vmem:[%s3527 + $0x30] sm:$0xf]
        %v3541 = vld [vmem:[%s3527 + $0x34] sm:$0xf]
        %v3542 = vld [vmem:[%s3527 + $0x38] sm:$0xf]
        %v3543 = vld [vmem:[%s3527 + $0x3c] sm:$0xf]
        %v3545 = vunpack.c.l.b16 %v3526
        %v3546 = vpack.c.b16 %v3545, %v3545
        %vm3547 = vsmask.f32 6400
        %v3549 = vshrl.u32 %v3269, 16
        %v3551 = vrot.slane %v3549, 1
        %v3552 = vshll.u32 %v3269, 16
        %v3554 = vrot.slane %v3552, 2
        %v3555 = vor.u32 %v3551, %v3554
        %v3557 = vshrl.u32 %v3270, 16
        %v3559 = vrot.slane %v3557, 1
        %v3560 = vshll.u32 %v3270, 16
        %v3562 = vrot.slane %v3560, 2
        %v3563 = vor.u32 %v3559, %v3562
        %v3564 = vsel %vm3547, %v3555, %v3563
        %v3566 = vshrl.u32 %v3271, 16
        %v3568 = vrot.slane %v3566, 1
        %v3569 = vshll.u32 %v3271, 16
        %v3571 = vrot.slane %v3569, 2
        %v3572 = vor.u32 %v3568, %v3571
        %v3573 = vsel %vm3547, %v3563, %v3572
        %v3575 = vshrl.u32 %v3272, 16
        %v3577 = vrot.slane %v3575, 1
        %v3578 = vshll.u32 %v3272, 16
        %v3580 = vrot.slane %v3578, 2
        %v3581 = vor.u32 %v3577, %v3580
        %v3582 = vsel %vm3547, %v3572, %v3581
        %v3584 = vshrl.u32 %v3273, 16
        %v3586 = vrot.slane %v3584, 1
        %v3587 = vshll.u32 %v3273, 16
        %v3589 = vrot.slane %v3587, 2
        %v3590 = vor.u32 %v3586, %v3589
        %v3591 = vsel %vm3547, %v3581, %v3590
        %v3593 = vshrl.u32 %v3274, 16
        %v3595 = vrot.slane %v3593, 1
        %v3596 = vshll.u32 %v3274, 16
        %v3598 = vrot.slane %v3596, 2
        %v3599 = vor.u32 %v3595, %v3598
        %v3600 = vsel %vm3547, %v3590, %v3599
        %v3602 = vshrl.u32 %v3275, 16
        %v3604 = vrot.slane %v3602, 1
        %v3605 = vshll.u32 %v3275, 16
        %v3607 = vrot.slane %v3605, 2
        %v3608 = vor.u32 %v3604, %v3607
        %v3609 = vsel %vm3547, %v3599, %v3608
        %v3611 = vshrl.u32 %v3276, 16
        %v3613 = vrot.slane %v3611, 1
        %v3614 = vshll.u32 %v3276, 16
        %v3616 = vrot.slane %v3614, 2
        %v3617 = vor.u32 %v3613, %v3616
        %v3618 = vsel %vm3547, %v3608, %v3617
        %v3620 = vshrl.u32 %v3277, 16
        %v3622 = vrot.slane %v3620, 1
        %v3623 = vshll.u32 %v3277, 16
        %v3625 = vrot.slane %v3623, 2
        %v3626 = vor.u32 %v3622, %v3625
        %v3627 = vsel %vm3547, %v3617, %v3626
        %v3629 = vshrl.u32 %v3278, 16
        %v3631 = vrot.slane %v3629, 1
        %v3632 = vshll.u32 %v3278, 16
        %v3634 = vrot.slane %v3632, 2
        %v3635 = vor.u32 %v3631, %v3634
        %v3636 = vsel %vm3547, %v3626, %v3635
        %v3638 = vshrl.u32 %v3279, 16
        %v3640 = vrot.slane %v3638, 1
        %v3641 = vshll.u32 %v3279, 16
        %v3643 = vrot.slane %v3641, 2
        %v3644 = vor.u32 %v3640, %v3643
        %v3645 = vsel %vm3547, %v3635, %v3644
        %v3647 = vshrl.u32 %v3280, 16
        %v3649 = vrot.slane %v3647, 1
        %v3650 = vshll.u32 %v3280, 16
        %v3652 = vrot.slane %v3650, 2
        %v3653 = vor.u32 %v3649, %v3652
        %v3654 = vsel %vm3547, %v3644, %v3653
        %v3656 = vshrl.u32 %v3281, 16
        %v3658 = vrot.slane %v3656, 1
        %v3659 = vshll.u32 %v3281, 16
        %v3661 = vrot.slane %v3659, 2
        %v3662 = vor.u32 %v3658, %v3661
        %v3663 = vsel %vm3547, %v3653, %v3662
        %v3665 = vshrl.u32 %v3282, 16
        %v3667 = vrot.slane %v3665, 1
        %v3668 = vshll.u32 %v3282, 16
        %v3670 = vrot.slane %v3668, 2
        %v3671 = vor.u32 %v3667, %v3670
        %v3672 = vsel %vm3547, %v3662, %v3671
        %v3674 = vshrl.u32 %v3283, 16
        %v3676 = vrot.slane %v3674, 1
        %v3677 = vshll.u32 %v3283, 16
        %v3679 = vrot.slane %v3677, 2
        %v3680 = vor.u32 %v3676, %v3679
        %v3681 = vsel %vm3547, %v3671, %v3680
        %v3683 = vshrl.u32 %v3284, 16
        %v3685 = vrot.slane %v3683, 1
        %v3686 = vshll.u32 %v3284, 16
        %v3688 = vrot.slane %v3686, 2
        %v3689 = vor.u32 %v3685, %v3688
        %v3690 = vsel %vm3547, %v3680, %v3689
        %v3692 = vshrl.u32 %v3285, 16
        %v3694 = vrot.slane %v3692, 1
        %v3695 = vshll.u32 %v3285, 16
        %v3697 = vrot.slane %v3695, 2
        %v3698 = vor.u32 %v3694, %v3697
        %v3699 = vsel %vm3547, %v3689, %v3698
        %v3701 = vshrl.u32 %v3286, 16
        %v3703 = vrot.slane %v3701, 1
        %v3704 = vshll.u32 %v3286, 16
        %v3706 = vrot.slane %v3704, 2
        %v3707 = vor.u32 %v3703, %v3706
        %v3708 = vsel %vm3547, %v3698, %v3707
        %v3710 = vshrl.u32 %v3546, 16
        %v3712 = vrot.slane %v3710, 1
        %v3713 = vshll.u32 %v3546, 16
        %v3715 = vrot.slane %v3713, 2
        %v3716 = vor.u32 %v3712, %v3715
        %v3717 = vsel %vm3547, %v3707, %v3716
        %v3752 = vunpack.c.l.b16 %v3528
        %v3753 = vunpack.c.l.b16 %v3529
        %v3754 = vunpack.c.l.b16 %v3530
        %v3755 = vunpack.c.l.b16 %v3531
        %v3756 = vunpack.c.l.b16 %v3532
        %v3757 = vunpack.c.l.b16 %v3533
        %v3758 = vunpack.c.l.b16 %v3534
        %v3759 = vunpack.c.l.b16 %v3535
        %v3760 = vunpack.c.l.b16 %v3536
        %v3761 = vunpack.c.l.b16 %v3537
        %v3762 = vunpack.c.l.b16 %v3538
        %v3763 = vunpack.c.l.b16 %v3539
        %v3764 = vunpack.c.l.b16 %v3540
        %v3765 = vunpack.c.l.b16 %v3541
        %v3766 = vunpack.c.l.b16 %v3542
        %v3767 = vunpack.c.l.b16 %v3543
        %v3768 = vpack.c.b16 %v3753, %v3752
        %v3769 = vpack.c.b16 %v3755, %v3754
        %v3770 = vpack.c.b16 %v3757, %v3756
        %v3771 = vpack.c.b16 %v3759, %v3758
        %v3772 = vpack.c.b16 %v3761, %v3760
        %v3773 = vpack.c.b16 %v3763, %v3762
        %v3774 = vpack.c.b16 %v3765, %v3764
        %v3775 = vpack.c.b16 %v3767, %v3766
        %3784 = vmatpush.bf16.msra.mxu0 %v3775
        %3785 = vmatpush.bf16.msra.mxu0 %v3774
        %3786 = vmatpush.bf16.msra.mxu0 %v3773
        %3787 = vmatpush.bf16.msra.mxu0 %v3772
        %3788 = vmatpush.bf16.msra.mxu0 %v3771
        %3789 = vmatpush.bf16.msra.mxu0 %v3770
        %3790 = vmatpush.bf16.msra.mxu0 %v3769
        %3791 = vmatpush.bf16.msra.mxu0 %v3768
        %3792 = vmatmul.bf16.gmra.mxu0 %v3564
        %v3793 = vpop.f32.mrf.mxu0
        %v3794 = vadd.f32 0.0, %v3793
        %v3795 = vpop.f32.mrf.mxu0
        %v3796 = vadd.f32 0.0, %v3795
        %3797 = vmatmul.bf16.gmra.mxu0 %v3573
        %v3798 = vpop.f32.mrf.mxu0
        %v3799 = vadd.f32 0.0, %v3798
        %v3800 = vpop.f32.mrf.mxu0
        %v3801 = vadd.f32 0.0, %v3800
        %3802 = vmatmul.bf16.gmra.mxu0 %v3582
        %v3803 = vpop.f32.mrf.mxu0
        %v3804 = vadd.f32 0.0, %v3803
        %v3805 = vpop.f32.mrf.mxu0
        %v3806 = vadd.f32 0.0, %v3805
        %3807 = vmatmul.bf16.gmra.mxu0 %v3591
        %v3808 = vpop.f32.mrf.mxu0
        %v3809 = vadd.f32 0.0, %v3808
        %v3810 = vpop.f32.mrf.mxu0
        %v3811 = vadd.f32 0.0, %v3810
        %3812 = vmatmul.bf16.gmra.mxu0 %v3600
        %v3813 = vpop.f32.mrf.mxu0
        %v3814 = vadd.f32 0.0, %v3813
        %v3815 = vpop.f32.mrf.mxu0
        %v3816 = vadd.f32 0.0, %v3815
        %3817 = vmatmul.bf16.gmra.mxu0 %v3609
        %v3818 = vpop.f32.mrf.mxu0
        %v3819 = vadd.f32 0.0, %v3818
        %v3820 = vpop.f32.mrf.mxu0
        %v3821 = vadd.f32 0.0, %v3820
        %3822 = vmatmul.bf16.gmra.mxu0 %v3618
        %v3823 = vpop.f32.mrf.mxu0
        %v3824 = vadd.f32 0.0, %v3823
        %v3825 = vpop.f32.mrf.mxu0
        %v3826 = vadd.f32 0.0, %v3825
        %3827 = vmatmul.bf16.gmra.mxu0 %v3627
        %v3828 = vpop.f32.mrf.mxu0
        %v3829 = vadd.f32 0.0, %v3828
        %v3830 = vpop.f32.mrf.mxu0
        %v3831 = vadd.f32 0.0, %v3830
        %3832 = vmatmul.bf16.gmra.mxu0 %v3636
        %v3833 = vpop.f32.mrf.mxu0
        %v3834 = vadd.f32 0.0, %v3833
        %v3835 = vpop.f32.mrf.mxu0
        %v3836 = vadd.f32 0.0, %v3835
        %3837 = vmatmul.bf16.gmra.mxu0 %v3645
        %v3838 = vpop.f32.mrf.mxu0
        %v3839 = vadd.f32 0.0, %v3838
        %v3840 = vpop.f32.mrf.mxu0
        %v3841 = vadd.f32 0.0, %v3840
        %3842 = vmatmul.bf16.gmra.mxu0 %v3654
        %v3843 = vpop.f32.mrf.mxu0
        %v3844 = vadd.f32 0.0, %v3843
        %v3845 = vpop.f32.mrf.mxu0
        %v3846 = vadd.f32 0.0, %v3845
        %3847 = vmatmul.bf16.gmra.mxu0 %v3663
        %v3848 = vpop.f32.mrf.mxu0
        %v3849 = vadd.f32 0.0, %v3848
        %v3850 = vpop.f32.mrf.mxu0
        %v3851 = vadd.f32 0.0, %v3850
        %3852 = vmatmul.bf16.gmra.mxu0 %v3672
        %v3853 = vpop.f32.mrf.mxu0
        %v3854 = vadd.f32 0.0, %v3853
        %v3855 = vpop.f32.mrf.mxu0
        %v3856 = vadd.f32 0.0, %v3855
        %3857 = vmatmul.bf16.gmra.mxu0 %v3681
        %v3858 = vpop.f32.mrf.mxu0
        %v3859 = vadd.f32 0.0, %v3858
        %v3860 = vpop.f32.mrf.mxu0
        %v3861 = vadd.f32 0.0, %v3860
        %3862 = vmatmul.bf16.gmra.mxu0 %v3690
        %v3863 = vpop.f32.mrf.mxu0
        %v3864 = vadd.f32 0.0, %v3863
        %v3865 = vpop.f32.mrf.mxu0
        %v3866 = vadd.f32 0.0, %v3865
        %3867 = vmatmul.bf16.gmra.mxu0 %v3699
        %v3868 = vpop.f32.mrf.mxu0
        %v3869 = vadd.f32 0.0, %v3868
        %v3870 = vpop.f32.mrf.mxu0
        %v3871 = vadd.f32 0.0, %v3870
        %3872 = vmatmul.bf16.gmra.mxu0 %v3708
        %v3873 = vpop.f32.mrf.mxu0
        %v3874 = vadd.f32 0.0, %v3873
        %v3875 = vpop.f32.mrf.mxu0
        %v3876 = vadd.f32 0.0, %v3875
        %3877 = vmatmul.bf16.gmra.mxu0 %v3717
        %v3878 = vpop.f32.mrf.mxu0
        %v3879 = vadd.f32 0.0, %v3878
        %v3880 = vpop.f32.mrf.mxu0
        %v3881 = vadd.f32 0.0, %v3880
        %3882 = vdwg.mxu0
        %v3883 = vadd.f32 %v3490, %v3794
        %v3884 = vadd.f32 %v3491, %v3796
        %v3885 = vadd.f32 %v3492, %v3799
        %v3886 = vadd.f32 %v3493, %v3801
        %v3887 = vadd.f32 %v3494, %v3804
        %v3888 = vadd.f32 %v3495, %v3806
        %v3889 = vadd.f32 %v3496, %v3809
        %v3890 = vadd.f32 %v3497, %v3811
        %v3891 = vadd.f32 %v3498, %v3814
        %v3892 = vadd.f32 %v3499, %v3816
        %v3893 = vadd.f32 %v3500, %v3819
        %v3894 = vadd.f32 %v3501, %v3821
        %v3895 = vadd.f32 %v3502, %v3824
        %v3896 = vadd.f32 %v3503, %v3826
        %v3897 = vadd.f32 %v3504, %v3829
        %v3898 = vadd.f32 %v3505, %v3831
        %v3899 = vadd.f32 %v3506, %v3834
        %v3900 = vadd.f32 %v3507, %v3836
        %v3901 = vadd.f32 %v3508, %v3839
        %v3902 = vadd.f32 %v3509, %v3841
        %v3903 = vadd.f32 %v3510, %v3844
        %v3904 = vadd.f32 %v3511, %v3846
        %v3905 = vadd.f32 %v3512, %v3849
        %v3906 = vadd.f32 %v3513, %v3851
        %v3907 = vadd.f32 %v3514, %v3854
        %v3908 = vadd.f32 %v3515, %v3856
        %v3909 = vadd.f32 %v3516, %v3859
        %v3910 = vadd.f32 %v3517, %v3861
        %v3911 = vadd.f32 %v3518, %v3864
        %v3912 = vadd.f32 %v3519, %v3866
        %v3913 = vadd.f32 %v3520, %v3869
        %v3914 = vadd.f32 %v3521, %v3871
        %v3915 = vadd.f32 %v3522, %v3874
        %v3916 = vadd.f32 %v3523, %v3876
        %v3917 = vadd.f32 %v3524, %v3879
        %v3918 = vadd.f32 %v3525, %v3881
        %v3919 = vld [vmem:[#allocation2 + $0x8] sm:$0xc]
        %s3920 = scalar_lea.vmem [#allocation6], 320
        %v3921 = vld [vmem:[%s3920] sm:$0xf]
        %v3922 = vld [vmem:[%s3920 + $0x4] sm:$0xf]
        %v3923 = vld [vmem:[%s3920 + $0x8] sm:$0xf]
        %v3924 = vld [vmem:[%s3920 + $0xc] sm:$0xf]
        %v3925 = vld [vmem:[%s3920 + $0x10] sm:$0xf]
        %v3926 = vld [vmem:[%s3920 + $0x14] sm:$0xf]
        %v3927 = vld [vmem:[%s3920 + $0x18] sm:$0xf]
        %v3928 = vld [vmem:[%s3920 + $0x1c] sm:$0xf]
        %v3929 = vld [vmem:[%s3920 + $0x20] sm:$0xf]
        %v3930 = vld [vmem:[%s3920 + $0x24] sm:$0xf]
        %v3931 = vld [vmem:[%s3920 + $0x28] sm:$0xf]
        %v3932 = vld [vmem:[%s3920 + $0x2c] sm:$0xf]
        %v3933 = vld [vmem:[%s3920 + $0x30] sm:$0xf]
        %v3934 = vld [vmem:[%s3920 + $0x34] sm:$0xf]
        %v3935 = vld [vmem:[%s3920 + $0x38] sm:$0xf]
        %v3936 = vld [vmem:[%s3920 + $0x3c] sm:$0xf]
        %v3938 = vunpack.c.l.b16 %v3919
        %v3939 = vpack.c.b16 %v3233, %v3938
        %vm3940 = vcmask 1045504
        %v3941 = vrot.slane %v3939, 2
        %v3942 = vrot.slane %v3270, 2
        %v3943 = vsel %vm3940, %v3941, %v3942
        %v3944 = vrot.slane %v3271, 2
        %v3945 = vsel %vm3940, %v3942, %v3944
        %v3946 = vrot.slane %v3272, 2
        %v3947 = vsel %vm3940, %v3944, %v3946
        %v3948 = vrot.slane %v3273, 2
        %v3949 = vsel %vm3940, %v3946, %v3948
        %v3950 = vrot.slane %v3274, 2
        %v3951 = vsel %vm3940, %v3948, %v3950
        %v3952 = vrot.slane %v3275, 2
        %v3953 = vsel %vm3940, %v3950, %v3952
        %v3954 = vrot.slane %v3276, 2
        %v3955 = vsel %vm3940, %v3952, %v3954
        %v3956 = vrot.slane %v3277, 2
        %v3957 = vsel %vm3940, %v3954, %v3956
        %v3958 = vrot.slane %v3278, 2
        %v3959 = vsel %vm3940, %v3956, %v3958
        %v3960 = vrot.slane %v3279, 2
        %v3961 = vsel %vm3940, %v3958, %v3960
        %v3962 = vrot.slane %v3280, 2
        %v3963 = vsel %vm3940, %v3960, %v3962
        %v3964 = vrot.slane %v3281, 2
        %v3965 = vsel %vm3940, %v3962, %v3964
        %v3966 = vrot.slane %v3282, 2
        %v3967 = vsel %vm3940, %v3964, %v3966
        %v3968 = vrot.slane %v3283, 2
        %v3969 = vsel %vm3940, %v3966, %v3968
        %v3970 = vrot.slane %v3284, 2
        %v3971 = vsel %vm3940, %v3968, %v3970
        %v3972 = vrot.slane %v3285, 2
        %v3973 = vsel %vm3940, %v3970, %v3972
        %v3974 = vrot.slane %v3286, 2
        %v3975 = vsel %vm3940, %v3972, %v3974
        %v3976 = vrot.slane %v3546, 2
        %v3977 = vsel %vm3940, %v3974, %v3976
        %v4012 = vunpack.c.l.b16 %v3921
        %v4013 = vunpack.c.l.b16 %v3922
        %v4014 = vunpack.c.l.b16 %v3923
        %v4015 = vunpack.c.l.b16 %v3924
        %v4016 = vunpack.c.l.b16 %v3925
        %v4017 = vunpack.c.l.b16 %v3926
        %v4018 = vunpack.c.l.b16 %v3927
        %v4019 = vunpack.c.l.b16 %v3928
        %v4020 = vunpack.c.l.b16 %v3929
        %v4021 = vunpack.c.l.b16 %v3930
        %v4022 = vunpack.c.l.b16 %v3931
        %v4023 = vunpack.c.l.b16 %v3932
        %v4024 = vunpack.c.l.b16 %v3933
        %v4025 = vunpack.c.l.b16 %v3934
        %v4026 = vunpack.c.l.b16 %v3935
        %v4027 = vunpack.c.l.b16 %v3936
        %v4028 = vpack.c.b16 %v4013, %v4012
        %v4029 = vpack.c.b16 %v4015, %v4014
        %v4030 = vpack.c.b16 %v4017, %v4016
        %v4031 = vpack.c.b16 %v4019, %v4018
        %v4032 = vpack.c.b16 %v4021, %v4020
        %v4033 = vpack.c.b16 %v4023, %v4022
        %v4034 = vpack.c.b16 %v4025, %v4024
        %v4035 = vpack.c.b16 %v4027, %v4026
        %4044 = vmatpush.bf16.msra.mxu0 %v4035
        %4045 = vmatpush.bf16.msra.mxu0 %v4034
        %4046 = vmatpush.bf16.msra.mxu0 %v4033
        %4047 = vmatpush.bf16.msra.mxu0 %v4032
        %4048 = vmatpush.bf16.msra.mxu0 %v4031
        %4049 = vmatpush.bf16.msra.mxu0 %v4030
        %4050 = vmatpush.bf16.msra.mxu0 %v4029
        %4051 = vmatpush.bf16.msra.mxu0 %v4028
        %4052 = vmatmul.bf16.gmra.mxu0 %v3943
        %v4053 = vpop.f32.mrf.mxu0
        %v4054 = vadd.f32 0.0, %v4053
        %v4055 = vpop.f32.mrf.mxu0
        %v4056 = vadd.f32 0.0, %v4055
        %4057 = vmatmul.bf16.gmra.mxu0 %v3945
        %v4058 = vpop.f32.mrf.mxu0
        %v4059 = vadd.f32 0.0, %v4058
        %v4060 = vpop.f32.mrf.mxu0
        %v4061 = vadd.f32 0.0, %v4060
        %4062 = vmatmul.bf16.gmra.mxu0 %v3947
        %v4063 = vpop.f32.mrf.mxu0
        %v4064 = vadd.f32 0.0, %v4063
        %v4065 = vpop.f32.mrf.mxu0
        %v4066 = vadd.f32 0.0, %v4065
        %4067 = vmatmul.bf16.gmra.mxu0 %v3949
        %v4068 = vpop.f32.mrf.mxu0
        %v4069 = vadd.f32 0.0, %v4068
        %v4070 = vpop.f32.mrf.mxu0
        %v4071 = vadd.f32 0.0, %v4070
        %4072 = vmatmul.bf16.gmra.mxu0 %v3951
        %v4073 = vpop.f32.mrf.mxu0
        %v4074 = vadd.f32 0.0, %v4073
        %v4075 = vpop.f32.mrf.mxu0
        %v4076 = vadd.f32 0.0, %v4075
        %4077 = vmatmul.bf16.gmra.mxu0 %v3953
        %v4078 = vpop.f32.mrf.mxu0
        %v4079 = vadd.f32 0.0, %v4078
        %v4080 = vpop.f32.mrf.mxu0
        %v4081 = vadd.f32 0.0, %v4080
        %4082 = vmatmul.bf16.gmra.mxu0 %v3955
        %v4083 = vpop.f32.mrf.mxu0
        %v4084 = vadd.f32 0.0, %v4083
        %v4085 = vpop.f32.mrf.mxu0
        %v4086 = vadd.f32 0.0, %v4085
        %4087 = vmatmul.bf16.gmra.mxu0 %v3957
        %v4088 = vpop.f32.mrf.mxu0
        %v4089 = vadd.f32 0.0, %v4088
        %v4090 = vpop.f32.mrf.mxu0
        %v4091 = vadd.f32 0.0, %v4090
        %4092 = vmatmul.bf16.gmra.mxu0 %v3959
        %v4093 = vpop.f32.mrf.mxu0
        %v4094 = vadd.f32 0.0, %v4093
        %v4095 = vpop.f32.mrf.mxu0
        %v4096 = vadd.f32 0.0, %v4095
        %4097 = vmatmul.bf16.gmra.mxu0 %v3961
        %v4098 = vpop.f32.mrf.mxu0
        %v4099 = vadd.f32 0.0, %v4098
        %v4100 = vpop.f32.mrf.mxu0
        %v4101 = vadd.f32 0.0, %v4100
        %4102 = vmatmul.bf16.gmra.mxu0 %v3963
        %v4103 = vpop.f32.mrf.mxu0
        %v4104 = vadd.f32 0.0, %v4103
        %v4105 = vpop.f32.mrf.mxu0
        %v4106 = vadd.f32 0.0, %v4105
        %4107 = vmatmul.bf16.gmra.mxu0 %v3965
        %v4108 = vpop.f32.mrf.mxu0
        %v4109 = vadd.f32 0.0, %v4108
        %v4110 = vpop.f32.mrf.mxu0
        %v4111 = vadd.f32 0.0, %v4110
        %4112 = vmatmul.bf16.gmra.mxu0 %v3967
        %v4113 = vpop.f32.mrf.mxu0
        %v4114 = vadd.f32 0.0, %v4113
        %v4115 = vpop.f32.mrf.mxu0
        %v4116 = vadd.f32 0.0, %v4115
        %4117 = vmatmul.bf16.gmra.mxu0 %v3969
        %v4118 = vpop.f32.mrf.mxu0
        %v4119 = vadd.f32 0.0, %v4118
        %v4120 = vpop.f32.mrf.mxu0
        %v4121 = vadd.f32 0.0, %v4120
        %4122 = vmatmul.bf16.gmra.mxu0 %v3971
        %v4123 = vpop.f32.mrf.mxu0
        %v4124 = vadd.f32 0.0, %v4123
        %v4125 = vpop.f32.mrf.mxu0
        %v4126 = vadd.f32 0.0, %v4125
        %4127 = vmatmul.bf16.gmra.mxu0 %v3973
        %v4128 = vpop.f32.mrf.mxu0
        %v4129 = vadd.f32 0.0, %v4128
        %v4130 = vpop.f32.mrf.mxu0
        %v4131 = vadd.f32 0.0, %v4130
        %4132 = vmatmul.bf16.gmra.mxu0 %v3975
        %v4133 = vpop.f32.mrf.mxu0
        %v4134 = vadd.f32 0.0, %v4133
        %v4135 = vpop.f32.mrf.mxu0
        %v4136 = vadd.f32 0.0, %v4135
        %4137 = vmatmul.bf16.gmra.mxu0 %v3977
        %v4138 = vpop.f32.mrf.mxu0
        %v4139 = vadd.f32 0.0, %v4138
        %v4140 = vpop.f32.mrf.mxu0
        %v4141 = vadd.f32 0.0, %v4140
        %4142 = vdwg.mxu0
        %v4143 = vadd.f32 %v3883, %v4054
        %v4144 = vadd.f32 %v3884, %v4056
        %v4145 = vadd.f32 %v3885, %v4059
        %v4146 = vadd.f32 %v3886, %v4061
        %v4147 = vadd.f32 %v3887, %v4064
        %v4148 = vadd.f32 %v3888, %v4066
        %v4149 = vadd.f32 %v3889, %v4069
        %v4150 = vadd.f32 %v3890, %v4071
        %v4151 = vadd.f32 %v3891, %v4074
        %v4152 = vadd.f32 %v3892, %v4076
        %v4153 = vadd.f32 %v3893, %v4079
        %v4154 = vadd.f32 %v3894, %v4081
        %v4155 = vadd.f32 %v3895, %v4084
        %v4156 = vadd.f32 %v3896, %v4086
        %v4157 = vadd.f32 %v3897, %v4089
        %v4158 = vadd.f32 %v3898, %v4091
        %v4159 = vadd.f32 %v3899, %v4094
        %v4160 = vadd.f32 %v3900, %v4096
        %v4161 = vadd.f32 %v3901, %v4099
        %v4162 = vadd.f32 %v3902, %v4101
        %v4163 = vadd.f32 %v3903, %v4104
        %v4164 = vadd.f32 %v3904, %v4106
        %v4165 = vadd.f32 %v3905, %v4109
        %v4166 = vadd.f32 %v3906, %v4111
        %v4167 = vadd.f32 %v3907, %v4114
        %v4168 = vadd.f32 %v3908, %v4116
        %v4169 = vadd.f32 %v3909, %v4119
        %v4170 = vadd.f32 %v3910, %v4121
        %v4171 = vadd.f32 %v3911, %v4124
        %v4172 = vadd.f32 %v3912, %v4126
        %v4173 = vadd.f32 %v3913, %v4129
        %v4174 = vadd.f32 %v3914, %v4131
        %v4175 = vadd.f32 %v3915, %v4134
        %v4176 = vadd.f32 %v3916, %v4136
        %v4177 = vadd.f32 %v3917, %v4139
        %v4178 = vadd.f32 %v3918, %v4141
        %v4179 = vld [vmem:[#allocation2 + $0x10] sm:$0xc]
        %v4180 = vld [vmem:[#allocation2 + $0x14] sm:$0xf]
        %v4181 = vld [vmem:[#allocation2 + $0x18] sm:$0xf]
        %v4182 = vld [vmem:[#allocation2 + $0x1c] sm:$0xf]
        %v4183 = vld [vmem:[#allocation2 + $0x20] sm:$0xf]
        %v4184 = vld [vmem:[#allocation2 + $0x24] sm:$0xf]
        %v4185 = vld [vmem:[#allocation2 + $0x28] sm:$0xf]
        %v4186 = vld [vmem:[#allocation2 + $0x2c] sm:$0xf]
        %v4187 = vld [vmem:[#allocation2 + $0x30] sm:$0xf]
        %v4188 = vld [vmem:[#allocation2 + $0x34] sm:$0xf]
        %v4189 = vld [vmem:[#allocation2 + $0x38] sm:$0xf]
        %v4190 = vld [vmem:[#allocation2 + $0x3c] sm:$0xf]
        %v4191 = vld [vmem:[#allocation2 + $0x40] sm:$0xf]
        %v4192 = vld [vmem:[#allocation2 + $0x44] sm:$0xf]
        %v4193 = vld [vmem:[#allocation2 + $0x48] sm:$0xf]
        %v4194 = vld [vmem:[#allocation2 + $0x4c] sm:$0xf]
        %v4195 = vld [vmem:[#allocation2 + $0x50] sm:$0xf]
        %v4196 = vld [vmem:[#allocation2 + $0x54] sm:$0xf]
        %v4197 = vld [vmem:[#allocation2 + $0x58] sm:$0xf]
        %v4198 = vld [vmem:[#allocation2 + $0x5c] sm:$0xf]
        %v4199 = vld [vmem:[#allocation2 + $0x60] sm:$0xf]
        %v4200 = vld [vmem:[#allocation2 + $0x64] sm:$0xf]
        %v4201 = vld [vmem:[#allocation2 + $0x68] sm:$0xf]
        %v4202 = vld [vmem:[#allocation2 + $0x6c] sm:$0xf]
        %v4203 = vld [vmem:[#allocation2 + $0x70] sm:$0xf]
        %v4204 = vld [vmem:[#allocation2 + $0x74] sm:$0xf]
        %v4205 = vld [vmem:[#allocation2 + $0x78] sm:$0xf]
        %v4206 = vld [vmem:[#allocation2 + $0x7c] sm:$0xf]
        %v4207 = vld [vmem:[#allocation2 + $0x80] sm:$0xf]
        %v4208 = vld [vmem:[#allocation2 + $0x84] sm:$0xf]
        %v4209 = vld [vmem:[#allocation2 + $0x88] sm:$0xf]
        %v4210 = vld [vmem:[#allocation2 + $0x8c] sm:$0xf]
        %v4211 = vld [vmem:[#allocation2 + $0x90] sm:$0xf]
        %v4212 = vld [vmem:[#allocation2 + $0x94] sm:$0xf]
        %v4213 = vld [vmem:[#allocation2 + $0x98] sm:$0xf]
        %v4214 = vld [vmem:[#allocation2 + $0x9c] sm:$0xf]
        %v4215 = vld [vmem:[#allocation2 + $0xa0] sm:$0x3]
        %s4216 = scalar_lea.vmem [#allocation6], 384
        %v4217 = vld [vmem:[%s4216] sm:$0xf]
        %v4218 = vld [vmem:[%s4216 + $0x4] sm:$0xf]
        %v4219 = vld [vmem:[%s4216 + $0x8] sm:$0xf]
        %v4220 = vld [vmem:[%s4216 + $0xc] sm:$0xf]
        %v4221 = vld [vmem:[%s4216 + $0x10] sm:$0xf]
        %v4222 = vld [vmem:[%s4216 + $0x14] sm:$0xf]
        %v4223 = vld [vmem:[%s4216 + $0x18] sm:$0xf]
        %v4224 = vld [vmem:[%s4216 + $0x1c] sm:$0xf]
        %v4225 = vld [vmem:[%s4216 + $0x20] sm:$0xf]
        %v4226 = vld [vmem:[%s4216 + $0x24] sm:$0xf]
        %v4227 = vld [vmem:[%s4216 + $0x28] sm:$0xf]
        %v4228 = vld [vmem:[%s4216 + $0x2c] sm:$0xf]
        %v4229 = vld [vmem:[%s4216 + $0x30] sm:$0xf]
        %v4230 = vld [vmem:[%s4216 + $0x34] sm:$0xf]
        %v4231 = vld [vmem:[%s4216 + $0x38] sm:$0xf]
        %v4232 = vld [vmem:[%s4216 + $0x3c] sm:$0xf]
        %v4270 = vunpack.c.l.b16 %v4179
        %v4271 = vunpack.c.l.b16 %v4180
        %v4272 = vunpack.c.l.b16 %v4181
        %v4273 = vunpack.c.l.b16 %v4182
        %v4274 = vunpack.c.l.b16 %v4183
        %v4275 = vunpack.c.l.b16 %v4184
        %v4276 = vunpack.c.l.b16 %v4185
        %v4277 = vunpack.c.l.b16 %v4186
        %v4278 = vunpack.c.l.b16 %v4187
        %v4279 = vunpack.c.l.b16 %v4188
        %v4280 = vunpack.c.l.b16 %v4189
        %v4281 = vunpack.c.l.b16 %v4190
        %v4282 = vunpack.c.l.b16 %v4191
        %v4283 = vunpack.c.l.b16 %v4192
        %v4284 = vunpack.c.l.b16 %v4193
        %v4285 = vunpack.c.l.b16 %v4194
        %v4286 = vunpack.c.l.b16 %v4195
        %v4287 = vunpack.c.l.b16 %v4196
        %v4288 = vunpack.c.l.b16 %v4197
        %v4289 = vunpack.c.l.b16 %v4198
        %v4290 = vunpack.c.l.b16 %v4199
        %v4291 = vunpack.c.l.b16 %v4200
        %v4292 = vunpack.c.l.b16 %v4201
        %v4293 = vunpack.c.l.b16 %v4202
        %v4294 = vunpack.c.l.b16 %v4203
        %v4295 = vunpack.c.l.b16 %v4204
        %v4296 = vunpack.c.l.b16 %v4205
        %v4297 = vunpack.c.l.b16 %v4206
        %v4298 = vunpack.c.l.b16 %v4207
        %v4299 = vunpack.c.l.b16 %v4208
        %v4300 = vunpack.c.l.b16 %v4209
        %v4301 = vunpack.c.l.b16 %v4210
        %v4302 = vunpack.c.l.b16 %v4211
        %v4303 = vunpack.c.l.b16 %v4212
        %v4304 = vunpack.c.l.b16 %v4213
        %v4305 = vunpack.c.l.b16 %v4214
        %v4306 = vunpack.c.l.b16 %v4215
        %v4307 = vpack.c.b16 %v4271, %v4270
        %v4308 = vpack.c.b16 %v4273, %v4272
        %v4309 = vpack.c.b16 %v4275, %v4274
        %v4310 = vpack.c.b16 %v4277, %v4276
        %v4311 = vpack.c.b16 %v4279, %v4278
        %v4312 = vpack.c.b16 %v4281, %v4280
        %v4313 = vpack.c.b16 %v4283, %v4282
        %v4314 = vpack.c.b16 %v4285, %v4284
        %v4315 = vpack.c.b16 %v4287, %v4286
        %v4316 = vpack.c.b16 %v4289, %v4288
        %v4317 = vpack.c.b16 %v4291, %v4290
        %v4318 = vpack.c.b16 %v4293, %v4292
        %v4319 = vpack.c.b16 %v4295, %v4294
        %v4320 = vpack.c.b16 %v4297, %v4296
        %v4321 = vpack.c.b16 %v4299, %v4298
        %v4322 = vpack.c.b16 %v4301, %v4300
        %v4323 = vpack.c.b16 %v4303, %v4302
        %v4324 = vpack.c.b16 %v4305, %v4304
        %v4325 = vpack.c.b16 %v4306, %v4306
        %v4326 = vrot.slane %v4307, 2
        %v4327 = vrot.slane %v4308, 2
        %v4328 = vsel %vm3940, %v4326, %v4327
        %v4329 = vrot.slane %v4309, 2
        %v4330 = vsel %vm3940, %v4327, %v4329
        %v4331 = vrot.slane %v4310, 2
        %v4332 = vsel %vm3940, %v4329, %v4331
        %v4333 = vrot.slane %v4311, 2
        %v4334 = vsel %vm3940, %v4331, %v4333
        %v4335 = vrot.slane %v4312, 2
        %v4336 = vsel %vm3940, %v4333, %v4335
        %v4337 = vrot.slane %v4313, 2
        %v4338 = vsel %vm3940, %v4335, %v4337
        %v4339 = vrot.slane %v4314, 2
        %v4340 = vsel %vm3940, %v4337, %v4339
        %v4341 = vrot.slane %v4315, 2
        %v4342 = vsel %vm3940, %v4339, %v4341
        %v4343 = vrot.slane %v4316, 2
        %v4344 = vsel %vm3940, %v4341, %v4343
        %v4345 = vrot.slane %v4317, 2
        %v4346 = vsel %vm3940, %v4343, %v4345
        %v4347 = vrot.slane %v4318, 2
        %v4348 = vsel %vm3940, %v4345, %v4347
        %v4349 = vrot.slane %v4319, 2
        %v4350 = vsel %vm3940, %v4347, %v4349
        %v4351 = vrot.slane %v4320, 2
        %v4352 = vsel %vm3940, %v4349, %v4351
        %v4353 = vrot.slane %v4321, 2
        %v4354 = vsel %vm3940, %v4351, %v4353
        %v4355 = vrot.slane %v4322, 2
        %v4356 = vsel %vm3940, %v4353, %v4355
        %v4357 = vrot.slane %v4323, 2
        %v4358 = vsel %vm3940, %v4355, %v4357
        %v4359 = vrot.slane %v4324, 2
        %v4360 = vsel %vm3940, %v4357, %v4359
        %v4361 = vrot.slane %v4325, 2
        %v4362 = vsel %vm3940, %v4359, %v4361
        %v4397 = vunpack.c.l.b16 %v4217
        %v4398 = vunpack.c.l.b16 %v4218
        %v4399 = vunpack.c.l.b16 %v4219
        %v4400 = vunpack.c.l.b16 %v4220
        %v4401 = vunpack.c.l.b16 %v4221
        %v4402 = vunpack.c.l.b16 %v4222
        %v4403 = vunpack.c.l.b16 %v4223
        %v4404 = vunpack.c.l.b16 %v4224
        %v4405 = vunpack.c.l.b16 %v4225
        %v4406 = vunpack.c.l.b16 %v4226
        %v4407 = vunpack.c.l.b16 %v4227
        %v4408 = vunpack.c.l.b16 %v4228
        %v4409 = vunpack.c.l.b16 %v4229
        %v4410 = vunpack.c.l.b16 %v4230
        %v4411 = vunpack.c.l.b16 %v4231
        %v4412 = vunpack.c.l.b16 %v4232
        %v4413 = vpack.c.b16 %v4398, %v4397
        %v4414 = vpack.c.b16 %v4400, %v4399
        %v4415 = vpack.c.b16 %v4402, %v4401
        %v4416 = vpack.c.b16 %v4404, %v4403
        %v4417 = vpack.c.b16 %v4406, %v4405
        %v4418 = vpack.c.b16 %v4408, %v4407
        %v4419 = vpack.c.b16 %v4410, %v4409
        %v4420 = vpack.c.b16 %v4412, %v4411
        %4429 = vmatpush.bf16.msra.mxu0 %v4420
        %4430 = vmatpush.bf16.msra.mxu0 %v4419
        %4431 = vmatpush.bf16.msra.mxu0 %v4418
        %4432 = vmatpush.bf16.msra.mxu0 %v4417
        %4433 = vmatpush.bf16.msra.mxu0 %v4416
        %4434 = vmatpush.bf16.msra.mxu0 %v4415
        %4435 = vmatpush.bf16.msra.mxu0 %v4414
        %4436 = vmatpush.bf16.msra.mxu0 %v4413
        %4437 = vmatmul.bf16.gmra.mxu0 %v4328
        %v4438 = vpop.f32.mrf.mxu0
        %v4439 = vadd.f32 0.0, %v4438
        %v4440 = vpop.f32.mrf.mxu0
        %v4441 = vadd.f32 0.0, %v4440
        %4442 = vmatmul.bf16.gmra.mxu0 %v4330
        %v4443 = vpop.f32.mrf.mxu0
        %v4444 = vadd.f32 0.0, %v4443
        %v4445 = vpop.f32.mrf.mxu0
        %v4446 = vadd.f32 0.0, %v4445
        %4447 = vmatmul.bf16.gmra.mxu0 %v4332
        %v4448 = vpop.f32.mrf.mxu0
        %v4449 = vadd.f32 0.0, %v4448
        %v4450 = vpop.f32.mrf.mxu0
        %v4451 = vadd.f32 0.0, %v4450
        %4452 = vmatmul.bf16.gmra.mxu0 %v4334
        %v4453 = vpop.f32.mrf.mxu0
        %v4454 = vadd.f32 0.0, %v4453
        %v4455 = vpop.f32.mrf.mxu0
        %v4456 = vadd.f32 0.0, %v4455
        %4457 = vmatmul.bf16.gmra.mxu0 %v4336
        %v4458 = vpop.f32.mrf.mxu0
        %v4459 = vadd.f32 0.0, %v4458
        %v4460 = vpop.f32.mrf.mxu0
        %v4461 = vadd.f32 0.0, %v4460
        %4462 = vmatmul.bf16.gmra.mxu0 %v4338
        %v4463 = vpop.f32.mrf.mxu0
        %v4464 = vadd.f32 0.0, %v4463
        %v4465 = vpop.f32.mrf.mxu0
        %v4466 = vadd.f32 0.0, %v4465
        %4467 = vmatmul.bf16.gmra.mxu0 %v4340
        %v4468 = vpop.f32.mrf.mxu0
        %v4469 = vadd.f32 0.0, %v4468
        %v4470 = vpop.f32.mrf.mxu0
        %v4471 = vadd.f32 0.0, %v4470
        %4472 = vmatmul.bf16.gmra.mxu0 %v4342
        %v4473 = vpop.f32.mrf.mxu0
        %v4474 = vadd.f32 0.0, %v4473
        %v4475 = vpop.f32.mrf.mxu0
        %v4476 = vadd.f32 0.0, %v4475
        %4477 = vmatmul.bf16.gmra.mxu0 %v4344
        %v4478 = vpop.f32.mrf.mxu0
        %v4479 = vadd.f32 0.0, %v4478
        %v4480 = vpop.f32.mrf.mxu0
        %v4481 = vadd.f32 0.0, %v4480
        %4482 = vmatmul.bf16.gmra.mxu0 %v4346
        %v4483 = vpop.f32.mrf.mxu0
        %v4484 = vadd.f32 0.0, %v4483
        %v4485 = vpop.f32.mrf.mxu0
        %v4486 = vadd.f32 0.0, %v4485
        %4487 = vmatmul.bf16.gmra.mxu0 %v4348
        %v4488 = vpop.f32.mrf.mxu0
        %v4489 = vadd.f32 0.0, %v4488
        %v4490 = vpop.f32.mrf.mxu0
        %v4491 = vadd.f32 0.0, %v4490
        %4492 = vmatmul.bf16.gmra.mxu0 %v4350
        %v4493 = vpop.f32.mrf.mxu0
        %v4494 = vadd.f32 0.0, %v4493
        %v4495 = vpop.f32.mrf.mxu0
        %v4496 = vadd.f32 0.0, %v4495
        %4497 = vmatmul.bf16.gmra.mxu0 %v4352
        %v4498 = vpop.f32.mrf.mxu0
        %v4499 = vadd.f32 0.0, %v4498
        %v4500 = vpop.f32.mrf.mxu0
        %v4501 = vadd.f32 0.0, %v4500
        %4502 = vmatmul.bf16.gmra.mxu0 %v4354
        %v4503 = vpop.f32.mrf.mxu0
        %v4504 = vadd.f32 0.0, %v4503
        %v4505 = vpop.f32.mrf.mxu0
        %v4506 = vadd.f32 0.0, %v4505
        %4507 = vmatmul.bf16.gmra.mxu0 %v4356
        %v4508 = vpop.f32.mrf.mxu0
        %v4509 = vadd.f32 0.0, %v4508
        %v4510 = vpop.f32.mrf.mxu0
        %v4511 = vadd.f32 0.0, %v4510
        %4512 = vmatmul.bf16.gmra.mxu0 %v4358
        %v4513 = vpop.f32.mrf.mxu0
        %v4514 = vadd.f32 0.0, %v4513
        %v4515 = vpop.f32.mrf.mxu0
        %v4516 = vadd.f32 0.0, %v4515
        %4517 = vmatmul.bf16.gmra.mxu0 %v4360
        %v4518 = vpop.f32.mrf.mxu0
        %v4519 = vadd.f32 0.0, %v4518
        %v4520 = vpop.f32.mrf.mxu0
        %v4521 = vadd.f32 0.0, %v4520
        %4522 = vmatmul.bf16.gmra.mxu0 %v4362
        %v4523 = vpop.f32.mrf.mxu0
        %v4524 = vadd.f32 0.0, %v4523
        %v4525 = vpop.f32.mrf.mxu0
        %v4526 = vadd.f32 0.0, %v4525
        %4527 = vdwg.mxu0
        %v4528 = vadd.f32 %v4143, %v4439
        %v4529 = vadd.f32 %v4144, %v4441
        %v4530 = vadd.f32 %v4145, %v4444
        %v4531 = vadd.f32 %v4146, %v4446
        %v4532 = vadd.f32 %v4147, %v4449
        %v4533 = vadd.f32 %v4148, %v4451
        %v4534 = vadd.f32 %v4149, %v4454
        %v4535 = vadd.f32 %v4150, %v4456
        %v4536 = vadd.f32 %v4151, %v4459
        %v4537 = vadd.f32 %v4152, %v4461
        %v4538 = vadd.f32 %v4153, %v4464
        %v4539 = vadd.f32 %v4154, %v4466
        %v4540 = vadd.f32 %v4155, %v4469
        %v4541 = vadd.f32 %v4156, %v4471
        %v4542 = vadd.f32 %v4157, %v4474
        %v4543 = vadd.f32 %v4158, %v4476
        %v4544 = vadd.f32 %v4159, %v4479
        %v4545 = vadd.f32 %v4160, %v4481
        %v4546 = vadd.f32 %v4161, %v4484
        %v4547 = vadd.f32 %v4162, %v4486
        %v4548 = vadd.f32 %v4163, %v4489
        %v4549 = vadd.f32 %v4164, %v4491
        %v4550 = vadd.f32 %v4165, %v4494
        %v4551 = vadd.f32 %v4166, %v4496
        %v4552 = vadd.f32 %v4167, %v4499
        %v4553 = vadd.f32 %v4168, %v4501
        %v4554 = vadd.f32 %v4169, %v4504
        %v4555 = vadd.f32 %v4170, %v4506
        %v4556 = vadd.f32 %v4171, %v4509
        %v4557 = vadd.f32 %v4172, %v4511
        %v4558 = vadd.f32 %v4173, %v4514
        %v4559 = vadd.f32 %v4174, %v4516
        %v4560 = vadd.f32 %v4175, %v4519
        %v4561 = vadd.f32 %v4176, %v4521
        %v4562 = vadd.f32 %v4177, %v4524
        %v4563 = vadd.f32 %v4178, %v4526
        %v4564 = vld [vmem:[#allocation2 + $0xa0] sm:$0x7]
        %s4565 = scalar_lea.vmem [#allocation6], 448
        %v4566 = vld [vmem:[%s4565] sm:$0xf]
        %v4567 = vld [vmem:[%s4565 + $0x4] sm:$0xf]
        %v4568 = vld [vmem:[%s4565 + $0x8] sm:$0xf]
        %v4569 = vld [vmem:[%s4565 + $0xc] sm:$0xf]
        %v4570 = vld [vmem:[%s4565 + $0x10] sm:$0xf]
        %v4571 = vld [vmem:[%s4565 + $0x14] sm:$0xf]
        %v4572 = vld [vmem:[%s4565 + $0x18] sm:$0xf]
        %v4573 = vld [vmem:[%s4565 + $0x1c] sm:$0xf]
        %v4574 = vld [vmem:[%s4565 + $0x20] sm:$0xf]
        %v4575 = vld [vmem:[%s4565 + $0x24] sm:$0xf]
        %v4576 = vld [vmem:[%s4565 + $0x28] sm:$0xf]
        %v4577 = vld [vmem:[%s4565 + $0x2c] sm:$0xf]
        %v4578 = vld [vmem:[%s4565 + $0x30] sm:$0xf]
        %v4579 = vld [vmem:[%s4565 + $0x34] sm:$0xf]
        %v4580 = vld [vmem:[%s4565 + $0x38] sm:$0xf]
        %v4581 = vld [vmem:[%s4565 + $0x3c] sm:$0xf]
        %v4583 = vunpack.c.l.b16 %v4564
        %v4584 = vpack.c.b16 %v4583, %v4583
        %vm4585 = vsmask.f32 5376
        %v4587 = vshrl.u32 %v4307, 16
        %v4589 = vrot.slane %v4587, 2
        %v4590 = vshll.u32 %v4307, 16
        %v4592 = vrot.slane %v4590, 3
        %v4593 = vor.u32 %v4589, %v4592
        %v4595 = vshrl.u32 %v4308, 16
        %v4597 = vrot.slane %v4595, 2
        %v4598 = vshll.u32 %v4308, 16
        %v4600 = vrot.slane %v4598, 3
        %v4601 = vor.u32 %v4597, %v4600
        %v4602 = vsel %vm4585, %v4593, %v4601
        %v4604 = vshrl.u32 %v4309, 16
        %v4606 = vrot.slane %v4604, 2
        %v4607 = vshll.u32 %v4309, 16
        %v4609 = vrot.slane %v4607, 3
        %v4610 = vor.u32 %v4606, %v4609
        %v4611 = vsel %vm4585, %v4601, %v4610
        %v4613 = vshrl.u32 %v4310, 16
        %v4615 = vrot.slane %v4613, 2
        %v4616 = vshll.u32 %v4310, 16
        %v4618 = vrot.slane %v4616, 3
        %v4619 = vor.u32 %v4615, %v4618
        %v4620 = vsel %vm4585, %v4610, %v4619
        %v4622 = vshrl.u32 %v4311, 16
        %v4624 = vrot.slane %v4622, 2
        %v4625 = vshll.u32 %v4311, 16
        %v4627 = vrot.slane %v4625, 3
        %v4628 = vor.u32 %v4624, %v4627
        %v4629 = vsel %vm4585, %v4619, %v4628
        %v4631 = vshrl.u32 %v4312, 16
        %v4633 = vrot.slane %v4631, 2
        %v4634 = vshll.u32 %v4312, 16
        %v4636 = vrot.slane %v4634, 3
        %v4637 = vor.u32 %v4633, %v4636
        %v4638 = vsel %vm4585, %v4628, %v4637
        %v4640 = vshrl.u32 %v4313, 16
        %v4642 = vrot.slane %v4640, 2
        %v4643 = vshll.u32 %v4313, 16
        %v4645 = vrot.slane %v4643, 3
        %v4646 = vor.u32 %v4642, %v4645
        %v4647 = vsel %vm4585, %v4637, %v4646
        %v4649 = vshrl.u32 %v4314, 16
        %v4651 = vrot.slane %v4649, 2
        %v4652 = vshll.u32 %v4314, 16
        %v4654 = vrot.slane %v4652, 3
        %v4655 = vor.u32 %v4651, %v4654
        %v4656 = vsel %vm4585, %v4646, %v4655
        %v4658 = vshrl.u32 %v4315, 16
        %v4660 = vrot.slane %v4658, 2
        %v4661 = vshll.u32 %v4315, 16
        %v4663 = vrot.slane %v4661, 3
        %v4664 = vor.u32 %v4660, %v4663
        %v4665 = vsel %vm4585, %v4655, %v4664
        %v4667 = vshrl.u32 %v4316, 16
        %v4669 = vrot.slane %v4667, 2
        %v4670 = vshll.u32 %v4316, 16
        %v4672 = vrot.slane %v4670, 3
        %v4673 = vor.u32 %v4669, %v4672
        %v4674 = vsel %vm4585, %v4664, %v4673
        %v4676 = vshrl.u32 %v4317, 16
        %v4678 = vrot.slane %v4676, 2
        %v4679 = vshll.u32 %v4317, 16
        %v4681 = vrot.slane %v4679, 3
        %v4682 = vor.u32 %v4678, %v4681
        %v4683 = vsel %vm4585, %v4673, %v4682
        %v4685 = vshrl.u32 %v4318, 16
        %v4687 = vrot.slane %v4685, 2
        %v4688 = vshll.u32 %v4318, 16
        %v4690 = vrot.slane %v4688, 3
        %v4691 = vor.u32 %v4687, %v4690
        %v4692 = vsel %vm4585, %v4682, %v4691
        %v4694 = vshrl.u32 %v4319, 16
        %v4696 = vrot.slane %v4694, 2
        %v4697 = vshll.u32 %v4319, 16
        %v4699 = vrot.slane %v4697, 3
        %v4700 = vor.u32 %v4696, %v4699
        %v4701 = vsel %vm4585, %v4691, %v4700
        %v4703 = vshrl.u32 %v4320, 16
        %v4705 = vrot.slane %v4703, 2
        %v4706 = vshll.u32 %v4320, 16
        %v4708 = vrot.slane %v4706, 3
        %v4709 = vor.u32 %v4705, %v4708
        %v4710 = vsel %vm4585, %v4700, %v4709
        %v4712 = vshrl.u32 %v4321, 16
        %v4714 = vrot.slane %v4712, 2
        %v4715 = vshll.u32 %v4321, 16
        %v4717 = vrot.slane %v4715, 3
        %v4718 = vor.u32 %v4714, %v4717
        %v4719 = vsel %vm4585, %v4709, %v4718
        %v4721 = vshrl.u32 %v4322, 16
        %v4723 = vrot.slane %v4721, 2
        %v4724 = vshll.u32 %v4322, 16
        %v4726 = vrot.slane %v4724, 3
        %v4727 = vor.u32 %v4723, %v4726
        %v4728 = vsel %vm4585, %v4718, %v4727
        %v4730 = vshrl.u32 %v4323, 16
        %v4732 = vrot.slane %v4730, 2
        %v4733 = vshll.u32 %v4323, 16
        %v4735 = vrot.slane %v4733, 3
        %v4736 = vor.u32 %v4732, %v4735
        %v4737 = vsel %vm4585, %v4727, %v4736
        %v4739 = vshrl.u32 %v4324, 16
        %v4741 = vrot.slane %v4739, 2
        %v4742 = vshll.u32 %v4324, 16
        %v4744 = vrot.slane %v4742, 3
        %v4745 = vor.u32 %v4741, %v4744
        %v4746 = vsel %vm4585, %v4736, %v4745
        %v4748 = vshrl.u32 %v4584, 16
        %v4750 = vrot.slane %v4748, 2
        %v4751 = vshll.u32 %v4584, 16
        %v4753 = vrot.slane %v4751, 3
        %v4754 = vor.u32 %v4750, %v4753
        %v4755 = vsel %vm4585, %v4745, %v4754
        %v4790 = vunpack.c.l.b16 %v4566
        %v4791 = vunpack.c.l.b16 %v4567
        %v4792 = vunpack.c.l.b16 %v4568
        %v4793 = vunpack.c.l.b16 %v4569
        %v4794 = vunpack.c.l.b16 %v4570
        %v4795 = vunpack.c.l.b16 %v4571
        %v4796 = vunpack.c.l.b16 %v4572
        %v4797 = vunpack.c.l.b16 %v4573
        %v4798 = vunpack.c.l.b16 %v4574
        %v4799 = vunpack.c.l.b16 %v4575
        %v4800 = vunpack.c.l.b16 %v4576
        %v4801 = vunpack.c.l.b16 %v4577
        %v4802 = vunpack.c.l.b16 %v4578
        %v4803 = vunpack.c.l.b16 %v4579
        %v4804 = vunpack.c.l.b16 %v4580
        %v4805 = vunpack.c.l.b16 %v4581
        %v4806 = vpack.c.b16 %v4791, %v4790
        %v4807 = vpack.c.b16 %v4793, %v4792
        %v4808 = vpack.c.b16 %v4795, %v4794
        %v4809 = vpack.c.b16 %v4797, %v4796
        %v4810 = vpack.c.b16 %v4799, %v4798
        %v4811 = vpack.c.b16 %v4801, %v4800
        %v4812 = vpack.c.b16 %v4803, %v4802
        %v4813 = vpack.c.b16 %v4805, %v4804
        %4822 = vmatpush.bf16.msra.mxu0 %v4813
        %4823 = vmatpush.bf16.msra.mxu0 %v4812
        %4824 = vmatpush.bf16.msra.mxu0 %v4811
        %4825 = vmatpush.bf16.msra.mxu0 %v4810
        %4826 = vmatpush.bf16.msra.mxu0 %v4809
        %4827 = vmatpush.bf16.msra.mxu0 %v4808
        %4828 = vmatpush.bf16.msra.mxu0 %v4807
        %4829 = vmatpush.bf16.msra.mxu0 %v4806
        %4830 = vmatmul.bf16.gmra.mxu0 %v4602
        %v4831 = vpop.f32.mrf.mxu0
        %v4832 = vadd.f32 0.0, %v4831
        %v4833 = vpop.f32.mrf.mxu0
        %v4834 = vadd.f32 0.0, %v4833
        %4835 = vmatmul.bf16.gmra.mxu0 %v4611
        %v4836 = vpop.f32.mrf.mxu0
        %v4837 = vadd.f32 0.0, %v4836
        %v4838 = vpop.f32.mrf.mxu0
        %v4839 = vadd.f32 0.0, %v4838
        %4840 = vmatmul.bf16.gmra.mxu0 %v4620
        %v4841 = vpop.f32.mrf.mxu0
        %v4842 = vadd.f32 0.0, %v4841
        %v4843 = vpop.f32.mrf.mxu0
        %v4844 = vadd.f32 0.0, %v4843
        %4845 = vmatmul.bf16.gmra.mxu0 %v4629
        %v4846 = vpop.f32.mrf.mxu0
        %v4847 = vadd.f32 0.0, %v4846
        %v4848 = vpop.f32.mrf.mxu0
        %v4849 = vadd.f32 0.0, %v4848
        %4850 = vmatmul.bf16.gmra.mxu0 %v4638
        %v4851 = vpop.f32.mrf.mxu0
        %v4852 = vadd.f32 0.0, %v4851
        %v4853 = vpop.f32.mrf.mxu0
        %v4854 = vadd.f32 0.0, %v4853
        %4855 = vmatmul.bf16.gmra.mxu0 %v4647
        %v4856 = vpop.f32.mrf.mxu0
        %v4857 = vadd.f32 0.0, %v4856
        %v4858 = vpop.f32.mrf.mxu0
        %v4859 = vadd.f32 0.0, %v4858
        %4860 = vmatmul.bf16.gmra.mxu0 %v4656
        %v4861 = vpop.f32.mrf.mxu0
        %v4862 = vadd.f32 0.0, %v4861
        %v4863 = vpop.f32.mrf.mxu0
        %v4864 = vadd.f32 0.0, %v4863
        %4865 = vmatmul.bf16.gmra.mxu0 %v4665
        %v4866 = vpop.f32.mrf.mxu0
        %v4867 = vadd.f32 0.0, %v4866
        %v4868 = vpop.f32.mrf.mxu0
        %v4869 = vadd.f32 0.0, %v4868
        %4870 = vmatmul.bf16.gmra.mxu0 %v4674
        %v4871 = vpop.f32.mrf.mxu0
        %v4872 = vadd.f32 0.0, %v4871
        %v4873 = vpop.f32.mrf.mxu0
        %v4874 = vadd.f32 0.0, %v4873
        %4875 = vmatmul.bf16.gmra.mxu0 %v4683
        %v4876 = vpop.f32.mrf.mxu0
        %v4877 = vadd.f32 0.0, %v4876
        %v4878 = vpop.f32.mrf.mxu0
        %v4879 = vadd.f32 0.0, %v4878
        %4880 = vmatmul.bf16.gmra.mxu0 %v4692
        %v4881 = vpop.f32.mrf.mxu0
        %v4882 = vadd.f32 0.0, %v4881
        %v4883 = vpop.f32.mrf.mxu0
        %v4884 = vadd.f32 0.0, %v4883
        %4885 = vmatmul.bf16.gmra.mxu0 %v4701
        %v4886 = vpop.f32.mrf.mxu0
        %v4887 = vadd.f32 0.0, %v4886
        %v4888 = vpop.f32.mrf.mxu0
        %v4889 = vadd.f32 0.0, %v4888
        %4890 = vmatmul.bf16.gmra.mxu0 %v4710
        %v4891 = vpop.f32.mrf.mxu0
        %v4892 = vadd.f32 0.0, %v4891
        %v4893 = vpop.f32.mrf.mxu0
        %v4894 = vadd.f32 0.0, %v4893
        %4895 = vmatmul.bf16.gmra.mxu0 %v4719
        %v4896 = vpop.f32.mrf.mxu0
        %v4897 = vadd.f32 0.0, %v4896
        %v4898 = vpop.f32.mrf.mxu0
        %v4899 = vadd.f32 0.0, %v4898
        %4900 = vmatmul.bf16.gmra.mxu0 %v4728
        %v4901 = vpop.f32.mrf.mxu0
        %v4902 = vadd.f32 0.0, %v4901
        %v4903 = vpop.f32.mrf.mxu0
        %v4904 = vadd.f32 0.0, %v4903
        %4905 = vmatmul.bf16.gmra.mxu0 %v4737
        %v4906 = vpop.f32.mrf.mxu0
        %v4907 = vadd.f32 0.0, %v4906
        %v4908 = vpop.f32.mrf.mxu0
        %v4909 = vadd.f32 0.0, %v4908
        %4910 = vmatmul.bf16.gmra.mxu0 %v4746
        %v4911 = vpop.f32.mrf.mxu0
        %v4912 = vadd.f32 0.0, %v4911
        %v4913 = vpop.f32.mrf.mxu0
        %v4914 = vadd.f32 0.0, %v4913
        %4915 = vmatmul.bf16.gmra.mxu0 %v4755
        %v4916 = vpop.f32.mrf.mxu0
        %v4917 = vadd.f32 0.0, %v4916
        %v4918 = vpop.f32.mrf.mxu0
        %v4919 = vadd.f32 0.0, %v4918
        %4920 = vdwg.mxu0
        %v4921 = vadd.f32 %v4528, %v4832
        %v4922 = vadd.f32 %v4529, %v4834
        %v4923 = vadd.f32 %v4530, %v4837
        %v4924 = vadd.f32 %v4531, %v4839
        %v4925 = vadd.f32 %v4532, %v4842
        %v4926 = vadd.f32 %v4533, %v4844
        %v4927 = vadd.f32 %v4534, %v4847
        %v4928 = vadd.f32 %v4535, %v4849
        %v4929 = vadd.f32 %v4536, %v4852
        %v4930 = vadd.f32 %v4537, %v4854
        %v4931 = vadd.f32 %v4538, %v4857
        %v4932 = vadd.f32 %v4539, %v4859
        %v4933 = vadd.f32 %v4540, %v4862
        %v4934 = vadd.f32 %v4541, %v4864
        %v4935 = vadd.f32 %v4542, %v4867
        %v4936 = vadd.f32 %v4543, %v4869
        %v4937 = vadd.f32 %v4544, %v4872
        %v4938 = vadd.f32 %v4545, %v4874
        %v4939 = vadd.f32 %v4546, %v4877
        %v4940 = vadd.f32 %v4547, %v4879
        %v4941 = vadd.f32 %v4548, %v4882
        %v4942 = vadd.f32 %v4549, %v4884
        %v4943 = vadd.f32 %v4550, %v4887
        %v4944 = vadd.f32 %v4551, %v4889
        %v4945 = vadd.f32 %v4552, %v4892
        %v4946 = vadd.f32 %v4553, %v4894
        %v4947 = vadd.f32 %v4554, %v4897
        %v4948 = vadd.f32 %v4555, %v4899
        %v4949 = vadd.f32 %v4556, %v4902
        %v4950 = vadd.f32 %v4557, %v4904
        %v4951 = vadd.f32 %v4558, %v4907
        %v4952 = vadd.f32 %v4559, %v4909
        %v4953 = vadd.f32 %v4560, %v4912
        %v4954 = vadd.f32 %v4561, %v4914
        %v4955 = vadd.f32 %v4562, %v4917
        %v4956 = vadd.f32 %v4563, %v4919
        %v4957 = vld [vmem:[#allocation2 + $0x10] sm:$0x8]
        %s4958 = scalar_lea.vmem [#allocation6], 512
        %v4959 = vld [vmem:[%s4958] sm:$0xf]
        %v4960 = vld [vmem:[%s4958 + $0x4] sm:$0xf]
        %v4961 = vld [vmem:[%s4958 + $0x8] sm:$0xf]
        %v4962 = vld [vmem:[%s4958 + $0xc] sm:$0xf]
        %v4963 = vld [vmem:[%s4958 + $0x10] sm:$0xf]
        %v4964 = vld [vmem:[%s4958 + $0x14] sm:$0xf]
        %v4965 = vld [vmem:[%s4958 + $0x18] sm:$0xf]
        %v4966 = vld [vmem:[%s4958 + $0x1c] sm:$0xf]
        %v4967 = vld [vmem:[%s4958 + $0x20] sm:$0xf]
        %v4968 = vld [vmem:[%s4958 + $0x24] sm:$0xf]
        %v4969 = vld [vmem:[%s4958 + $0x28] sm:$0xf]
        %v4970 = vld [vmem:[%s4958 + $0x2c] sm:$0xf]
        %v4971 = vld [vmem:[%s4958 + $0x30] sm:$0xf]
        %v4972 = vld [vmem:[%s4958 + $0x34] sm:$0xf]
        %v4973 = vld [vmem:[%s4958 + $0x38] sm:$0xf]
        %v4974 = vld [vmem:[%s4958 + $0x3c] sm:$0xf]
        %v4976 = vunpack.c.l.b16 %v4957
        %v4977 = vpack.c.b16 %v4271, %v4976
        %vm4978 = vcmask 1044480
        %v4979 = vrot.slane %v4977, 3
        %v4980 = vrot.slane %v4308, 3
        %v4981 = vsel %vm4978, %v4979, %v4980
        %v4982 = vrot.slane %v4309, 3
        %v4983 = vsel %vm4978, %v4980, %v4982
        %v4984 = vrot.slane %v4310, 3
        %v4985 = vsel %vm4978, %v4982, %v4984
        %v4986 = vrot.slane %v4311, 3
        %v4987 = vsel %vm4978, %v4984, %v4986
        %v4988 = vrot.slane %v4312, 3
        %v4989 = vsel %vm4978, %v4986, %v4988
        %v4990 = vrot.slane %v4313, 3
        %v4991 = vsel %vm4978, %v4988, %v4990
        %v4992 = vrot.slane %v4314, 3
        %v4993 = vsel %vm4978, %v4990, %v4992
        %v4994 = vrot.slane %v4315, 3
        %v4995 = vsel %vm4978, %v4992, %v4994
        %v4996 = vrot.slane %v4316, 3
        %v4997 = vsel %vm4978, %v4994, %v4996
        %v4998 = vrot.slane %v4317, 3
        %v4999 = vsel %vm4978, %v4996, %v4998
        %v5000 = vrot.slane %v4318, 3
        %v5001 = vsel %vm4978, %v4998, %v5000
        %v5002 = vrot.slane %v4319, 3
        %v5003 = vsel %vm4978, %v5000, %v5002
        %v5004 = vrot.slane %v4320, 3
        %v5005 = vsel %vm4978, %v5002, %v5004
        %v5006 = vrot.slane %v4321, 3
        %v5007 = vsel %vm4978, %v5004, %v5006
        %v5008 = vrot.slane %v4322, 3
        %v5009 = vsel %vm4978, %v5006, %v5008
        %v5010 = vrot.slane %v4323, 3
        %v5011 = vsel %vm4978, %v5008, %v5010
        %v5012 = vrot.slane %v4324, 3
        %v5013 = vsel %vm4978, %v5010, %v5012
        %v5014 = vrot.slane %v4584, 3
        %v5015 = vsel %vm4978, %v5012, %v5014
        %v5050 = vunpack.c.l.b16 %v4959
        %v5051 = vunpack.c.l.b16 %v4960
        %v5052 = vunpack.c.l.b16 %v4961
        %v5053 = vunpack.c.l.b16 %v4962
        %v5054 = vunpack.c.l.b16 %v4963
        %v5055 = vunpack.c.l.b16 %v4964
        %v5056 = vunpack.c.l.b16 %v4965
        %v5057 = vunpack.c.l.b16 %v4966
        %v5058 = vunpack.c.l.b16 %v4967
        %v5059 = vunpack.c.l.b16 %v4968
        %v5060 = vunpack.c.l.b16 %v4969
        %v5061 = vunpack.c.l.b16 %v4970
        %v5062 = vunpack.c.l.b16 %v4971
        %v5063 = vunpack.c.l.b16 %v4972
        %v5064 = vunpack.c.l.b16 %v4973
        %v5065 = vunpack.c.l.b16 %v4974
        %v5066 = vpack.c.b16 %v5051, %v5050
        %v5067 = vpack.c.b16 %v5053, %v5052
        %v5068 = vpack.c.b16 %v5055, %v5054
        %v5069 = vpack.c.b16 %v5057, %v5056
        %v5070 = vpack.c.b16 %v5059, %v5058
        %v5071 = vpack.c.b16 %v5061, %v5060
        %v5072 = vpack.c.b16 %v5063, %v5062
        %v5073 = vpack.c.b16 %v5065, %v5064
        %5082 = vmatpush.bf16.msra.mxu0 %v5073
        %5083 = vmatpush.bf16.msra.mxu0 %v5072
        %5084 = vmatpush.bf16.msra.mxu0 %v5071
        %5085 = vmatpush.bf16.msra.mxu0 %v5070
        %5086 = vmatpush.bf16.msra.mxu0 %v5069
        %5087 = vmatpush.bf16.msra.mxu0 %v5068
        %5088 = vmatpush.bf16.msra.mxu0 %v5067
        %5089 = vmatpush.bf16.msra.mxu0 %v5066
        %5090 = vmatmul.bf16.gmra.mxu0 %v4981
        %v5091 = vpop.f32.mrf.mxu0
        %v5092 = vadd.f32 0.0, %v5091
        %v5093 = vpop.f32.mrf.mxu0
        %v5094 = vadd.f32 0.0, %v5093
        %5095 = vmatmul.bf16.gmra.mxu0 %v4983
        %v5096 = vpop.f32.mrf.mxu0
        %v5097 = vadd.f32 0.0, %v5096
        %v5098 = vpop.f32.mrf.mxu0
        %v5099 = vadd.f32 0.0, %v5098
        %5100 = vmatmul.bf16.gmra.mxu0 %v4985
        %v5101 = vpop.f32.mrf.mxu0
        %v5102 = vadd.f32 0.0, %v5101
        %v5103 = vpop.f32.mrf.mxu0
        %v5104 = vadd.f32 0.0, %v5103
        %5105 = vmatmul.bf16.gmra.mxu0 %v4987
        %v5106 = vpop.f32.mrf.mxu0
        %v5107 = vadd.f32 0.0, %v5106
        %v5108 = vpop.f32.mrf.mxu0
        %v5109 = vadd.f32 0.0, %v5108
        %5110 = vmatmul.bf16.gmra.mxu0 %v4989
        %v5111 = vpop.f32.mrf.mxu0
        %v5112 = vadd.f32 0.0, %v5111
        %v5113 = vpop.f32.mrf.mxu0
        %v5114 = vadd.f32 0.0, %v5113
        %5115 = vmatmul.bf16.gmra.mxu0 %v4991
        %v5116 = vpop.f32.mrf.mxu0
        %v5117 = vadd.f32 0.0, %v5116
        %v5118 = vpop.f32.mrf.mxu0
        %v5119 = vadd.f32 0.0, %v5118
        %5120 = vmatmul.bf16.gmra.mxu0 %v4993
        %v5121 = vpop.f32.mrf.mxu0
        %v5122 = vadd.f32 0.0, %v5121
        %v5123 = vpop.f32.mrf.mxu0
        %v5124 = vadd.f32 0.0, %v5123
        %5125 = vmatmul.bf16.gmra.mxu0 %v4995
        %v5126 = vpop.f32.mrf.mxu0
        %v5127 = vadd.f32 0.0, %v5126
        %v5128 = vpop.f32.mrf.mxu0
        %v5129 = vadd.f32 0.0, %v5128
        %5130 = vmatmul.bf16.gmra.mxu0 %v4997
        %v5131 = vpop.f32.mrf.mxu0
        %v5132 = vadd.f32 0.0, %v5131
        %v5133 = vpop.f32.mrf.mxu0
        %v5134 = vadd.f32 0.0, %v5133
        %5135 = vmatmul.bf16.gmra.mxu0 %v4999
        %v5136 = vpop.f32.mrf.mxu0
        %v5137 = vadd.f32 0.0, %v5136
        %v5138 = vpop.f32.mrf.mxu0
        %v5139 = vadd.f32 0.0, %v5138
        %5140 = vmatmul.bf16.gmra.mxu0 %v5001
        %v5141 = vpop.f32.mrf.mxu0
        %v5142 = vadd.f32 0.0, %v5141
        %v5143 = vpop.f32.mrf.mxu0
        %v5144 = vadd.f32 0.0, %v5143
        %5145 = vmatmul.bf16.gmra.mxu0 %v5003
        %v5146 = vpop.f32.mrf.mxu0
        %v5147 = vadd.f32 0.0, %v5146
        %v5148 = vpop.f32.mrf.mxu0
        %v5149 = vadd.f32 0.0, %v5148
        %5150 = vmatmul.bf16.gmra.mxu0 %v5005
        %v5151 = vpop.f32.mrf.mxu0
        %v5152 = vadd.f32 0.0, %v5151
        %v5153 = vpop.f32.mrf.mxu0
        %v5154 = vadd.f32 0.0, %v5153
        %5155 = vmatmul.bf16.gmra.mxu0 %v5007
        %v5156 = vpop.f32.mrf.mxu0
        %v5157 = vadd.f32 0.0, %v5156
        %v5158 = vpop.f32.mrf.mxu0
        %v5159 = vadd.f32 0.0, %v5158
        %5160 = vmatmul.bf16.gmra.mxu0 %v5009
        %v5161 = vpop.f32.mrf.mxu0
        %v5162 = vadd.f32 0.0, %v5161
        %v5163 = vpop.f32.mrf.mxu0
        %v5164 = vadd.f32 0.0, %v5163
        %5165 = vmatmul.bf16.gmra.mxu0 %v5011
        %v5166 = vpop.f32.mrf.mxu0
        %v5167 = vadd.f32 0.0, %v5166
        %v5168 = vpop.f32.mrf.mxu0
        %v5169 = vadd.f32 0.0, %v5168
        %5170 = vmatmul.bf16.gmra.mxu0 %v5013
        %v5171 = vpop.f32.mrf.mxu0
        %v5172 = vadd.f32 0.0, %v5171
        %v5173 = vpop.f32.mrf.mxu0
        %v5174 = vadd.f32 0.0, %v5173
        %5175 = vmatmul.bf16.gmra.mxu0 %v5015
        %v5176 = vpop.f32.mrf.mxu0
        %v5177 = vadd.f32 0.0, %v5176
        %v5178 = vpop.f32.mrf.mxu0
        %v5179 = vadd.f32 0.0, %v5178
        %5180 = vdwg.mxu0
        %v5181 = vadd.f32 %v4921, %v5092
        %v5182 = vadd.f32 %v4922, %v5094
        %v5183 = vadd.f32 %v4923, %v5097
        %v5184 = vadd.f32 %v4924, %v5099
        %v5185 = vadd.f32 %v4925, %v5102
        %v5186 = vadd.f32 %v4926, %v5104
        %v5187 = vadd.f32 %v4927, %v5107
        %v5188 = vadd.f32 %v4928, %v5109
        %v5189 = vadd.f32 %v4929, %v5112
        %v5190 = vadd.f32 %v4930, %v5114
        %v5191 = vadd.f32 %v4931, %v5117
        %v5192 = vadd.f32 %v4932, %v5119
        %v5193 = vadd.f32 %v4933, %v5122
        %v5194 = vadd.f32 %v4934, %v5124
        %v5195 = vadd.f32 %v4935, %v5127
        %v5196 = vadd.f32 %v4936, %v5129
        %v5197 = vadd.f32 %v4937, %v5132
        %v5198 = vadd.f32 %v4938, %v5134
        %v5199 = vadd.f32 %v4939, %v5137
        %v5200 = vadd.f32 %v4940, %v5139
        %v5201 = vadd.f32 %v4941, %v5142
        %v5202 = vadd.f32 %v4942, %v5144
        %v5203 = vadd.f32 %v4943, %v5147
        %v5204 = vadd.f32 %v4944, %v5149
        %v5205 = vadd.f32 %v4945, %v5152
        %v5206 = vadd.f32 %v4946, %v5154
        %v5207 = vadd.f32 %v4947, %v5157
        %v5208 = vadd.f32 %v4948, %v5159
        %v5209 = vadd.f32 %v4949, %v5162
        %v5210 = vadd.f32 %v4950, %v5164
        %v5211 = vadd.f32 %v4951, %v5167
        %v5212 = vadd.f32 %v4952, %v5169
        %v5213 = vadd.f32 %v4953, %v5172
        %v5214 = vadd.f32 %v4954, %v5174
        %v5215 = vadd.f32 %v4955, %v5177
        %v5216 = vadd.f32 %v4956, %v5179
        %v5217 = vmul.f32 %v5181, %v1607
        %v5218 = vmul.f32 %v5182, %v1608
        %v5219 = vmul.f32 %v5183, %v1609
        %v5220 = vmul.f32 %v5184, %v1610
        %v5221 = vmul.f32 %v5185, %v1611
        %v5222 = vmul.f32 %v5186, %v1612
        %v5223 = vmul.f32 %v5187, %v1613
        %v5224 = vmul.f32 %v5188, %v1614
        %v5225 = vmul.f32 %v5189, %v1615
        %v5226 = vmul.f32 %v5190, %v1616
        %v5227 = vmul.f32 %v5191, %v1617
        %v5228 = vmul.f32 %v5192, %v1618
        %v5229 = vmul.f32 %v5193, %v1619
        %v5230 = vmul.f32 %v5194, %v1620
        %v5231 = vmul.f32 %v5195, %v1621
        %v5232 = vmul.f32 %v5196, %v1622
        %v5233 = vmul.f32 %v5197, %v1623
        %v5234 = vmul.f32 %v5198, %v1624
        %v5235 = vmul.f32 %v5199, %v1625
        %v5236 = vmul.f32 %v5200, %v1626
        %v5237 = vmul.f32 %v5201, %v1627
        %v5238 = vmul.f32 %v5202, %v1628
        %v5239 = vmul.f32 %v5203, %v1629
        %v5240 = vmul.f32 %v5204, %v1630
        %v5241 = vmul.f32 %v5205, %v1631
        %v5242 = vmul.f32 %v5206, %v1632
        %v5243 = vmul.f32 %v5207, %v1633
        %v5244 = vmul.f32 %v5208, %v1634
        %v5245 = vmul.f32 %v5209, %v1635
        %v5246 = vmul.f32 %v5210, %v1636
        %v5247 = vmul.f32 %v5211, %v1637
        %v5248 = vmul.f32 %v5212, %v1638
        %v5249 = vmul.f32 %v5213, %v1639
        %v5250 = vmul.f32 %v5214, %v1640
        %v5251 = vmul.f32 %v5215, %v1641
        %v5252 = vmul.f32 %v5216, %v1642
        %v5253 = vadd.f32 %v5217, %v5218
        %v5254 = vadd.f32 %v5253, %v5219
        %v5255 = vadd.f32 %v5254, %v5220
        %v5256 = vadd.f32 %v5255, %v5221
        %v5257 = vadd.f32 %v5256, %v5222
        %v5258 = vadd.f32 %v5257, %v5223
        %v5259 = vadd.f32 %v5258, %v5224
        %v5260 = vadd.f32 %v5259, %v5225
        %v5261 = vadd.f32 %v5260, %v5226
        %v5262 = vadd.f32 %v5261, %v5227
        %v5263 = vadd.f32 %v5262, %v5228
        %v5264 = vadd.f32 %v5263, %v5229
        %v5265 = vadd.f32 %v5264, %v5230
        %v5266 = vadd.f32 %v5265, %v5231
        %v5267 = vadd.f32 %v5266, %v5232
        %v5268 = vadd.f32 %v5267, %v5233
        %v5269 = vadd.f32 %v5268, %v5234
        %v5270 = vadd.f32 %v5269, %v5235
        %v5271 = vadd.f32 %v5270, %v5236
        %v5272 = vadd.f32 %v5271, %v5237
        %v5273 = vadd.f32 %v5272, %v5238
        %v5274 = vadd.f32 %v5273, %v5239
        %v5275 = vadd.f32 %v5274, %v5240
        %v5276 = vadd.f32 %v5275, %v5241
        %v5277 = vadd.f32 %v5276, %v5242
        %v5278 = vadd.f32 %v5277, %v5243
        %v5279 = vadd.f32 %v5278, %v5244
        %v5280 = vadd.f32 %v5279, %v5245
        %v5281 = vadd.f32 %v5280, %v5246
        %v5282 = vadd.f32 %v5281, %v5247
        %v5283 = vadd.f32 %v5282, %v5248
        %v5284 = vadd.f32 %v5283, %v5249
        %v5285 = vadd.f32 %v5284, %v5250
        %v5286 = vadd.f32 %v5285, %v5251
        %v5287 = vadd.f32 %v5286, %v5252
        %v5288 = vrot.slane %v5287, 4
        %v5289 = vadd.f32 %v5287, %v5288
        %v5290 = vrot.slane %v5289, 2
        %v5291 = vadd.f32 %v5289, %v5290
        %v5292 = vrot.slane %v5291, 1
        %v5293 = vadd.f32 %v5291, %v5292
        %v5294 = vmul.f32 %v5217, %v5217
        %v5295 = vmul.f32 %v5218, %v5218
        %v5296 = vmul.f32 %v5219, %v5219
        %v5297 = vmul.f32 %v5220, %v5220
        %v5298 = vmul.f32 %v5221, %v5221
        %v5299 = vmul.f32 %v5222, %v5222
        %v5300 = vmul.f32 %v5223, %v5223
        %v5301 = vmul.f32 %v5224, %v5224
        %v5302 = vmul.f32 %v5225, %v5225
        %v5303 = vmul.f32 %v5226, %v5226
        %v5304 = vmul.f32 %v5227, %v5227
        %v5305 = vmul.f32 %v5228, %v5228
        %v5306 = vmul.f32 %v5229, %v5229
        %v5307 = vmul.f32 %v5230, %v5230
        %v5308 = vmul.f32 %v5231, %v5231
        %v5309 = vmul.f32 %v5232, %v5232
        %v5310 = vmul.f32 %v5233, %v5233
        %v5311 = vmul.f32 %v5234, %v5234
        %v5312 = vmul.f32 %v5235, %v5235
        %v5313 = vmul.f32 %v5236, %v5236
        %v5314 = vmul.f32 %v5237, %v5237
        %v5315 = vmul.f32 %v5238, %v5238
        %v5316 = vmul.f32 %v5239, %v5239
        %v5317 = vmul.f32 %v5240, %v5240
        %v5318 = vmul.f32 %v5241, %v5241
        %v5319 = vmul.f32 %v5242, %v5242
        %v5320 = vmul.f32 %v5243, %v5243
        %v5321 = vmul.f32 %v5244, %v5244
        %v5322 = vmul.f32 %v5245, %v5245
        %v5323 = vmul.f32 %v5246, %v5246
        %v5324 = vmul.f32 %v5247, %v5247
        %v5325 = vmul.f32 %v5248, %v5248
        %v5326 = vmul.f32 %v5249, %v5249
        %v5327 = vmul.f32 %v5250, %v5250
        %v5328 = vmul.f32 %v5251, %v5251
        %v5329 = vmul.f32 %v5252, %v5252
        %v5330 = vadd.f32 %v5294, %v5295
        %v5331 = vadd.f32 %v5330, %v5296
        %v5332 = vadd.f32 %v5331, %v5297
        %v5333 = vadd.f32 %v5332, %v5298
        %v5334 = vadd.f32 %v5333, %v5299
        %v5335 = vadd.f32 %v5334, %v5300
        %v5336 = vadd.f32 %v5335, %v5301
        %v5337 = vadd.f32 %v5336, %v5302
        %v5338 = vadd.f32 %v5337, %v5303
        %v5339 = vadd.f32 %v5338, %v5304
        %v5340 = vadd.f32 %v5339, %v5305
        %v5341 = vadd.f32 %v5340, %v5306
        %v5342 = vadd.f32 %v5341, %v5307
        %v5343 = vadd.f32 %v5342, %v5308
        %v5344 = vadd.f32 %v5343, %v5309
        %v5345 = vadd.f32 %v5344, %v5310
        %v5346 = vadd.f32 %v5345, %v5311
        %v5347 = vadd.f32 %v5346, %v5312
        %v5348 = vadd.f32 %v5347, %v5313
        %v5349 = vadd.f32 %v5348, %v5314
        %v5350 = vadd.f32 %v5349, %v5315
        %v5351 = vadd.f32 %v5350, %v5316
        %v5352 = vadd.f32 %v5351, %v5317
        %v5353 = vadd.f32 %v5352, %v5318
        %v5354 = vadd.f32 %v5353, %v5319
        %v5355 = vadd.f32 %v5354, %v5320
        %v5356 = vadd.f32 %v5355, %v5321
        %v5357 = vadd.f32 %v5356, %v5322
        %v5358 = vadd.f32 %v5357, %v5323
        %v5359 = vadd.f32 %v5358, %v5324
        %v5360 = vadd.f32 %v5359, %v5325
        %v5361 = vadd.f32 %v5360, %v5326
        %v5362 = vadd.f32 %v5361, %v5327
        %v5363 = vadd.f32 %v5362, %v5328
        %v5364 = vadd.f32 %v5363, %v5329
        %v5365 = vrot.slane %v5364, 4
        %v5366 = vadd.f32 %v5364, %v5365
        %v5367 = vrot.slane %v5366, 2
        %v5368 = vadd.f32 %v5366, %v5367
        %v5369 = vrot.slane %v5368, 1
        %v5370 = vadd.f32 %v5368, %v5369
        %vm5371 = vcmask 1040384
        %v5372 = vsel %vm5371, %v5293, %v5370
        %vm5373 = vcmask 1041408
        %v5374 = vsel %vm5373, %v5372, 0.0
        %5375 = vst [vmem:[%s272] sm:$0xff] %v5374
        %v5376 = vpack.c.bf16 %v5217, %v5217
        %v5377 = vpack.c.bf16 %v5218, %v5218
        %v5378 = vpack.c.bf16 %v5219, %v5219
        %v5379 = vpack.c.bf16 %v5220, %v5220
        %v5380 = vpack.c.bf16 %v5221, %v5221
        %v5381 = vpack.c.bf16 %v5222, %v5222
        %v5382 = vpack.c.bf16 %v5223, %v5223
        %v5383 = vpack.c.bf16 %v5224, %v5224
        %v5384 = vpack.c.bf16 %v5225, %v5225
        %v5385 = vpack.c.bf16 %v5226, %v5226
        %v5386 = vpack.c.bf16 %v5227, %v5227
        %v5387 = vpack.c.bf16 %v5228, %v5228
        %v5388 = vpack.c.bf16 %v5229, %v5229
        %v5389 = vpack.c.bf16 %v5230, %v5230
        %v5390 = vpack.c.bf16 %v5231, %v5231
        %v5391 = vpack.c.bf16 %v5232, %v5232
        %v5392 = vpack.c.bf16 %v5233, %v5233
        %v5393 = vpack.c.bf16 %v5234, %v5234
        %v5394 = vpack.c.bf16 %v5235, %v5235
        %v5395 = vpack.c.bf16 %v5236, %v5236
        %v5396 = vpack.c.bf16 %v5237, %v5237
        %v5397 = vpack.c.bf16 %v5238, %v5238
        %v5398 = vpack.c.bf16 %v5239, %v5239
        %v5399 = vpack.c.bf16 %v5240, %v5240
        %v5400 = vpack.c.bf16 %v5241, %v5241
        %v5401 = vpack.c.bf16 %v5242, %v5242
        %v5402 = vpack.c.bf16 %v5243, %v5243
        %v5403 = vpack.c.bf16 %v5244, %v5244
        %v5404 = vpack.c.bf16 %v5245, %v5245
        %v5405 = vpack.c.bf16 %v5246, %v5246
        %v5406 = vpack.c.bf16 %v5247, %v5247
        %v5407 = vpack.c.bf16 %v5248, %v5248
        %v5408 = vpack.c.bf16 %v5249, %v5249
        %v5409 = vpack.c.bf16 %v5250, %v5250
        %v5410 = vpack.c.bf16 %v5251, %v5251
        %v5411 = vpack.c.bf16 %v5252, %v5252
        %5412 = vst [vmem:[%s265] sm:$0xf] %v5376
        %5413 = vst [vmem:[%s265 + $0x4] sm:$0xf] %v5377
        %5414 = vst [vmem:[%s265 + $0x8] sm:$0xf] %v5378
        %5415 = vst [vmem:[%s265 + $0xc] sm:$0xf] %v5379
        %5416 = vst [vmem:[%s265 + $0x10] sm:$0xf] %v5380
        %5417 = vst [vmem:[%s265 + $0x14] sm:$0xf] %v5381
        %5418 = vst [vmem:[%s265 + $0x18] sm:$0xf] %v5382
        %5419 = vst [vmem:[%s265 + $0x1c] sm:$0xf] %v5383
        %5420 = vst [vmem:[%s265 + $0x20] sm:$0xf] %v5384
        %5421 = vst [vmem:[%s265 + $0x24] sm:$0xf] %v5385
        %5422 = vst [vmem:[%s265 + $0x28] sm:$0xf] %v5386
        %5423 = vst [vmem:[%s265 + $0x2c] sm:$0xf] %v5387
        %5424 = vst [vmem:[%s265 + $0x30] sm:$0xf] %v5388
        %5425 = vst [vmem:[%s265 + $0x34] sm:$0xf] %v5389
        %5426 = vst [vmem:[%s265 + $0x38] sm:$0xf] %v5390
        %5427 = vst [vmem:[%s265 + $0x3c] sm:$0xf] %v5391
        %5428 = vst [vmem:[%s265 + $0x40] sm:$0xf] %v5392
        %5429 = vst [vmem:[%s265 + $0x44] sm:$0xf] %v5393
        %5430 = vst [vmem:[%s265 + $0x48] sm:$0xf] %v5394
        %5431 = vst [vmem:[%s265 + $0x4c] sm:$0xf] %v5395
        %5432 = vst [vmem:[%s265 + $0x50] sm:$0xf] %v5396
        %5433 = vst [vmem:[%s265 + $0x54] sm:$0xf] %v5397
        %5434 = vst [vmem:[%s265 + $0x58] sm:$0xf] %v5398
        %5435 = vst [vmem:[%s265 + $0x5c] sm:$0xf] %v5399
        %5436 = vst [vmem:[%s265 + $0x60] sm:$0xf] %v5400
        %5437 = vst [vmem:[%s265 + $0x64] sm:$0xf] %v5401
        %5438 = vst [vmem:[%s265 + $0x68] sm:$0xf] %v5402
        %5439 = vst [vmem:[%s265 + $0x6c] sm:$0xf] %v5403
        %5440 = vst [vmem:[%s265 + $0x70] sm:$0xf] %v5404
        %5441 = vst [vmem:[%s265 + $0x74] sm:$0xf] %v5405
        %5442 = vst [vmem:[%s265 + $0x78] sm:$0xf] %v5406
        %5443 = vst [vmem:[%s265 + $0x7c] sm:$0xf] %v5407
        %5444 = vst [vmem:[%s265 + $0x80] sm:$0xf] %v5408
        %5445 = vst [vmem:[%s265 + $0x84] sm:$0xf] %v5409
        %5446 = vst [vmem:[%s265 + $0x88] sm:$0xf] %v5410
        %5447 = vst [vmem:[%s265 + $0x8c] sm:$0xf] %v5411
        %s5448 = sand.u32 %s124, 1
        %s5449 = scalar_lea.sflag [#allocation5], %s5448
        %s5450 = sand.u32 %s124, 1
        %s5451 = smul.addr %s5450, 144
        %s5452 = scalar_lea.vmem [#allocation8], %s5451
        %s5453 = sand.u32 %s150, 1
        %s5454 = scalar_lea.sflag [#allocation10], %s5453
        %s5455 = sand.u32 %s150, 1
        %s5456 = smul.addr %s5455, 8
        %s5457 = scalar_lea.vmem [#allocation9], %s5456
        // Predicated region
        $region45: #{tpu_custom_call.1} parent=35 // pred_check
          %p5458 = pneg %p134
        $region46: #{tpu_custom_call.1} parent=35 // pred_check_branch
          %5460 = sbr.rel (%p5458) target = $region48
        $region47: #{tpu_custom_call.1} parent=35 // pred_region
          %5462 = vsyncadd %s5449, 0
          %s5463 = smul.addr %s27, 36
          %s5464 = smul.addr %s5463, 4
          %s5465 = scalar_lea.hbm %s4, %s5464
          %s5466 = sshll.u32 %s5452, 4
          %s5467 = int_to_ptr.vmem [resolvable:$true] %s5466
          %s5468 = sshll.u32 %s5465, 4
          %s5469 = int_to_ptr.hbm [resolvable:$true] %s5468
          %5474 = dma.vmem_to_hbm [thread:$0]  %s5467, 2304, %s5469, %s5449, 64, 64, 4
        $region48: #{tpu_custom_call.1} parent=35 // pred_fallthru
          _
        // Predicated region
        $region49: #{tpu_custom_call.1} parent=35 // pred_check
          %p5475 = pneg %p160
        $region50: #{tpu_custom_call.1} parent=35 // pred_check_branch
          %5477 = sbr.rel (%p5475) target = $region52
        $region51: #{tpu_custom_call.1} parent=35 // pred_region
          %5479 = vsyncadd %s5454, 0
          %s5480 = smul.addr %s27, 8
          %s5481 = scalar_lea.hbm %s5, %s5480
          %s5483 = sshll.u32 %s5457, 4
          %s5484 = int_to_ptr.vmem [resolvable:$true] %s5483
          %s5485 = sshll.u32 %s5481, 4
          %s5486 = int_to_ptr.hbm [resolvable:$true] %s5485
          %5488 = dma.vmem_to_hbm [thread:$0]  %s5484, 128, %s5486, %s5454
        $region52: #{tpu_custom_call.1} parent=35 // pred_fallthru
          _
      $region36: #{tpu_custom_call.1} parent=5 // pred_fallthru
        _
      %p5489 = scmp.le.s32.totalorder 2, %s22
      // Predicated region
      $region53: #{tpu_custom_call.1} parent=5 // pred_check
        %p5490 = pneg %p5489
      $region54: #{tpu_custom_call.1} parent=5 // pred_check_branch
        %5492 = sbr.rel (%p5490) target = $region56
      $region55: #{tpu_custom_call.1} parent=5 // pred_region
        %s5493 = ssub.s32 %s22, 2
        // Predicated region
        $region57: #{tpu_custom_call.1} parent=55 // pred_check
          %p5494 = pneg %p140
        $region58: #{tpu_custom_call.1} parent=55 // pred_check_branch
          %5496 = sbr.rel (%p5494) target = $region60
        $region59: #{tpu_custom_call.1} parent=55 // pred_region
          %s5497 = sand.u32 %s125, 1
          %s5498 = scalar_lea.sflag [#allocation5], %s5497
          %s5499 = sand.u32 %s125, 1
          %s5500 = smul.addr %s5499, 144
          %s5501 = scalar_lea.vmem [#allocation8], %s5500
          %5503 = dma.done %s5498, 2304
        $region60: #{tpu_custom_call.1} parent=55 // pred_fallthru
          _
        // Predicated region
        $region61: #{tpu_custom_call.1} parent=55 // pred_check
          %p5504 = pneg %p166
        $region62: #{tpu_custom_call.1} parent=55 // pred_check_branch
          %5506 = sbr.rel (%p5504) target = $region64
        $region63: #{tpu_custom_call.1} parent=55 // pred_region
          %s5507 = sand.u32 %s151, 1
          %s5508 = scalar_lea.sflag [#allocation10], %s5507
          %s5509 = sand.u32 %s151, 1
          %s5510 = smul.addr %s5509, 8
          %s5511 = scalar_lea.vmem [#allocation9], %s5510
          %5513 = dma.done %s5508, 128
        $region64: #{tpu_custom_call.1} parent=55 // pred_fallthru
          _
      $region56: #{tpu_custom_call.1} parent=5 // pred_fallthru
        _
    $region6: #{tpu_custom_call.1} parent=1 // loop_footer
      %s26 = sadd.s32 1, %s22
    $region7: #{tpu_custom_call.1} parent=1 // loop_footer_branch
      %21 = sbr.rel target = $region3
    $region8: #{tpu_custom_call.1} parent=1 // loop_exit
      _
    %5514 = vsyncpa [#allocation4], 1
    %s5515 = scalar_lea.sflag [#allocation4], 1
    %5516 = vsyncpa %s5515, 1
    %5517 = vsyncpa [#allocation7], 1
    %5518 = vsyncpa [#allocation5], 1
    %s5519 = scalar_lea.sflag [#allocation5], 1
    %5520 = vsyncpa %s5519, 1
    %5521 = vsyncpa [#allocation10], 1
    %s5522 = scalar_lea.sflag [#allocation10], 1
    %5523 = vsyncpa %s5522, 1

</llo_original>
